<compile_context>
chip_gen: v7x
topology: tpu7x:2x2x1
jax: 0.10.0
libtpu: 0.0.40
codegen_flags: <defaults>
</compile_context>

<pallas_src>
import functools

import jax
import jax.numpy as jnp
from jax.experimental import pallas as pl
from jax.experimental.pallas import tpu as pltpu


# ----------------------------------------------------------------------------- kernel
def _fused_head_kernel(box_ref, lab_ref,
                       w1b_ref, b1b_ref, w2b_ref, b2b_ref,
                       w1l_ref, b1l_ref, w2l_ref, b2l_ref,
                       w1m_ref, b1m_ref, w2m_ref, b2m_ref,
                       g_ref, beta_ref,
                       o_ref, *, eps, compute_dtype):
    """Per row-tile: ln2(mlp2(mlp_box(box) + mlp_label(label)))."""

    def mlp(x_f32, w1_ref, b1_ref, w2_ref, b2_ref):
        # fc1 on the MXU: cast LHS at the MXU boundary only, accumulate in f32.
        h = jnp.dot(x_f32.astype(compute_dtype), w1_ref[...],
                    preferred_element_type=jnp.float32)
        # bias + ReLU stay on the f32 accumulator (VPU).  drop1: p=0.0 -> identity.
        h = jnp.maximum(h + b1_ref[...], 0.0)
        # fc2: downcast only at the MXU boundary.  drop2: p=0.0 -> identity.
        y = jnp.dot(h.astype(compute_dtype), w2_ref[...],
                    preferred_element_type=jnp.float32)
        return y + b2_ref[...]

    y = (mlp(box_ref[...], w1b_ref, b1b_ref, w2b_ref, b2b_ref)
         + mlp(lab_ref[...], w1l_ref, b1l_ref, w2l_ref, b2l_ref))
    y = mlp(y, w1m_ref, b1m_ref, w2m_ref, b2m_ref)

    # ln2: LayerNorm over the hidden axis, f32 statistics (biased variance, eps inside sqrt).
    hdim = y.shape[-1]
    mean = jnp.sum(y, axis=-1, keepdims=True) * (1.0 / hdim)
    c = y - mean
    var = jnp.sum(c * c, axis=-1, keepdims=True) * (1.0 / hdim)
    y_n = c * jax.lax.rsqrt(var + eps)
    o_ref[...] = (y_n * g_ref[...] + beta_ref[...]).astype(o_ref.dtype)


# --------------------------------------------------------------------------- wrappers
def prepare_params(torch_params, compute_dtype=jnp.bfloat16):
    """One-time parameter prep (hoisted out of the per-call path).

    torch_params: dict with PyTorch-layout tensors:
      fc1_box/fc2_box/fc1_label/fc2_label/fc1_mlp2/fc2_mlp2 -> (weight(out,in), bias(out,))
      ln2 -> (gamma(hidden,), beta(hidden,))
    """
    def lin(name):
        w, b = torch_params[name]
        return (jnp.asarray(w).T.astype(compute_dtype),            # (in, out) for the MXU
                jnp.asarray(b).reshape(1, -1).astype(jnp.float32))  # f32 bias row
    g, b = torch_params["ln2"]
    return dict(
        box=lin("fc1_box") + lin("fc2_box"),
        label=lin("fc1_label") + lin("fc2_label"),
        mlp2=lin("fc1_mlp2") + lin("fc2_mlp2"),
        ln2=(jnp.asarray(g).reshape(1, -1).astype(jnp.float32),
             jnp.asarray(b).reshape(1, -1).astype(jnp.float32)),
        compute_dtype=compute_dtype,
    )


def label_backbone_head(box, label, params, *, tm_target=512, eps=1e-5, out_dtype=None):
    """Fused mlp_box + mlp_label + mlp2 + ln2.  Returns (B, W*H, hidden)."""
    B, W, H, Cb = box.shape
    Cl = label.shape[-1]
    m = B * W * H

    # permute(0,3,1,2).flatten(2).transpose(1,2) == reshape(B, W*H, C); flatten batch too.
    box2d = box.reshape(m, Cb)
    lab2d = label.reshape(m, Cl)

    w1b, b1b, w2b, b2b = params["box"]
    w1l, b1l, w2l, b2l = params["label"]
    w1m, b1m, w2m, b2m = params["mlp2"]
    gamma, beta = params["ln2"]
    compute_dtype = params["compute_dtype"]
    hid = w2m.shape[1]
    out_dtype = out_dtype or box.dtype

    # Row tiling: one grid step for small M (single-TC chips gain nothing from splitting);
    # otherwise tm_target-row tiles with a cdiv grid.  No M padding: the partial tail block
    # is clamped/masked by Pallas and rows are independent.
    if m <= tm_target:
        tm, n_tiles = m, 1                 # full-extent block, no 8-divisibility needed
    else:
        tm = tm_target                     # multiple of 8; pick so n_tiles is even on v7x
        n_tiles = pl.cdiv(m, tm)

    in_bytes = jnp.dtype(box.dtype).itemsize
    param_bytes = sum(int(a.size) * a.dtype.itemsize
                      for a in (w1b, b1b, w2b, b2b, w1l, b1l, w2l, b2l,
                                w1m, b1m, w2m, b2m, gamma, beta))
    cost = pl.CostEstimate(
        flops=2 * m * (hid * (Cb + Cl) + 4 * hid * hid),
        transcendentals=m,                                     # one rsqrt per row
        bytes_accessed=m * (Cb + Cl) * in_bytes
        + m * hid * jnp.dtype(out_dtype).itemsize
        + param_bytes,
    )

    def row_spec(c):
        return pl.BlockSpec((tm, c), lambda i: (i, 0))         # pipelined row tiles

    def full_spec(a):
        return pl.BlockSpec(a.shape, lambda i: (0, 0))         # resident in VMEM

    out = pl.pallas_call(
        functools.partial(_fused_head_kernel, eps=eps, compute_dtype=compute_dtype),
        out_shape=jax.ShapeDtypeStruct((m, hid), out_dtype),
        grid=(n_tiles,),
        in_specs=[
            row_spec(Cb), row_spec(Cl),
            full_spec(w1b), full_spec(b1b), full_spec(w2b), full_spec(b2b),
            full_spec(w1l), full_spec(b1l), full_spec(w2l), full_spec(b2l),
            full_spec(w1m), full_spec(b1m), full_spec(w2m), full_spec(b2m),
            full_spec(gamma), full_spec(beta),
        ],
        out_specs=row_spec(hid),
        compiler_params=pltpu.CompilerParams(
            dimension_semantics=("parallel",),
        ),
        cost_estimate=cost,
    )(box2d, lab2d,
      w1b, b1b, w2b, b2b,
      w1l, b1l, w2l, b2l,
      w1m, b1m, w2m, b2m,
      gamma, beta)

    # Token layout; the NCHW view for conv1/conv_blocks belongs to the (untranslated) conv stage.
    return out.reshape(B, W * H, hid)


# -------------------------------------------------------------------------- reference
def reference_head(box, label, torch_params, eps=1e-5):
    B, W, H, _ = box.shape

    def mlp(x, fc1, fc2):
        (w1, b1), (w2, b2) = fc1, fc2
        h = jnp.maximum(x @ w1.T + b1, 0.0)
        return h @ w2.T + b2

    with jax.default_matmul_precision("float32"):
        xb = box.reshape(B, W * H, -1)
        xl = label.reshape(B, W * H, -1)
        y = (mlp(xb, torch_params["fc1_box"], torch_params["fc2_box"])
             + mlp(xl, torch_params["fc1_label"], torch_params["fc2_label"]))
        y = mlp(y, torch_params["fc1_mlp2"], torch_params["fc2_mlp2"])
        g, b = torch_params["ln2"]
        mean = y.mean(-1, keepdims=True)
        var = ((y - mean) ** 2).mean(-1, keepdims=True)
        return (y - mean) / jnp.sqrt(var + eps) * g + b


# ------------------------------------------------------------------------------- demo
if __name__ == "__main__":
    def make_case(B, W, H, label_features, box_features, hidden_features, seed=0):
        key = jax.random.PRNGKey(seed)
        ks = jax.random.split(key, 16)
        box = jax.random.normal(ks[0], (B, W, H, box_features), jnp.float32)
        label = jax.random.normal(ks[1], (B, W, H, label_features), jnp.float32)
        s = 0.25

        def lin(kw, kb, din, dout):
            return (jax.random.normal(kw, (dout, din), jnp.float32) * s,   # torch (out, in)
                    jax.random.normal(kb, (dout,), jnp.float32) * s)

        tp = dict(
            fc1_box=lin(ks[2], ks[3], box_features, hidden_features),
            fc2_box=lin(ks[4], ks[5], hidden_features, hidden_features),
            fc1_label=lin(ks[6], ks[7], label_features, hidden_features),
            fc2_label=lin(ks[8], ks[9], hidden_features, hidden_features),
            fc1_mlp2=lin(ks[10], ks[11], hidden_features, hidden_features),
            fc2_mlp2=lin(ks[12], ks[13], hidden_features, hidden_features),
            ln2=(1.0 + 0.1 * jax.random.normal(ks[14], (hidden_features,), jnp.float32),
                 0.1 * jax.random.normal(ks[15], (hidden_features,), jnp.float32)),
        )
        return box, label, tp

    HID = 64

    # ---- case 1: f32 compute path, single row tile (m = 512 <= tm_target).
    box, label, tp = make_case(2, 16, 16, label_features=16, box_features=32,
                               hidden_features=HID, seed=0)
    params_f32 = prepare_params(tp, compute_dtype=jnp.float32)
    out1 = jax.block_until_ready(label_backbone_head(box, label, params_f32))
    ref1 = reference_head(box, label, tp)
    assert out1.shape == (2, 16 * 16, HID) and out1.dtype == jnp.float32
    assert jnp.allclose(out1, ref1, atol=5e-2, rtol=5e-2), float(jnp.max(jnp.abs(out1 - ref1)))

    # ---- case 2: bf16 MXU path, multi-tile grid (tm=128 -> 4 tiles), bf16 consumer output.
    params_bf16 = prepare_params(tp, compute_dtype=jnp.bfloat16)
    out2 = jax.block_until_ready(
        label_backbone_head(box, label, params_bf16, tm_target=128, out_dtype=jnp.bfloat16))
    assert out2.shape == (2, 16 * 16, HID) and out2.dtype == jnp.bfloat16
    assert jnp.allclose(out2.astype(jnp.float32), ref1, atol=1.5e-1, rtol=1e-1), \
        float(jnp.max(jnp.abs(out2.astype(jnp.float32) - ref1)))

    # ---- case 3: uneven M (m = 300, tm = 128 -> partial tail tile, no M padding).
    box3, label3, tp3 = make_case(2, 15, 10, label_features=16, box_features=32,
                                  hidden_features=HID, seed=1)
    params3 = prepare_params(tp3, compute_dtype=jnp.float32)
    out3 = jax.block_until_ready(label_backbone_head(box3, label3, params3, tm_target=128))
    ref3 = reference_head(box3, label3, tp3)
    assert out3.shape == (2, 15 * 10, HID)
    assert jnp.allclose(out3, ref3, atol=5e-2, rtol=5e-2), float(jnp.max(jnp.abs(out3 - ref3)))

    print("KERNEL_OK")
</pallas_src>

<mosaic_0001>
module attributes {stable_mosaic.version = 11 : i64} {
  func.func @_fused_head_kernel(%arg0: i32, %arg1: memref<512x32xf32, #tpu.memory_space<vmem>>, %arg2: memref<512x16xf32, #tpu.memory_space<vmem>>, %arg3: memref<32x64xf32, #tpu.memory_space<vmem>>, %arg4: memref<1x64xf32, #tpu.memory_space<vmem>>, %arg5: memref<64x64xf32, #tpu.memory_space<vmem>>, %arg6: memref<1x64xf32, #tpu.memory_space<vmem>>, %arg7: memref<16x64xf32, #tpu.memory_space<vmem>>, %arg8: memref<1x64xf32, #tpu.memory_space<vmem>>, %arg9: memref<64x64xf32, #tpu.memory_space<vmem>>, %arg10: memref<1x64xf32, #tpu.memory_space<vmem>>, %arg11: memref<64x64xf32, #tpu.memory_space<vmem>>, %arg12: memref<1x64xf32, #tpu.memory_space<vmem>>, %arg13: memref<64x64xf32, #tpu.memory_space<vmem>>, %arg14: memref<1x64xf32, #tpu.memory_space<vmem>>, %arg15: memref<1x64xf32, #tpu.memory_space<vmem>>, %arg16: memref<1x64xf32, #tpu.memory_space<vmem>>, %arg17: memref<512x64xf32, #tpu.memory_space<vmem>>) attributes {dimension_semantics = [#tpu.dimension_semantics<parallel>], iteration_bounds = array<i64: 1>, scalar_prefetch = 0 : i64, scratch_operands = 0 : i64, tpu.core_type = #tpu.core_type<tc>, window_params = [{transform_indices = @transform_0, window_bounds = array<i64: 512, 32>}, {transform_indices = @transform_1, window_bounds = array<i64: 512, 16>}, {pipeline_mode = #tpu.pipeline_mode<synchronous>, transform_indices = @transform_2, window_bounds = array<i64: 32, 64>}, {pipeline_mode = #tpu.pipeline_mode<synchronous>, transform_indices = @transform_3, window_bounds = array<i64: 1, 64>}, {pipeline_mode = #tpu.pipeline_mode<synchronous>, transform_indices = @transform_4, window_bounds = array<i64: 64, 64>}, {pipeline_mode = #tpu.pipeline_mode<synchronous>, transform_indices = @transform_5, window_bounds = array<i64: 1, 64>}, {pipeline_mode = #tpu.pipeline_mode<synchronous>, transform_indices = @transform_6, window_bounds = array<i64: 16, 64>}, {pipeline_mode = #tpu.pipeline_mode<synchronous>, transform_indices = @transform_7, window_bounds = array<i64: 1, 64>}, {pipeline_mode = #tpu.pipeline_mode<synchronous>, transform_indices = @transform_8, window_bounds = array<i64: 64, 64>}, {pipeline_mode = #tpu.pipeline_mode<synchronous>, transform_indices = @transform_9, window_bounds = array<i64: 1, 64>}, {pipeline_mode = #tpu.pipeline_mode<synchronous>, transform_indices = @transform_10, window_bounds = array<i64: 64, 64>}, {pipeline_mode = #tpu.pipeline_mode<synchronous>, transform_indices = @transform_11, window_bounds = array<i64: 1, 64>}, {pipeline_mode = #tpu.pipeline_mode<synchronous>, transform_indices = @transform_12, window_bounds = array<i64: 64, 64>}, {pipeline_mode = #tpu.pipeline_mode<synchronous>, transform_indices = @transform_13, window_bounds = array<i64: 1, 64>}, {pipeline_mode = #tpu.pipeline_mode<synchronous>, transform_indices = @transform_14, window_bounds = array<i64: 1, 64>}, {pipeline_mode = #tpu.pipeline_mode<synchronous>, transform_indices = @transform_15, window_bounds = array<i64: 1, 64>}, {transform_indices = @transform_16, window_bounds = array<i64: 512, 64>}]} {
    %c0 = arith.constant 0 : index
    %c0_0 = arith.constant 0 : index
    %0 = vector.load %arg1[%c0, %c0_0] : memref<512x32xf32, #tpu.memory_space<vmem>>, vector<512x32xf32>
    %c0_1 = arith.constant 0 : index
    %c0_2 = arith.constant 0 : index
    %1 = vector.load %arg3[%c0_1, %c0_2] : memref<32x64xf32, #tpu.memory_space<vmem>>, vector<32x64xf32>
    %cst = arith.constant dense<0.000000e+00> : vector<512x64xf32>
    %2 = tpu.matmul %0, %1, %cst {dimension_numbers = #tpu.dot_dimension_numbers<[1], [0], [0], [1], [0, 0, 1, 1], [], []>} : vector<512x32xf32>, vector<32x64xf32>, vector<512x64xf32> -> vector<512x64xf32>
    %c0_3 = arith.constant 0 : index
    %c0_4 = arith.constant 0 : index
    %3 = vector.load %arg4[%c0_3, %c0_4] : memref<1x64xf32, #tpu.memory_space<vmem>>, vector<1x64xf32>
    %4 = vector.broadcast %3 : vector<1x64xf32> to vector<512x64xf32>
    %5 = arith.addf %2, %4 : vector<512x64xf32>
    %cst_5 = arith.constant 0.000000e+00 : f32
    %6 = vector.broadcast %cst_5 : f32 to vector<512x64xf32>
    %7 = arith.maximumf %5, %6 : vector<512x64xf32>
    %c0_6 = arith.constant 0 : index
    %c0_7 = arith.constant 0 : index
    %8 = vector.load %arg5[%c0_6, %c0_7] : memref<64x64xf32, #tpu.memory_space<vmem>>, vector<64x64xf32>
    %cst_8 = arith.constant dense<0.000000e+00> : vector<512x64xf32>
    %9 = tpu.matmul %7, %8, %cst_8 {dimension_numbers = #tpu.dot_dimension_numbers<[1], [0], [0], [1], [0, 0, 1, 1], [], []>} : vector<512x64xf32>, vector<64x64xf32>, vector<512x64xf32> -> vector<512x64xf32>
    %c0_9 = arith.constant 0 : index
    %c0_10 = arith.constant 0 : index
    %10 = vector.load %arg6[%c0_9, %c0_10] : memref<1x64xf32, #tpu.memory_space<vmem>>, vector<1x64xf32>
    %11 = vector.broadcast %10 : vector<1x64xf32> to vector<512x64xf32>
    %12 = arith.addf %9, %11 : vector<512x64xf32>
    %c0_11 = arith.constant 0 : index
    %c0_12 = arith.constant 0 : index
    %13 = vector.load %arg2[%c0_11, %c0_12] : memref<512x16xf32, #tpu.memory_space<vmem>>, vector<512x16xf32>
    %c0_13 = arith.constant 0 : index
    %c0_14 = arith.constant 0 : index
    %14 = vector.load %arg7[%c0_13, %c0_14] : memref<16x64xf32, #tpu.memory_space<vmem>>, vector<16x64xf32>
    %cst_15 = arith.constant dense<0.000000e+00> : vector<512x64xf32>
    %15 = tpu.matmul %13, %14, %cst_15 {dimension_numbers = #tpu.dot_dimension_numbers<[1], [0], [0], [1], [0, 0, 1, 1], [], []>} : vector<512x16xf32>, vector<16x64xf32>, vector<512x64xf32> -> vector<512x64xf32>
    %c0_16 = arith.constant 0 : index
    %c0_17 = arith.constant 0 : index
    %16 = vector.load %arg8[%c0_16, %c0_17] : memref<1x64xf32, #tpu.memory_space<vmem>>, vector<1x64xf32>
    %17 = vector.broadcast %16 : vector<1x64xf32> to vector<512x64xf32>
    %18 = arith.addf %15, %17 : vector<512x64xf32>
    %cst_18 = arith.constant 0.000000e+00 : f32
    %19 = vector.broadcast %cst_18 : f32 to vector<512x64xf32>
    %20 = arith.maximumf %18, %19 : vector<512x64xf32>
    %c0_19 = arith.constant 0 : index
    %c0_20 = arith.constant 0 : index
    %21 = vector.load %arg9[%c0_19, %c0_20] : memref<64x64xf32, #tpu.memory_space<vmem>>, vector<64x64xf32>
    %cst_21 = arith.constant dense<0.000000e+00> : vector<512x64xf32>
    %22 = tpu.matmul %20, %21, %cst_21 {dimension_numbers = #tpu.dot_dimension_numbers<[1], [0], [0], [1], [0, 0, 1, 1], [], []>} : vector<512x64xf32>, vector<64x64xf32>, vector<512x64xf32> -> vector<512x64xf32>
    %c0_22 = arith.constant 0 : index
    %c0_23 = arith.constant 0 : index
    %23 = vector.load %arg10[%c0_22, %c0_23] : memref<1x64xf32, #tpu.memory_space<vmem>>, vector<1x64xf32>
    %24 = vector.broadcast %23 : vector<1x64xf32> to vector<512x64xf32>
    %25 = arith.addf %22, %24 : vector<512x64xf32>
    %26 = arith.addf %12, %25 : vector<512x64xf32>
    %c0_24 = arith.constant 0 : index
    %c0_25 = arith.constant 0 : index
    %27 = vector.load %arg11[%c0_24, %c0_25] : memref<64x64xf32, #tpu.memory_space<vmem>>, vector<64x64xf32>
    %cst_26 = arith.constant dense<0.000000e+00> : vector<512x64xf32>
    %28 = tpu.matmul %26, %27, %cst_26 {dimension_numbers = #tpu.dot_dimension_numbers<[1], [0], [0], [1], [0, 0, 1, 1], [], []>} : vector<512x64xf32>, vector<64x64xf32>, vector<512x64xf32> -> vector<512x64xf32>
    %c0_27 = arith.constant 0 : index
    %c0_28 = arith.constant 0 : index
    %29 = vector.load %arg12[%c0_27, %c0_28] : memref<1x64xf32, #tpu.memory_space<vmem>>, vector<1x64xf32>
    %30 = vector.broadcast %29 : vector<1x64xf32> to vector<512x64xf32>
    %31 = arith.addf %28, %30 : vector<512x64xf32>
    %cst_29 = arith.constant 0.000000e+00 : f32
    %32 = vector.broadcast %cst_29 : f32 to vector<512x64xf32>
    %33 = arith.maximumf %31, %32 : vector<512x64xf32>
    %c0_30 = arith.constant 0 : index
    %c0_31 = arith.constant 0 : index
    %34 = vector.load %arg13[%c0_30, %c0_31] : memref<64x64xf32, #tpu.memory_space<vmem>>, vector<64x64xf32>
    %cst_32 = arith.constant dense<0.000000e+00> : vector<512x64xf32>
    %35 = tpu.matmul %33, %34, %cst_32 {dimension_numbers = #tpu.dot_dimension_numbers<[1], [0], [0], [1], [0, 0, 1, 1], [], []>} : vector<512x64xf32>, vector<64x64xf32>, vector<512x64xf32> -> vector<512x64xf32>
    %c0_33 = arith.constant 0 : index
    %c0_34 = arith.constant 0 : index
    %36 = vector.load %arg14[%c0_33, %c0_34] : memref<1x64xf32, #tpu.memory_space<vmem>>, vector<1x64xf32>
    %37 = vector.broadcast %36 : vector<1x64xf32> to vector<512x64xf32>
    %38 = arith.addf %35, %37 : vector<512x64xf32>
    %cst_35 = arith.constant dense<0.000000e+00> : vector<512xf32>
    %39 = vector.multi_reduction <add>, %38, %cst_35 [1] : vector<512x64xf32> to vector<512xf32>
    %40 = vector.shape_cast %39 : vector<512xf32> to vector<512x1xf32>
    %cst_36 = arith.constant 1.562500e-02 : f32
    %41 = vector.broadcast %cst_36 : f32 to vector<512x1xf32>
    %42 = arith.mulf %40, %41 : vector<512x1xf32>
    %43 = vector.broadcast %42 : vector<512x1xf32> to vector<512x64xf32>
    %44 = arith.subf %38, %43 : vector<512x64xf32>
    %45 = arith.mulf %44, %44 : vector<512x64xf32>
    %cst_37 = arith.constant dense<0.000000e+00> : vector<512xf32>
    %46 = vector.multi_reduction <add>, %45, %cst_37 [1] : vector<512x64xf32> to vector<512xf32>
    %47 = vector.shape_cast %46 : vector<512xf32> to vector<512x1xf32>
    %cst_38 = arith.constant 1.562500e-02 : f32
    %48 = vector.broadcast %cst_38 : f32 to vector<512x1xf32>
    %49 = arith.mulf %47, %48 : vector<512x1xf32>
    %cst_39 = arith.constant 9.99999974E-6 : f32
    %50 = vector.broadcast %cst_39 : f32 to vector<512x1xf32>
    %51 = arith.addf %49, %50 : vector<512x1xf32>
    %52 = math.rsqrt %51 : vector<512x1xf32>
    %53 = vector.broadcast %52 : vector<512x1xf32> to vector<512x64xf32>
    %54 = arith.mulf %44, %53 : vector<512x64xf32>
    %c0_40 = arith.constant 0 : index
    %c0_41 = arith.constant 0 : index
    %55 = vector.load %arg15[%c0_40, %c0_41] : memref<1x64xf32, #tpu.memory_space<vmem>>, vector<1x64xf32>
    %56 = vector.broadcast %55 : vector<1x64xf32> to vector<512x64xf32>
    %57 = arith.mulf %54, %56 : vector<512x64xf32>
    %c0_42 = arith.constant 0 : index
    %c0_43 = arith.constant 0 : index
    %58 = vector.load %arg16[%c0_42, %c0_43] : memref<1x64xf32, #tpu.memory_space<vmem>>, vector<1x64xf32>
    %59 = vector.broadcast %58 : vector<1x64xf32> to vector<512x64xf32>
    %60 = arith.addf %57, %59 : vector<512x64xf32>
    %c0_44 = arith.constant 0 : index
    %c0_45 = arith.constant 0 : index
    %61 = vector.load %arg17[%c0_44, %c0_45] : memref<512x64xf32, #tpu.memory_space<vmem>>, vector<512x64xf32>
    tpu.vector_store %arg17[%c0_44, %c0_45], %60 {strides = array<i32>} : memref<512x64xf32, #tpu.memory_space<vmem>>, vector<512x64xf32>,
    return
  }
  func.func @transform_0(%arg0: i32) -> (i32, i32) {
    %c0_i32 = arith.constant 0 : i32
    %c0_i32_0 = arith.constant 0 : i32
    return %arg0, %c0_i32 : i32, i32
  }
  func.func @transform_1(%arg0: i32) -> (i32, i32) {
    %c0_i32 = arith.constant 0 : i32
    %c0_i32_0 = arith.constant 0 : i32
    return %arg0, %c0_i32 : i32, i32
  }
  func.func @transform_2(%arg0: i32) -> (i32, i32) {
    %c0_i32 = arith.constant 0 : i32
    %c0_i32_0 = arith.constant 0 : i32
    %c0_i32_1 = arith.constant 0 : i32
    return %c0_i32, %c0_i32_0 : i32, i32
  }
  func.func @transform_3(%arg0: i32) -> (i32, i32) {
    %c0_i32 = arith.constant 0 : i32
    %c0_i32_0 = arith.constant 0 : i32
    %c0_i32_1 = arith.constant 0 : i32
    return %c0_i32, %c0_i32_0 : i32, i32
  }
  func.func @transform_4(%arg0: i32) -> (i32, i32) {
    %c0_i32 = arith.constant 0 : i32
    %c0_i32_0 = arith.constant 0 : i32
    %c0_i32_1 = arith.constant 0 : i32
    return %c0_i32, %c0_i32_0 : i32, i32
  }
  func.func @transform_5(%arg0: i32) -> (i32, i32) {
    %c0_i32 = arith.constant 0 : i32
    %c0_i32_0 = arith.constant 0 : i32
    %c0_i32_1 = arith.constant 0 : i32
    return %c0_i32, %c0_i32_0 : i32, i32
  }
  func.func @transform_6(%arg0: i32) -> (i32, i32) {
    %c0_i32 = arith.constant 0 : i32
    %c0_i32_0 = arith.constant 0 : i32
    %c0_i32_1 = arith.constant 0 : i32
    return %c0_i32, %c0_i32_0 : i32, i32
  }
  func.func @transform_7(%arg0: i32) -> (i32, i32) {
    %c0_i32 = arith.constant 0 : i32
    %c0_i32_0 = arith.constant 0 : i32
    %c0_i32_1 = arith.constant 0 : i32
    return %c0_i32, %c0_i32_0 : i32, i32
  }
  func.func @transform_8(%arg0: i32) -> (i32, i32) {
    %c0_i32 = arith.constant 0 : i32
    %c0_i32_0 = arith.constant 0 : i32
    %c0_i32_1 = arith.constant 0 : i32
    return %c0_i32, %c0_i32_0 : i32, i32
  }
  func.func @transform_9(%arg0: i32) -> (i32, i32) {
    %c0_i32 = arith.constant 0 : i32
    %c0_i32_0 = arith.constant 0 : i32
    %c0_i32_1 = arith.constant 0 : i32
    return %c0_i32, %c0_i32_0 : i32, i32
  }
  func.func @transform_10(%arg0: i32) -> (i32, i32) {
    %c0_i32 = arith.constant 0 : i32
    %c0_i32_0 = arith.constant 0 : i32
    %c0_i32_1 = arith.constant 0 : i32
    return %c0_i32, %c0_i32_0 : i32, i32
  }
  func.func @transform_11(%arg0: i32) -> (i32, i32) {
    %c0_i32 = arith.constant 0 : i32
    %c0_i32_0 = arith.constant 0 : i32
    %c0_i32_1 = arith.constant 0 : i32
    return %c0_i32, %c0_i32_0 : i32, i32
  }
  func.func @transform_12(%arg0: i32) -> (i32, i32) {
    %c0_i32 = arith.constant 0 : i32
    %c0_i32_0 = arith.constant 0 : i32
    %c0_i32_1 = arith.constant 0 : i32
    return %c0_i32, %c0_i32_0 : i32, i32
  }
  func.func @transform_13(%arg0: i32) -> (i32, i32) {
    %c0_i32 = arith.constant 0 : i32
    %c0_i32_0 = arith.constant 0 : i32
    %c0_i32_1 = arith.constant 0 : i32
    return %c0_i32, %c0_i32_0 : i32, i32
  }
  func.func @transform_14(%arg0: i32) -> (i32, i32) {
    %c0_i32 = arith.constant 0 : i32
    %c0_i32_0 = arith.constant 0 : i32
    %c0_i32_1 = arith.constant 0 : i32
    return %c0_i32, %c0_i32_0 : i32, i32
  }
  func.func @transform_15(%arg0: i32) -> (i32, i32) {
    %c0_i32 = arith.constant 0 : i32
    %c0_i32_0 = arith.constant 0 : i32
    %c0_i32_1 = arith.constant 0 : i32
    return %c0_i32, %c0_i32_0 : i32, i32
  }
  func.func @transform_16(%arg0: i32) -> (i32, i32) {
    %c0_i32 = arith.constant 0 : i32
    %c0_i32_0 = arith.constant 0 : i32
    return %arg0, %c0_i32 : i32, i32
  }
}

</mosaic_0001>

<llo_original>
// kernel: tpu_custom_call.1
$region0: #{tpu_custom_call.1}
  #allocation0 [shape = 'u32[]', space=smem, size = 0x4, offset = 0x4, fixed_abs, tag = 'smem constant byte address 0x4 - core index']
  #allocation1 [shape = 'u32[144,128]{1,0:T(1,128)}', space=vmem, size = 0x12000, scoped, tag = 'internal scratch']
  %s0 = inlined_call_operand.vmem [shape: f32[512,32], index: 0, kind: input, shape index: {}]
  %s1 = inlined_call_operand.vmem [shape: f32[512,16], index: 1, kind: input, shape index: {}]
  %s2 = inlined_call_operand.vmem [shape: f32[32,64], index: 2, kind: input, shape index: {}]
  %s3 = inlined_call_operand.vmem [shape: f32[1,64], index: 3, kind: input, shape index: {}]
  %s4 = inlined_call_operand.vmem [shape: f32[64,64], index: 4, kind: input, shape index: {}]
  %s5 = inlined_call_operand.vmem [shape: f32[1,64], index: 5, kind: input, shape index: {}]
  %s6 = inlined_call_operand.vmem [shape: f32[16,64], index: 6, kind: input, shape index: {}]
  %s7 = inlined_call_operand.vmem [shape: f32[1,64], index: 7, kind: input, shape index: {}]
  %s8 = inlined_call_operand.vmem [shape: f32[64,64], index: 8, kind: input, shape index: {}]
  %s9 = inlined_call_operand.vmem [shape: f32[1,64], index: 9, kind: input, shape index: {}]
  %s10 = inlined_call_operand.vmem [shape: f32[64,64], index: 10, kind: input, shape index: {}]
  %s11 = inlined_call_operand.vmem [shape: f32[1,64], index: 11, kind: input, shape index: {}]
  %s12 = inlined_call_operand.vmem [shape: f32[64,64], index: 12, kind: input, shape index: {}]
  %s13 = inlined_call_operand.vmem [shape: f32[1,64], index: 13, kind: input, shape index: {}]
  %s14 = inlined_call_operand.vmem [shape: f32[1,64], index: 14, kind: input, shape index: {}]
  %s15 = inlined_call_operand.vmem [shape: f32[1,64], index: 15, kind: input, shape index: {}]
  %s16 = inlined_call_operand.vmem [shape: f32[512,64], index: 16, kind: output, shape index: {}]
  %s17 = sld [smem:[#allocation0]]
  $region74: #{tpu_custom_call.1} parent=0
    _
  %s19 = ssub.s32 1, %s17
  %s20 = scalar_select 0, %s19, %s17
  // Predicated region
  $region2: #{tpu_custom_call.1} parent=0 // pred_check
    _
  $region3: #{tpu_custom_call.1} parent=0 // pred_check_branch
    %22 = sbr.rel (0) target = $region5
  $region4: #{tpu_custom_call.1} parent=0 // pred_region
    _
  $region5: #{tpu_custom_call.1} parent=0 // pred_fallthru
    _
  // Predicated region
  $region6: #{tpu_custom_call.1} parent=0 // pred_check
    _
  $region7: #{tpu_custom_call.1} parent=0 // pred_check_branch
    %24 = sbr.rel (0) target = $region9
  $region8: #{tpu_custom_call.1} parent=0 // pred_region
    _
  $region9: #{tpu_custom_call.1} parent=0 // pred_fallthru
    _
  // Predicated region
  $region10: #{tpu_custom_call.1} parent=0 // pred_check
    _
  $region11: #{tpu_custom_call.1} parent=0 // pred_check_branch
    %26 = sbr.rel (0) target = $region13
  $region12: #{tpu_custom_call.1} parent=0 // pred_region
    _
  $region13: #{tpu_custom_call.1} parent=0 // pred_fallthru
    _
  // Predicated region
  $region14: #{tpu_custom_call.1} parent=0 // pred_check
    _
  $region15: #{tpu_custom_call.1} parent=0 // pred_check_branch
    %28 = sbr.rel (0) target = $region17
  $region16: #{tpu_custom_call.1} parent=0 // pred_region
    _
  $region17: #{tpu_custom_call.1} parent=0 // pred_fallthru
    _
  // Predicated region
  $region18: #{tpu_custom_call.1} parent=0 // pred_check
    _
  $region19: #{tpu_custom_call.1} parent=0 // pred_check_branch
    %30 = sbr.rel (0) target = $region21
  $region20: #{tpu_custom_call.1} parent=0 // pred_region
    _
  $region21: #{tpu_custom_call.1} parent=0 // pred_fallthru
    _
  // Predicated region
  $region22: #{tpu_custom_call.1} parent=0 // pred_check
    _
  $region23: #{tpu_custom_call.1} parent=0 // pred_check_branch
    %32 = sbr.rel (0) target = $region25
  $region24: #{tpu_custom_call.1} parent=0 // pred_region
    _
  $region25: #{tpu_custom_call.1} parent=0 // pred_fallthru
    _
  // Predicated region
  $region26: #{tpu_custom_call.1} parent=0 // pred_check
    _
  $region27: #{tpu_custom_call.1} parent=0 // pred_check_branch
    %34 = sbr.rel (0) target = $region29
  $region28: #{tpu_custom_call.1} parent=0 // pred_region
    _
  $region29: #{tpu_custom_call.1} parent=0 // pred_fallthru
    _
  // Predicated region
  $region30: #{tpu_custom_call.1} parent=0 // pred_check
    _
  $region31: #{tpu_custom_call.1} parent=0 // pred_check_branch
    %36 = sbr.rel (0) target = $region33
  $region32: #{tpu_custom_call.1} parent=0 // pred_region
    _
  $region33: #{tpu_custom_call.1} parent=0 // pred_fallthru
    _
  // Predicated region
  $region34: #{tpu_custom_call.1} parent=0 // pred_check
    _
  $region35: #{tpu_custom_call.1} parent=0 // pred_check_branch
    %38 = sbr.rel (0) target = $region37
  $region36: #{tpu_custom_call.1} parent=0 // pred_region
    _
  $region37: #{tpu_custom_call.1} parent=0 // pred_fallthru
    _
  // Predicated region
  $region38: #{tpu_custom_call.1} parent=0 // pred_check
    _
  $region39: #{tpu_custom_call.1} parent=0 // pred_check_branch
    %40 = sbr.rel (0) target = $region41
  $region40: #{tpu_custom_call.1} parent=0 // pred_region
    _
  $region41: #{tpu_custom_call.1} parent=0 // pred_fallthru
    _
  // Predicated region
  $region42: #{tpu_custom_call.1} parent=0 // pred_check
    _
  $region43: #{tpu_custom_call.1} parent=0 // pred_check_branch
    %42 = sbr.rel (0) target = $region45
  $region44: #{tpu_custom_call.1} parent=0 // pred_region
    _
  $region45: #{tpu_custom_call.1} parent=0 // pred_fallthru
    _
  // Predicated region
  $region46: #{tpu_custom_call.1} parent=0 // pred_check
    _
  $region47: #{tpu_custom_call.1} parent=0 // pred_check_branch
    %44 = sbr.rel (0) target = $region49
  $region48: #{tpu_custom_call.1} parent=0 // pred_region
    _
  $region49: #{tpu_custom_call.1} parent=0 // pred_fallthru
    _
  // Predicated region
  $region50: #{tpu_custom_call.1} parent=0 // pred_check
    _
  $region51: #{tpu_custom_call.1} parent=0 // pred_check_branch
    %46 = sbr.rel (0) target = $region53
  $region52: #{tpu_custom_call.1} parent=0 // pred_region
    _
  $region53: #{tpu_custom_call.1} parent=0 // pred_fallthru
    _
  // Predicated region
  $region54: #{tpu_custom_call.1} parent=0 // pred_check
    _
  $region55: #{tpu_custom_call.1} parent=0 // pred_check_branch
    %48 = sbr.rel (0) target = $region57
  $region56: #{tpu_custom_call.1} parent=0 // pred_region
    _
  $region57: #{tpu_custom_call.1} parent=0 // pred_fallthru
    _
  // Predicated region
  $region58: #{tpu_custom_call.1} parent=0 // pred_check
    _
  $region59: #{tpu_custom_call.1} parent=0 // pred_check_branch
    %50 = sbr.rel (0) target = $region61
  $region60: #{tpu_custom_call.1} parent=0 // pred_region
    _
  $region61: #{tpu_custom_call.1} parent=0 // pred_fallthru
    _
  // Predicated region
  $region62: #{tpu_custom_call.1} parent=0 // pred_check
    _
  $region63: #{tpu_custom_call.1} parent=0 // pred_check_branch
    %52 = sbr.rel (0) target = $region65
  $region64: #{tpu_custom_call.1} parent=0 // pred_region
    _
  $region65: #{tpu_custom_call.1} parent=0 // pred_fallthru
    _
  %v53 = vld [vmem:[%s0] sm:$0xff]
  %v54 = vld [vmem:[%s0 + $0x8] sm:$0xff]
  %v55 = vld [vmem:[%s0 + $0x10] sm:$0xff]
  %v56 = vld [vmem:[%s0 + $0x18] sm:$0xff]
  %v57 = vld [vmem:[%s0 + $0x20] sm:$0xff]
  %v58 = vld [vmem:[%s0 + $0x28] sm:$0xff]
  %v59 = vld [vmem:[%s0 + $0x30] sm:$0xff]
  %v60 = vld [vmem:[%s0 + $0x38] sm:$0xff]
  %v61 = vld [vmem:[%s0 + $0x40] sm:$0xff]
  %v62 = vld [vmem:[%s0 + $0x48] sm:$0xff]
  %v63 = vld [vmem:[%s0 + $0x50] sm:$0xff]
  %v64 = vld [vmem:[%s0 + $0x58] sm:$0xff]
  %v65 = vld [vmem:[%s0 + $0x60] sm:$0xff]
  %v66 = vld [vmem:[%s0 + $0x68] sm:$0xff]
  %v67 = vld [vmem:[%s0 + $0x70] sm:$0xff]
  %v68 = vld [vmem:[%s0 + $0x78] sm:$0xff]
  %v69 = vld [vmem:[%s0 + $0x80] sm:$0xff]
  %v70 = vld [vmem:[%s0 + $0x88] sm:$0xff]
  %v71 = vld [vmem:[%s0 + $0x90] sm:$0xff]
  %v72 = vld [vmem:[%s0 + $0x98] sm:$0xff]
  %v73 = vld [vmem:[%s0 + $0xa0] sm:$0xff]
  %v74 = vld [vmem:[%s0 + $0xa8] sm:$0xff]
  %v75 = vld [vmem:[%s0 + $0xb0] sm:$0xff]
  %v76 = vld [vmem:[%s0 + $0xb8] sm:$0xff]
  %v77 = vld [vmem:[%s0 + $0xc0] sm:$0xff]
  %v78 = vld [vmem:[%s0 + $0xc8] sm:$0xff]
  %v79 = vld [vmem:[%s0 + $0xd0] sm:$0xff]
  %v80 = vld [vmem:[%s0 + $0xd8] sm:$0xff]
  %v81 = vld [vmem:[%s0 + $0xe0] sm:$0xff]
  %v82 = vld [vmem:[%s0 + $0xe8] sm:$0xff]
  %v83 = vld [vmem:[%s0 + $0xf0] sm:$0xff]
  %v84 = vld [vmem:[%s0 + $0xf8] sm:$0xff]
  %v85 = vld [vmem:[%s0 + $0x100] sm:$0xff]
  %v86 = vld [vmem:[%s0 + $0x108] sm:$0xff]
  %v87 = vld [vmem:[%s0 + $0x110] sm:$0xff]
  %v88 = vld [vmem:[%s0 + $0x118] sm:$0xff]
  %v89 = vld [vmem:[%s0 + $0x120] sm:$0xff]
  %v90 = vld [vmem:[%s0 + $0x128] sm:$0xff]
  %v91 = vld [vmem:[%s0 + $0x130] sm:$0xff]
  %v92 = vld [vmem:[%s0 + $0x138] sm:$0xff]
  %v93 = vld [vmem:[%s0 + $0x140] sm:$0xff]
  %v94 = vld [vmem:[%s0 + $0x148] sm:$0xff]
  %v95 = vld [vmem:[%s0 + $0x150] sm:$0xff]
  %v96 = vld [vmem:[%s0 + $0x158] sm:$0xff]
  %v97 = vld [vmem:[%s0 + $0x160] sm:$0xff]
  %v98 = vld [vmem:[%s0 + $0x168] sm:$0xff]
  %v99 = vld [vmem:[%s0 + $0x170] sm:$0xff]
  %v100 = vld [vmem:[%s0 + $0x178] sm:$0xff]
  %v101 = vld [vmem:[%s0 + $0x180] sm:$0xff]
  %v102 = vld [vmem:[%s0 + $0x188] sm:$0xff]
  %v103 = vld [vmem:[%s0 + $0x190] sm:$0xff]
  %v104 = vld [vmem:[%s0 + $0x198] sm:$0xff]
  %v105 = vld [vmem:[%s0 + $0x1a0] sm:$0xff]
  %v106 = vld [vmem:[%s0 + $0x1a8] sm:$0xff]
  %v107 = vld [vmem:[%s0 + $0x1b0] sm:$0xff]
  %v108 = vld [vmem:[%s0 + $0x1b8] sm:$0xff]
  %v109 = vld [vmem:[%s0 + $0x1c0] sm:$0xff]
  %v110 = vld [vmem:[%s0 + $0x1c8] sm:$0xff]
  %v111 = vld [vmem:[%s0 + $0x1d0] sm:$0xff]
  %v112 = vld [vmem:[%s0 + $0x1d8] sm:$0xff]
  %v113 = vld [vmem:[%s0 + $0x1e0] sm:$0xff]
  %v114 = vld [vmem:[%s0 + $0x1e8] sm:$0xff]
  %v115 = vld [vmem:[%s0 + $0x1f0] sm:$0xff]
  %v116 = vld [vmem:[%s0 + $0x1f8] sm:$0xff]
  %v117 = vld [vmem:[%s2] sm:$0xff]
  %v118 = vld [vmem:[%s2 + $0x8] sm:$0xff]
  %v119 = vld [vmem:[%s2 + $0x10] sm:$0xff]
  %v120 = vld [vmem:[%s2 + $0x18] sm:$0xff]
  %v121 = vld [vmem:[%s3] sm:$0x1]
  %v123 = vlaneseq
  %v124 = vshrl.u32 %v123, 7
  %v125 = vsub.s32 0, %v124
  %v126 = vrot.slane %v121, %v125
  %vm128 = vcmask 261120
  %v130 = vsel %vm128, %v53, 0
  %v133 = vsel %vm128, %v54, 0
  %v136 = vsel %vm128, %v55, 0
  %v139 = vsel %vm128, %v56, 0
  %v142 = vsel %vm128, %v57, 0
  %v145 = vsel %vm128, %v58, 0
  %v148 = vsel %vm128, %v59, 0
  %v151 = vsel %vm128, %v60, 0
  %v154 = vsel %vm128, %v61, 0
  %v157 = vsel %vm128, %v62, 0
  %v160 = vsel %vm128, %v63, 0
  %v163 = vsel %vm128, %v64, 0
  %v166 = vsel %vm128, %v65, 0
  %v169 = vsel %vm128, %v66, 0
  %v172 = vsel %vm128, %v67, 0
  %v175 = vsel %vm128, %v68, 0
  %v178 = vsel %vm128, %v69, 0
  %v181 = vsel %vm128, %v70, 0
  %v184 = vsel %vm128, %v71, 0
  %v187 = vsel %vm128, %v72, 0
  %v190 = vsel %vm128, %v73, 0
  %v193 = vsel %vm128, %v74, 0
  %v196 = vsel %vm128, %v75, 0
  %v199 = vsel %vm128, %v76, 0
  %v202 = vsel %vm128, %v77, 0
  %v205 = vsel %vm128, %v78, 0
  %v208 = vsel %vm128, %v79, 0
  %v211 = vsel %vm128, %v80, 0
  %v214 = vsel %vm128, %v81, 0
  %v217 = vsel %vm128, %v82, 0
  %v220 = vsel %vm128, %v83, 0
  %v223 = vsel %vm128, %v84, 0
  %v226 = vsel %vm128, %v85, 0
  %v229 = vsel %vm128, %v86, 0
  %v232 = vsel %vm128, %v87, 0
  %v235 = vsel %vm128, %v88, 0
  %v238 = vsel %vm128, %v89, 0
  %v241 = vsel %vm128, %v90, 0
  %v244 = vsel %vm128, %v91, 0
  %v247 = vsel %vm128, %v92, 0
  %v250 = vsel %vm128, %v93, 0
  %v253 = vsel %vm128, %v94, 0
  %v256 = vsel %vm128, %v95, 0
  %v259 = vsel %vm128, %v96, 0
  %v262 = vsel %vm128, %v97, 0
  %v265 = vsel %vm128, %v98, 0
  %v268 = vsel %vm128, %v99, 0
  %v271 = vsel %vm128, %v100, 0
  %v274 = vsel %vm128, %v101, 0
  %v277 = vsel %vm128, %v102, 0
  %v280 = vsel %vm128, %v103, 0
  %v283 = vsel %vm128, %v104, 0
  %v286 = vsel %vm128, %v105, 0
  %v289 = vsel %vm128, %v106, 0
  %v292 = vsel %vm128, %v107, 0
  %v295 = vsel %vm128, %v108, 0
  %v298 = vsel %vm128, %v109, 0
  %v301 = vsel %vm128, %v110, 0
  %v304 = vsel %vm128, %v111, 0
  %v307 = vsel %vm128, %v112, 0
  %v310 = vsel %vm128, %v113, 0
  %v313 = vsel %vm128, %v114, 0
  %v316 = vsel %vm128, %v115, 0
  %v319 = vsel %vm128, %v116, 0
  %321 = vmatprep.subr.mxu0 0.0
  %322 = vmatpush1.msra.mxu0 %v117
  %323 = vmatprep.subr.mxu0 0.0
  %324 = vmatpush1.msra.mxu0 %v118
  %325 = vmatprep.subr.mxu0 0.0
  %326 = vmatpush1.msra.mxu0 %v119
  %327 = vmatprep.subr.mxu0 0.0
  %328 = vmatpush1.msra.mxu0 %v120
  %329 = vmatprep.subr.mxu0 0.0
  %330 = vmatpush1.msra.mxu0 0.0
  %331 = vmatprep.subr.mxu0 0.0
  %332 = vmatpush1.msra.mxu0 0.0
  %333 = vmatprep.subr.mxu0 0.0
  %334 = vmatpush1.msra.mxu0 0.0
  %335 = vmatprep.subr.mxu0 0.0
  %336 = vmatpush1.msra.mxu0 0.0
  %337 = vmatprep.subr.mxu0 0.0
  %338 = vmatpush1.msra.mxu0 0.0
  %339 = vmatprep.subr.mxu0 0.0
  %340 = vmatpush1.msra.mxu0 0.0
  %341 = vmatprep.subr.mxu0 0.0
  %342 = vmatpush1.msra.mxu0 0.0
  %343 = vmatprep.subr.mxu0 0.0
  %344 = vmatpush1.msra.mxu0 0.0
  %345 = vmatprep.subr.mxu0 0.0
  %346 = vmatpush1.msra.mxu0 0.0
  %347 = vmatprep.subr.mxu0 0.0
  %348 = vmatpush1.msra.mxu0 0.0
  %349 = vmatprep.subr.mxu0 0.0
  %350 = vmatpush1.msra.mxu0 0.0
  %351 = vmatprep.subr.mxu0 0.0
  %352 = vmatpush1.msra.mxu0 0.0
  %353 = vmatprep.subr.mxu0 0.0
  %354 = vmatpush1.msra.mxu0 0.0
  %355 = vmatprep.subr.mxu0 0.0
  %356 = vmatpush1.msra.mxu0 0.0
  %357 = vmatprep.subr.mxu0 0.0
  %358 = vmatpush1.msra.mxu0 0.0
  %359 = vmatprep.subr.mxu0 0.0
  %360 = vmatpush1.msra.mxu0 0.0
  %361 = vmatprep.subr.mxu0 0.0
  %362 = vmatpush1.msra.mxu0 0.0
  %363 = vmatprep.subr.mxu0 0.0
  %364 = vmatpush1.msra.mxu0 0.0
  %365 = vmatprep.subr.mxu0 0.0
  %366 = vmatpush1.msra.mxu0 0.0
  %367 = vmatprep.subr.mxu0 0.0
  %368 = vmatpush1.msra.mxu0 0.0
  %369 = vmatprep.subr.mxu0 0.0
  %370 = vmatpush1.msra.mxu0 0.0
  %371 = vmatprep.subr.mxu0 0.0
  %372 = vmatpush1.msra.mxu0 0.0
  %373 = vmatprep.subr.mxu0 0.0
  %374 = vmatpush1.msra.mxu0 0.0
  %375 = vmatprep.subr.mxu0 0.0
  %376 = vmatpush1.msra.mxu0 0.0
  %377 = vmatprep.subr.mxu0 0.0
  %378 = vmatpush1.msra.mxu0 0.0
  %379 = vmatprep.subr.mxu0 0.0
  %380 = vmatpush1.msra.mxu0 0.0
  %381 = vmatprep.subr.mxu0 0.0
  %382 = vmatpush1.msra.mxu0 0.0
  %383 = vmatprep.subr.mxu0 0.0
  %384 = vmatpush1.msra.mxu0 0.0
  %385 = vmatprep.mubr.f32.mxu0 0.0
  %386 = vmatmul.mubr.f32.gmra.mrb[0].mxu0 %v130
  %v387 = vpop.f32.mrb[0].mxu0
  %v388 = vadd.f32 %v126, %v387
  %v389 = vpop.f32.mrb[0].mxu0
  %390 = vmatprep.mubr.f32.mxu0 0.0
  %391 = vmatmul.mubr.f32.gmra.mrb[0].mxu0 %v133
  %v392 = vpop.f32.mrb[0].mxu0
  %v393 = vadd.f32 %v126, %v392
  %v394 = vpop.f32.mrb[0].mxu0
  %395 = vmatprep.mubr.f32.mxu0 0.0
  %396 = vmatmul.mubr.f32.gmra.mrb[0].mxu0 %v136
  %v397 = vpop.f32.mrb[0].mxu0
  %v398 = vadd.f32 %v126, %v397
  %v399 = vpop.f32.mrb[0].mxu0
  %400 = vmatprep.mubr.f32.mxu0 0.0
  %401 = vmatmul.mubr.f32.gmra.mrb[0].mxu0 %v139
  %v402 = vpop.f32.mrb[0].mxu0
  %v403 = vadd.f32 %v126, %v402
  %v404 = vpop.f32.mrb[0].mxu0
  %405 = vmatprep.mubr.f32.mxu0 0.0
  %406 = vmatmul.mubr.f32.gmra.mrb[0].mxu0 %v142
  %v407 = vpop.f32.mrb[0].mxu0
  %v408 = vadd.f32 %v126, %v407
  %v409 = vpop.f32.mrb[0].mxu0
  %410 = vmatprep.mubr.f32.mxu0 0.0
  %411 = vmatmul.mubr.f32.gmra.mrb[0].mxu0 %v145
  %v412 = vpop.f32.mrb[0].mxu0
  %v413 = vadd.f32 %v126, %v412
  %v414 = vpop.f32.mrb[0].mxu0
  %415 = vmatprep.mubr.f32.mxu0 0.0
  %416 = vmatmul.mubr.f32.gmra.mrb[0].mxu0 %v148
  %v417 = vpop.f32.mrb[0].mxu0
  %v418 = vadd.f32 %v126, %v417
  %v419 = vpop.f32.mrb[0].mxu0
  %420 = vmatprep.mubr.f32.mxu0 0.0
  %421 = vmatmul.mubr.f32.gmra.mrb[0].mxu0 %v151
  %v422 = vpop.f32.mrb[0].mxu0
  %v423 = vadd.f32 %v126, %v422
  %v424 = vpop.f32.mrb[0].mxu0
  %425 = vmatprep.mubr.f32.mxu0 0.0
  %426 = vmatmul.mubr.f32.gmra.mrb[0].mxu0 %v154
  %v427 = vpop.f32.mrb[0].mxu0
  %v428 = vadd.f32 %v126, %v427
  %v429 = vpop.f32.mrb[0].mxu0
  %430 = vmatprep.mubr.f32.mxu0 0.0
  %431 = vmatmul.mubr.f32.gmra.mrb[0].mxu0 %v157
  %v432 = vpop.f32.mrb[0].mxu0
  %v433 = vadd.f32 %v126, %v432
  %v434 = vpop.f32.mrb[0].mxu0
  %435 = vmatprep.mubr.f32.mxu0 0.0
  %436 = vmatmul.mubr.f32.gmra.mrb[0].mxu0 %v160
  %v437 = vpop.f32.mrb[0].mxu0
  %v438 = vadd.f32 %v126, %v437
  %v439 = vpop.f32.mrb[0].mxu0
  %440 = vmatprep.mubr.f32.mxu0 0.0
  %441 = vmatmul.mubr.f32.gmra.mrb[0].mxu0 %v163
  %v442 = vpop.f32.mrb[0].mxu0
  %v443 = vadd.f32 %v126, %v442
  %v444 = vpop.f32.mrb[0].mxu0
  %445 = vmatprep.mubr.f32.mxu0 0.0
  %446 = vmatmul.mubr.f32.gmra.mrb[0].mxu0 %v166
  %v447 = vpop.f32.mrb[0].mxu0
  %v448 = vadd.f32 %v126, %v447
  %v449 = vpop.f32.mrb[0].mxu0
  %450 = vmatprep.mubr.f32.mxu0 0.0
  %451 = vmatmul.mubr.f32.gmra.mrb[0].mxu0 %v169
  %v452 = vpop.f32.mrb[0].mxu0
  %v453 = vadd.f32 %v126, %v452
  %v454 = vpop.f32.mrb[0].mxu0
  %455 = vmatprep.mubr.f32.mxu0 0.0
  %456 = vmatmul.mubr.f32.gmra.mrb[0].mxu0 %v172
  %v457 = vpop.f32.mrb[0].mxu0
  %v458 = vadd.f32 %v126, %v457
  %v459 = vpop.f32.mrb[0].mxu0
  %460 = vmatprep.mubr.f32.mxu0 0.0
  %461 = vmatmul.mubr.f32.gmra.mrb[0].mxu0 %v175
  %v462 = vpop.f32.mrb[0].mxu0
  %v463 = vadd.f32 %v126, %v462
  %v464 = vpop.f32.mrb[0].mxu0
  %465 = vmatprep.mubr.f32.mxu0 0.0
  %466 = vmatmul.mubr.f32.gmra.mrb[0].mxu0 %v178
  %v467 = vpop.f32.mrb[0].mxu0
  %v468 = vadd.f32 %v126, %v467
  %v469 = vpop.f32.mrb[0].mxu0
  %470 = vmatprep.mubr.f32.mxu0 0.0
  %471 = vmatmul.mubr.f32.gmra.mrb[0].mxu0 %v181
  %v472 = vpop.f32.mrb[0].mxu0
  %v473 = vadd.f32 %v126, %v472
  %v474 = vpop.f32.mrb[0].mxu0
  %475 = vmatprep.mubr.f32.mxu0 0.0
  %476 = vmatmul.mubr.f32.gmra.mrb[0].mxu0 %v184
  %v477 = vpop.f32.mrb[0].mxu0
  %v478 = vadd.f32 %v126, %v477
  %v479 = vpop.f32.mrb[0].mxu0
  %480 = vmatprep.mubr.f32.mxu0 0.0
  %481 = vmatmul.mubr.f32.gmra.mrb[0].mxu0 %v187
  %v482 = vpop.f32.mrb[0].mxu0
  %v483 = vadd.f32 %v126, %v482
  %v484 = vpop.f32.mrb[0].mxu0
  %485 = vmatprep.mubr.f32.mxu0 0.0
  %486 = vmatmul.mubr.f32.gmra.mrb[0].mxu0 %v190
  %v487 = vpop.f32.mrb[0].mxu0
  %v488 = vadd.f32 %v126, %v487
  %v489 = vpop.f32.mrb[0].mxu0
  %490 = vmatprep.mubr.f32.mxu0 0.0
  %491 = vmatmul.mubr.f32.gmra.mrb[0].mxu0 %v193
  %v492 = vpop.f32.mrb[0].mxu0
  %v493 = vadd.f32 %v126, %v492
  %v494 = vpop.f32.mrb[0].mxu0
  %495 = vmatprep.mubr.f32.mxu0 0.0
  %496 = vmatmul.mubr.f32.gmra.mrb[0].mxu0 %v196
  %v497 = vpop.f32.mrb[0].mxu0
  %v498 = vadd.f32 %v126, %v497
  %v499 = vpop.f32.mrb[0].mxu0
  %500 = vmatprep.mubr.f32.mxu0 0.0
  %501 = vmatmul.mubr.f32.gmra.mrb[0].mxu0 %v199
  %v502 = vpop.f32.mrb[0].mxu0
  %v503 = vadd.f32 %v126, %v502
  %v504 = vpop.f32.mrb[0].mxu0
  %505 = vmatprep.mubr.f32.mxu0 0.0
  %506 = vmatmul.mubr.f32.gmra.mrb[0].mxu0 %v202
  %v507 = vpop.f32.mrb[0].mxu0
  %v508 = vadd.f32 %v126, %v507
  %v509 = vpop.f32.mrb[0].mxu0
  %510 = vmatprep.mubr.f32.mxu0 0.0
  %511 = vmatmul.mubr.f32.gmra.mrb[0].mxu0 %v205
  %v512 = vpop.f32.mrb[0].mxu0
  %v513 = vadd.f32 %v126, %v512
  %v514 = vpop.f32.mrb[0].mxu0
  %515 = vmatprep.mubr.f32.mxu0 0.0
  %516 = vmatmul.mubr.f32.gmra.mrb[0].mxu0 %v208
  %v517 = vpop.f32.mrb[0].mxu0
  %v518 = vadd.f32 %v126, %v517
  %v519 = vpop.f32.mrb[0].mxu0
  %520 = vmatprep.mubr.f32.mxu0 0.0
  %521 = vmatmul.mubr.f32.gmra.mrb[0].mxu0 %v211
  %v522 = vpop.f32.mrb[0].mxu0
  %v523 = vadd.f32 %v126, %v522
  %v524 = vpop.f32.mrb[0].mxu0
  %525 = vmatprep.mubr.f32.mxu0 0.0
  %526 = vmatmul.mubr.f32.gmra.mrb[0].mxu0 %v214
  %v527 = vpop.f32.mrb[0].mxu0
  %v528 = vadd.f32 %v126, %v527
  %v529 = vpop.f32.mrb[0].mxu0
  %530 = vmatprep.mubr.f32.mxu0 0.0
  %531 = vmatmul.mubr.f32.gmra.mrb[0].mxu0 %v217
  %v532 = vpop.f32.mrb[0].mxu0
  %v533 = vadd.f32 %v126, %v532
  %v534 = vpop.f32.mrb[0].mxu0
  %535 = vmatprep.mubr.f32.mxu0 0.0
  %536 = vmatmul.mubr.f32.gmra.mrb[0].mxu0 %v220
  %v537 = vpop.f32.mrb[0].mxu0
  %v538 = vadd.f32 %v126, %v537
  %v539 = vpop.f32.mrb[0].mxu0
  %540 = vmatprep.mubr.f32.mxu0 0.0
  %541 = vmatmul.mubr.f32.gmra.mrb[0].mxu0 %v223
  %v542 = vpop.f32.mrb[0].mxu0
  %v543 = vadd.f32 %v126, %v542
  %v544 = vpop.f32.mrb[0].mxu0
  %545 = vmatprep.mubr.f32.mxu0 0.0
  %546 = vmatmul.mubr.f32.gmra.mrb[0].mxu0 %v226
  %v547 = vpop.f32.mrb[0].mxu0
  %v548 = vadd.f32 %v126, %v547
  %v549 = vpop.f32.mrb[0].mxu0
  %550 = vmatprep.mubr.f32.mxu0 0.0
  %551 = vmatmul.mubr.f32.gmra.mrb[0].mxu0 %v229
  %v552 = vpop.f32.mrb[0].mxu0
  %v553 = vadd.f32 %v126, %v552
  %v554 = vpop.f32.mrb[0].mxu0
  %555 = vmatprep.mubr.f32.mxu0 0.0
  %556 = vmatmul.mubr.f32.gmra.mrb[0].mxu0 %v232
  %v557 = vpop.f32.mrb[0].mxu0
  %v558 = vadd.f32 %v126, %v557
  %v559 = vpop.f32.mrb[0].mxu0
  %560 = vmatprep.mubr.f32.mxu0 0.0
  %561 = vmatmul.mubr.f32.gmra.mrb[0].mxu0 %v235
  %v562 = vpop.f32.mrb[0].mxu0
  %v563 = vadd.f32 %v126, %v562
  %v564 = vpop.f32.mrb[0].mxu0
  %565 = vmatprep.mubr.f32.mxu0 0.0
  %566 = vmatmul.mubr.f32.gmra.mrb[0].mxu0 %v238
  %v567 = vpop.f32.mrb[0].mxu0
  %v568 = vadd.f32 %v126, %v567
  %v569 = vpop.f32.mrb[0].mxu0
  %570 = vmatprep.mubr.f32.mxu0 0.0
  %571 = vmatmul.mubr.f32.gmra.mrb[0].mxu0 %v241
  %v572 = vpop.f32.mrb[0].mxu0
  %v573 = vadd.f32 %v126, %v572
  %v574 = vpop.f32.mrb[0].mxu0
  %575 = vmatprep.mubr.f32.mxu0 0.0
  %576 = vmatmul.mubr.f32.gmra.mrb[0].mxu0 %v244
  %v577 = vpop.f32.mrb[0].mxu0
  %v578 = vadd.f32 %v126, %v577
  %v579 = vpop.f32.mrb[0].mxu0
  %580 = vmatprep.mubr.f32.mxu0 0.0
  %581 = vmatmul.mubr.f32.gmra.mrb[0].mxu0 %v247
  %v582 = vpop.f32.mrb[0].mxu0
  %v583 = vadd.f32 %v126, %v582
  %v584 = vpop.f32.mrb[0].mxu0
  %585 = vmatprep.mubr.f32.mxu0 0.0
  %586 = vmatmul.mubr.f32.gmra.mrb[0].mxu0 %v250
  %v587 = vpop.f32.mrb[0].mxu0
  %v588 = vadd.f32 %v126, %v587
  %v589 = vpop.f32.mrb[0].mxu0
  %590 = vmatprep.mubr.f32.mxu0 0.0
  %591 = vmatmul.mubr.f32.gmra.mrb[0].mxu0 %v253
  %v592 = vpop.f32.mrb[0].mxu0
  %v593 = vadd.f32 %v126, %v592
  %v594 = vpop.f32.mrb[0].mxu0
  %595 = vmatprep.mubr.f32.mxu0 0.0
  %596 = vmatmul.mubr.f32.gmra.mrb[0].mxu0 %v256
  %v597 = vpop.f32.mrb[0].mxu0
  %v598 = vadd.f32 %v126, %v597
  %v599 = vpop.f32.mrb[0].mxu0
  %600 = vmatprep.mubr.f32.mxu0 0.0
  %601 = vmatmul.mubr.f32.gmra.mrb[0].mxu0 %v259
  %v602 = vpop.f32.mrb[0].mxu0
  %v603 = vadd.f32 %v126, %v602
  %v604 = vpop.f32.mrb[0].mxu0
  %605 = vmatprep.mubr.f32.mxu0 0.0
  %606 = vmatmul.mubr.f32.gmra.mrb[0].mxu0 %v262
  %v607 = vpop.f32.mrb[0].mxu0
  %v608 = vadd.f32 %v126, %v607
  %v609 = vpop.f32.mrb[0].mxu0
  %610 = vmatprep.mubr.f32.mxu0 0.0
  %611 = vmatmul.mubr.f32.gmra.mrb[0].mxu0 %v265
  %v612 = vpop.f32.mrb[0].mxu0
  %v613 = vadd.f32 %v126, %v612
  %v614 = vpop.f32.mrb[0].mxu0
  %615 = vmatprep.mubr.f32.mxu0 0.0
  %616 = vmatmul.mubr.f32.gmra.mrb[0].mxu0 %v268
  %v617 = vpop.f32.mrb[0].mxu0
  %v618 = vadd.f32 %v126, %v617
  %v619 = vpop.f32.mrb[0].mxu0
  %620 = vmatprep.mubr.f32.mxu0 0.0
  %621 = vmatmul.mubr.f32.gmra.mrb[0].mxu0 %v271
  %v622 = vpop.f32.mrb[0].mxu0
  %v623 = vadd.f32 %v126, %v622
  %v624 = vpop.f32.mrb[0].mxu0
  %625 = vmatprep.mubr.f32.mxu0 0.0
  %626 = vmatmul.mubr.f32.gmra.mrb[0].mxu0 %v274
  %v627 = vpop.f32.mrb[0].mxu0
  %v628 = vadd.f32 %v126, %v627
  %v629 = vpop.f32.mrb[0].mxu0
  %630 = vmatprep.mubr.f32.mxu0 0.0
  %631 = vmatmul.mubr.f32.gmra.mrb[0].mxu0 %v277
  %v632 = vpop.f32.mrb[0].mxu0
  %v633 = vadd.f32 %v126, %v632
  %v634 = vpop.f32.mrb[0].mxu0
  %635 = vmatprep.mubr.f32.mxu0 0.0
  %636 = vmatmul.mubr.f32.gmra.mrb[0].mxu0 %v280
  %v637 = vpop.f32.mrb[0].mxu0
  %v638 = vadd.f32 %v126, %v637
  %v639 = vpop.f32.mrb[0].mxu0
  %640 = vmatprep.mubr.f32.mxu0 0.0
  %641 = vmatmul.mubr.f32.gmra.mrb[0].mxu0 %v283
  %v642 = vpop.f32.mrb[0].mxu0
  %v643 = vadd.f32 %v126, %v642
  %v644 = vpop.f32.mrb[0].mxu0
  %645 = vmatprep.mubr.f32.mxu0 0.0
  %646 = vmatmul.mubr.f32.gmra.mrb[0].mxu0 %v286
  %v647 = vpop.f32.mrb[0].mxu0
  %v648 = vadd.f32 %v126, %v647
  %v649 = vpop.f32.mrb[0].mxu0
  %650 = vmatprep.mubr.f32.mxu0 0.0
  %651 = vmatmul.mubr.f32.gmra.mrb[0].mxu0 %v289
  %v652 = vpop.f32.mrb[0].mxu0
  %v653 = vadd.f32 %v126, %v652
  %v654 = vpop.f32.mrb[0].mxu0
  %655 = vmatprep.mubr.f32.mxu0 0.0
  %656 = vmatmul.mubr.f32.gmra.mrb[0].mxu0 %v292
  %v657 = vpop.f32.mrb[0].mxu0
  %v658 = vadd.f32 %v126, %v657
  %v659 = vpop.f32.mrb[0].mxu0
  %660 = vmatprep.mubr.f32.mxu0 0.0
  %661 = vmatmul.mubr.f32.gmra.mrb[0].mxu0 %v295
  %v662 = vpop.f32.mrb[0].mxu0
  %v663 = vadd.f32 %v126, %v662
  %v664 = vpop.f32.mrb[0].mxu0
  %665 = vmatprep.mubr.f32.mxu0 0.0
  %666 = vmatmul.mubr.f32.gmra.mrb[0].mxu0 %v298
  %v667 = vpop.f32.mrb[0].mxu0
  %v668 = vadd.f32 %v126, %v667
  %v669 = vpop.f32.mrb[0].mxu0
  %670 = vmatprep.mubr.f32.mxu0 0.0
  %671 = vmatmul.mubr.f32.gmra.mrb[0].mxu0 %v301
  %v672 = vpop.f32.mrb[0].mxu0
  %v673 = vadd.f32 %v126, %v672
  %v674 = vpop.f32.mrb[0].mxu0
  %675 = vmatprep.mubr.f32.mxu0 0.0
  %676 = vmatmul.mubr.f32.gmra.mrb[0].mxu0 %v304
  %v677 = vpop.f32.mrb[0].mxu0
  %v678 = vadd.f32 %v126, %v677
  %v679 = vpop.f32.mrb[0].mxu0
  %680 = vmatprep.mubr.f32.mxu0 0.0
  %681 = vmatmul.mubr.f32.gmra.mrb[0].mxu0 %v307
  %v682 = vpop.f32.mrb[0].mxu0
  %v683 = vadd.f32 %v126, %v682
  %v684 = vpop.f32.mrb[0].mxu0
  %685 = vmatprep.mubr.f32.mxu0 0.0
  %686 = vmatmul.mubr.f32.gmra.mrb[0].mxu0 %v310
  %v687 = vpop.f32.mrb[0].mxu0
  %v688 = vadd.f32 %v126, %v687
  %v689 = vpop.f32.mrb[0].mxu0
  %690 = vmatprep.mubr.f32.mxu0 0.0
  %691 = vmatmul.mubr.f32.gmra.mrb[0].mxu0 %v313
  %v692 = vpop.f32.mrb[0].mxu0
  %v693 = vadd.f32 %v126, %v692
  %v694 = vpop.f32.mrb[0].mxu0
  %695 = vmatprep.mubr.f32.mxu0 0.0
  %696 = vmatmul.mubr.f32.gmra.mrb[0].mxu0 %v316
  %v697 = vpop.f32.mrb[0].mxu0
  %v698 = vadd.f32 %v126, %v697
  %v699 = vpop.f32.mrb[0].mxu0
  %700 = vmatprep.mubr.f32.mxu0 0.0
  %701 = vmatmul.mubr.f32.gmra.mrb[0].mxu0 %v319
  %v702 = vpop.f32.mrb[0].mxu0
  %v703 = vadd.f32 %v126, %v702
  %v704 = vpop.f32.mrb[0].mxu0
  %705 = vdwg.mxu0
  %v706 = vmax.f32 %v388, 0.0
  %v707 = vmax.f32 %v393, 0.0
  %v708 = vmax.f32 %v398, 0.0
  %v709 = vmax.f32 %v403, 0.0
  %v710 = vmax.f32 %v408, 0.0
  %v711 = vmax.f32 %v413, 0.0
  %v712 = vmax.f32 %v418, 0.0
  %v713 = vmax.f32 %v423, 0.0
  %v714 = vmax.f32 %v428, 0.0
  %v715 = vmax.f32 %v433, 0.0
  %v716 = vmax.f32 %v438, 0.0
  %v717 = vmax.f32 %v443, 0.0
  %v718 = vmax.f32 %v448, 0.0
  %v719 = vmax.f32 %v453, 0.0
  %v720 = vmax.f32 %v458, 0.0
  %v721 = vmax.f32 %v463, 0.0
  %v722 = vmax.f32 %v468, 0.0
  %v723 = vmax.f32 %v473, 0.0
  %v724 = vmax.f32 %v478, 0.0
  %v725 = vmax.f32 %v483, 0.0
  %v726 = vmax.f32 %v488, 0.0
  %v727 = vmax.f32 %v493, 0.0
  %v728 = vmax.f32 %v498, 0.0
  %v729 = vmax.f32 %v503, 0.0
  %v730 = vmax.f32 %v508, 0.0
  %v731 = vmax.f32 %v513, 0.0
  %v732 = vmax.f32 %v518, 0.0
  %v733 = vmax.f32 %v523, 0.0
  %v734 = vmax.f32 %v528, 0.0
  %v735 = vmax.f32 %v533, 0.0
  %v736 = vmax.f32 %v538, 0.0
  %v737 = vmax.f32 %v543, 0.0
  %v738 = vmax.f32 %v548, 0.0
  %v739 = vmax.f32 %v553, 0.0
  %v740 = vmax.f32 %v558, 0.0
  %v741 = vmax.f32 %v563, 0.0
  %v742 = vmax.f32 %v568, 0.0
  %v743 = vmax.f32 %v573, 0.0
  %v744 = vmax.f32 %v578, 0.0
  %v745 = vmax.f32 %v583, 0.0
  %v746 = vmax.f32 %v588, 0.0
  %v747 = vmax.f32 %v593, 0.0
  %v748 = vmax.f32 %v598, 0.0
  %v749 = vmax.f32 %v603, 0.0
  %v750 = vmax.f32 %v608, 0.0
  %v751 = vmax.f32 %v613, 0.0
  %v752 = vmax.f32 %v618, 0.0
  %v753 = vmax.f32 %v623, 0.0
  %v754 = vmax.f32 %v628, 0.0
  %v755 = vmax.f32 %v633, 0.0
  %v756 = vmax.f32 %v638, 0.0
  %v757 = vmax.f32 %v643, 0.0
  %v758 = vmax.f32 %v648, 0.0
  %v759 = vmax.f32 %v653, 0.0
  %v760 = vmax.f32 %v658, 0.0
  %v761 = vmax.f32 %v663, 0.0
  %v762 = vmax.f32 %v668, 0.0
  %v763 = vmax.f32 %v673, 0.0
  %v764 = vmax.f32 %v678, 0.0
  %v765 = vmax.f32 %v683, 0.0
  %v766 = vmax.f32 %v688, 0.0
  %v767 = vmax.f32 %v693, 0.0
  %v768 = vmax.f32 %v698, 0.0
  %v769 = vmax.f32 %v703, 0.0
  %v770 = vld [vmem:[%s4] sm:$0xff]
  %v771 = vld [vmem:[%s4 + $0x8] sm:$0xff]
  %v772 = vld [vmem:[%s4 + $0x10] sm:$0xff]
  %v773 = vld [vmem:[%s4 + $0x18] sm:$0xff]
  %v774 = vld [vmem:[%s4 + $0x20] sm:$0xff]
  %v775 = vld [vmem:[%s4 + $0x28] sm:$0xff]
  %v776 = vld [vmem:[%s4 + $0x30] sm:$0xff]
  %v777 = vld [vmem:[%s4 + $0x38] sm:$0xff]
  %v778 = vld [vmem:[%s5] sm:$0x1]
  %v780 = vlaneseq
  %v781 = vshrl.u32 %v780, 7
  %v782 = vsub.s32 0, %v781
  %v783 = vrot.slane %v778, %v782
  %vm785 = vcmask 523264
  %v787 = vsel %vm785, %v706, 0
  %v790 = vsel %vm785, %v707, 0
  %v793 = vsel %vm785, %v708, 0
  %v796 = vsel %vm785, %v709, 0
  %v799 = vsel %vm785, %v710, 0
  %v802 = vsel %vm785, %v711, 0
  %v805 = vsel %vm785, %v712, 0
  %v808 = vsel %vm785, %v713, 0
  %v811 = vsel %vm785, %v714, 0
  %v814 = vsel %vm785, %v715, 0
  %v817 = vsel %vm785, %v716, 0
  %v820 = vsel %vm785, %v717, 0
  %v823 = vsel %vm785, %v718, 0
  %v826 = vsel %vm785, %v719, 0
  %v829 = vsel %vm785, %v720, 0
  %v832 = vsel %vm785, %v721, 0
  %v835 = vsel %vm785, %v722, 0
  %v838 = vsel %vm785, %v723, 0
  %v841 = vsel %vm785, %v724, 0
  %v844 = vsel %vm785, %v725, 0
  %v847 = vsel %vm785, %v726, 0
  %v850 = vsel %vm785, %v727, 0
  %v853 = vsel %vm785, %v728, 0
  %v856 = vsel %vm785, %v729, 0
  %v859 = vsel %vm785, %v730, 0
  %v862 = vsel %vm785, %v731, 0
  %v865 = vsel %vm785, %v732, 0
  %v868 = vsel %vm785, %v733, 0
  %v871 = vsel %vm785, %v734, 0
  %v874 = vsel %vm785, %v735, 0
  %v877 = vsel %vm785, %v736, 0
  %v880 = vsel %vm785, %v737, 0
  %v883 = vsel %vm785, %v738, 0
  %v886 = vsel %vm785, %v739, 0
  %v889 = vsel %vm785, %v740, 0
  %v892 = vsel %vm785, %v741, 0
  %v895 = vsel %vm785, %v742, 0
  %v898 = vsel %vm785, %v743, 0
  %v901 = vsel %vm785, %v744, 0
  %v904 = vsel %vm785, %v745, 0
  %v907 = vsel %vm785, %v746, 0
  %v910 = vsel %vm785, %v747, 0
  %v913 = vsel %vm785, %v748, 0
  %v916 = vsel %vm785, %v749, 0
  %v919 = vsel %vm785, %v750, 0
  %v922 = vsel %vm785, %v751, 0
  %v925 = vsel %vm785, %v752, 0
  %v928 = vsel %vm785, %v753, 0
  %v931 = vsel %vm785, %v754, 0
  %v934 = vsel %vm785, %v755, 0
  %v937 = vsel %vm785, %v756, 0
  %v940 = vsel %vm785, %v757, 0
  %v943 = vsel %vm785, %v758, 0
  %v946 = vsel %vm785, %v759, 0
  %v949 = vsel %vm785, %v760, 0
  %v952 = vsel %vm785, %v761, 0
  %v955 = vsel %vm785, %v762, 0
  %v958 = vsel %vm785, %v763, 0
  %v961 = vsel %vm785, %v764, 0
  %v964 = vsel %vm785, %v765, 0
  %v967 = vsel %vm785, %v766, 0
  %v970 = vsel %vm785, %v767, 0
  %v973 = vsel %vm785, %v768, 0
  %v976 = vsel %vm785, %v769, 0
  %978 = vmatprep.subr.mxu0 0.0
  %979 = vmatpush1.msra.mxu0 %v770
  %980 = vmatprep.subr.mxu0 0.0
  %981 = vmatpush1.msra.mxu0 %v771
  %982 = vmatprep.subr.mxu0 0.0
  %983 = vmatpush1.msra.mxu0 %v772
  %984 = vmatprep.subr.mxu0 0.0
  %985 = vmatpush1.msra.mxu0 %v773
  %986 = vmatprep.subr.mxu0 0.0
  %987 = vmatpush1.msra.mxu0 %v774
  %988 = vmatprep.subr.mxu0 0.0
  %989 = vmatpush1.msra.mxu0 %v775
  %990 = vmatprep.subr.mxu0 0.0
  %991 = vmatpush1.msra.mxu0 %v776
  %992 = vmatprep.subr.mxu0 0.0
  %993 = vmatpush1.msra.mxu0 %v777
  %994 = vmatprep.subr.mxu0 0.0
  %995 = vmatpush1.msra.mxu0 0.0
  %996 = vmatprep.subr.mxu0 0.0
  %997 = vmatpush1.msra.mxu0 0.0
  %998 = vmatprep.subr.mxu0 0.0
  %999 = vmatpush1.msra.mxu0 0.0
  %1000 = vmatprep.subr.mxu0 0.0
  %1001 = vmatpush1.msra.mxu0 0.0
  %1002 = vmatprep.subr.mxu0 0.0
  %1003 = vmatpush1.msra.mxu0 0.0
  %1004 = vmatprep.subr.mxu0 0.0
  %1005 = vmatpush1.msra.mxu0 0.0
  %1006 = vmatprep.subr.mxu0 0.0
  %1007 = vmatpush1.msra.mxu0 0.0
  %1008 = vmatprep.subr.mxu0 0.0
  %1009 = vmatpush1.msra.mxu0 0.0
  %1010 = vmatprep.subr.mxu0 0.0
  %1011 = vmatpush1.msra.mxu0 0.0
  %1012 = vmatprep.subr.mxu0 0.0
  %1013 = vmatpush1.msra.mxu0 0.0
  %1014 = vmatprep.subr.mxu0 0.0
  %1015 = vmatpush1.msra.mxu0 0.0
  %1016 = vmatprep.subr.mxu0 0.0
  %1017 = vmatpush1.msra.mxu0 0.0
  %1018 = vmatprep.subr.mxu0 0.0
  %1019 = vmatpush1.msra.mxu0 0.0
  %1020 = vmatprep.subr.mxu0 0.0
  %1021 = vmatpush1.msra.mxu0 0.0
  %1022 = vmatprep.subr.mxu0 0.0
  %1023 = vmatpush1.msra.mxu0 0.0
  %1024 = vmatprep.subr.mxu0 0.0
  %1025 = vmatpush1.msra.mxu0 0.0
  %1026 = vmatprep.subr.mxu0 0.0
  %1027 = vmatpush1.msra.mxu0 0.0
  %1028 = vmatprep.subr.mxu0 0.0
  %1029 = vmatpush1.msra.mxu0 0.0
  %1030 = vmatprep.subr.mxu0 0.0
  %1031 = vmatpush1.msra.mxu0 0.0
  %1032 = vmatprep.subr.mxu0 0.0
  %1033 = vmatpush1.msra.mxu0 0.0
  %1034 = vmatprep.subr.mxu0 0.0
  %1035 = vmatpush1.msra.mxu0 0.0
  %1036 = vmatprep.subr.mxu0 0.0
  %1037 = vmatpush1.msra.mxu0 0.0
  %1038 = vmatprep.subr.mxu0 0.0
  %1039 = vmatpush1.msra.mxu0 0.0
  %1040 = vmatprep.subr.mxu0 0.0
  %1041 = vmatpush1.msra.mxu0 0.0
  %1042 = vmatprep.mubr.f32.mxu0 0.0
  %1043 = vmatmul.mubr.f32.gmra.mrb[0].mxu0 %v787
  %v1044 = vpop.f32.mrb[0].mxu0
  %v1045 = vadd.f32 %v783, %v1044
  %v1046 = vpop.f32.mrb[0].mxu0
  %1047 = vmatprep.mubr.f32.mxu0 0.0
  %1048 = vmatmul.mubr.f32.gmra.mrb[0].mxu0 %v790
  %v1049 = vpop.f32.mrb[0].mxu0
  %v1050 = vadd.f32 %v783, %v1049
  %v1051 = vpop.f32.mrb[0].mxu0
  %1052 = vmatprep.mubr.f32.mxu0 0.0
  %1053 = vmatmul.mubr.f32.gmra.mrb[0].mxu0 %v793
  %v1054 = vpop.f32.mrb[0].mxu0
  %v1055 = vadd.f32 %v783, %v1054
  %v1056 = vpop.f32.mrb[0].mxu0
  %1057 = vmatprep.mubr.f32.mxu0 0.0
  %1058 = vmatmul.mubr.f32.gmra.mrb[0].mxu0 %v796
  %v1059 = vpop.f32.mrb[0].mxu0
  %v1060 = vadd.f32 %v783, %v1059
  %v1061 = vpop.f32.mrb[0].mxu0
  %1062 = vmatprep.mubr.f32.mxu0 0.0
  %1063 = vmatmul.mubr.f32.gmra.mrb[0].mxu0 %v799
  %v1064 = vpop.f32.mrb[0].mxu0
  %v1065 = vadd.f32 %v783, %v1064
  %v1066 = vpop.f32.mrb[0].mxu0
  %1067 = vmatprep.mubr.f32.mxu0 0.0
  %1068 = vmatmul.mubr.f32.gmra.mrb[0].mxu0 %v802
  %v1069 = vpop.f32.mrb[0].mxu0
  %v1070 = vadd.f32 %v783, %v1069
  %v1071 = vpop.f32.mrb[0].mxu0
  %1072 = vmatprep.mubr.f32.mxu0 0.0
  %1073 = vmatmul.mubr.f32.gmra.mrb[0].mxu0 %v805
  %v1074 = vpop.f32.mrb[0].mxu0
  %v1075 = vadd.f32 %v783, %v1074
  %v1076 = vpop.f32.mrb[0].mxu0
  %1077 = vmatprep.mubr.f32.mxu0 0.0
  %1078 = vmatmul.mubr.f32.gmra.mrb[0].mxu0 %v808
  %v1079 = vpop.f32.mrb[0].mxu0
  %v1080 = vadd.f32 %v783, %v1079
  %v1081 = vpop.f32.mrb[0].mxu0
  %1082 = vmatprep.mubr.f32.mxu0 0.0
  %1083 = vmatmul.mubr.f32.gmra.mrb[0].mxu0 %v811
  %v1084 = vpop.f32.mrb[0].mxu0
  %v1085 = vadd.f32 %v783, %v1084
  %v1086 = vpop.f32.mrb[0].mxu0
  %1087 = vmatprep.mubr.f32.mxu0 0.0
  %1088 = vmatmul.mubr.f32.gmra.mrb[0].mxu0 %v814
  %v1089 = vpop.f32.mrb[0].mxu0
  %v1090 = vadd.f32 %v783, %v1089
  %v1091 = vpop.f32.mrb[0].mxu0
  %1092 = vmatprep.mubr.f32.mxu0 0.0
  %1093 = vmatmul.mubr.f32.gmra.mrb[0].mxu0 %v817
  %v1094 = vpop.f32.mrb[0].mxu0
  %v1095 = vadd.f32 %v783, %v1094
  %v1096 = vpop.f32.mrb[0].mxu0
  %1097 = vmatprep.mubr.f32.mxu0 0.0
  %1098 = vmatmul.mubr.f32.gmra.mrb[0].mxu0 %v820
  %v1099 = vpop.f32.mrb[0].mxu0
  %v1100 = vadd.f32 %v783, %v1099
  %v1101 = vpop.f32.mrb[0].mxu0
  %1102 = vmatprep.mubr.f32.mxu0 0.0
  %1103 = vmatmul.mubr.f32.gmra.mrb[0].mxu0 %v823
  %v1104 = vpop.f32.mrb[0].mxu0
  %v1105 = vadd.f32 %v783, %v1104
  %v1106 = vpop.f32.mrb[0].mxu0
  %1107 = vmatprep.mubr.f32.mxu0 0.0
  %1108 = vmatmul.mubr.f32.gmra.mrb[0].mxu0 %v826
  %v1109 = vpop.f32.mrb[0].mxu0
  %v1110 = vadd.f32 %v783, %v1109
  %v1111 = vpop.f32.mrb[0].mxu0
  %1112 = vmatprep.mubr.f32.mxu0 0.0
  %1113 = vmatmul.mubr.f32.gmra.mrb[0].mxu0 %v829
  %v1114 = vpop.f32.mrb[0].mxu0
  %v1115 = vadd.f32 %v783, %v1114
  %v1116 = vpop.f32.mrb[0].mxu0
  %1117 = vmatprep.mubr.f32.mxu0 0.0
  %1118 = vmatmul.mubr.f32.gmra.mrb[0].mxu0 %v832
  %v1119 = vpop.f32.mrb[0].mxu0
  %v1120 = vadd.f32 %v783, %v1119
  %v1121 = vpop.f32.mrb[0].mxu0
  %1122 = vmatprep.mubr.f32.mxu0 0.0
  %1123 = vmatmul.mubr.f32.gmra.mrb[0].mxu0 %v835
  %v1124 = vpop.f32.mrb[0].mxu0
  %v1125 = vadd.f32 %v783, %v1124
  %v1126 = vpop.f32.mrb[0].mxu0
  %1127 = vmatprep.mubr.f32.mxu0 0.0
  %1128 = vmatmul.mubr.f32.gmra.mrb[0].mxu0 %v838
  %v1129 = vpop.f32.mrb[0].mxu0
  %v1130 = vadd.f32 %v783, %v1129
  %v1131 = vpop.f32.mrb[0].mxu0
  %1132 = vmatprep.mubr.f32.mxu0 0.0
  %1133 = vmatmul.mubr.f32.gmra.mrb[0].mxu0 %v841
  %v1134 = vpop.f32.mrb[0].mxu0
  %v1135 = vadd.f32 %v783, %v1134
  %v1136 = vpop.f32.mrb[0].mxu0
  %1137 = vmatprep.mubr.f32.mxu0 0.0
  %1138 = vmatmul.mubr.f32.gmra.mrb[0].mxu0 %v844
  %v1139 = vpop.f32.mrb[0].mxu0
  %v1140 = vadd.f32 %v783, %v1139
  %v1141 = vpop.f32.mrb[0].mxu0
  %1142 = vmatprep.mubr.f32.mxu0 0.0
  %1143 = vmatmul.mubr.f32.gmra.mrb[0].mxu0 %v847
  %v1144 = vpop.f32.mrb[0].mxu0
  %v1145 = vadd.f32 %v783, %v1144
  %v1146 = vpop.f32.mrb[0].mxu0
  %1147 = vmatprep.mubr.f32.mxu0 0.0
  %1148 = vmatmul.mubr.f32.gmra.mrb[0].mxu0 %v850
  %v1149 = vpop.f32.mrb[0].mxu0
  %v1150 = vadd.f32 %v783, %v1149
  %v1151 = vpop.f32.mrb[0].mxu0
  %1152 = vmatprep.mubr.f32.mxu0 0.0
  %1153 = vmatmul.mubr.f32.gmra.mrb[0].mxu0 %v853
  %v1154 = vpop.f32.mrb[0].mxu0
  %v1155 = vadd.f32 %v783, %v1154
  %v1156 = vpop.f32.mrb[0].mxu0
  %1157 = vmatprep.mubr.f32.mxu0 0.0
  %1158 = vmatmul.mubr.f32.gmra.mrb[0].mxu0 %v856
  %v1159 = vpop.f32.mrb[0].mxu0
  %v1160 = vadd.f32 %v783, %v1159
  %v1161 = vpop.f32.mrb[0].mxu0
  %1162 = vmatprep.mubr.f32.mxu0 0.0
  %1163 = vmatmul.mubr.f32.gmra.mrb[0].mxu0 %v859
  %v1164 = vpop.f32.mrb[0].mxu0
  %v1165 = vadd.f32 %v783, %v1164
  %v1166 = vpop.f32.mrb[0].mxu0
  %1167 = vmatprep.mubr.f32.mxu0 0.0
  %1168 = vmatmul.mubr.f32.gmra.mrb[0].mxu0 %v862
  %v1169 = vpop.f32.mrb[0].mxu0
  %v1170 = vadd.f32 %v783, %v1169
  %v1171 = vpop.f32.mrb[0].mxu0
  %1172 = vmatprep.mubr.f32.mxu0 0.0
  %1173 = vmatmul.mubr.f32.gmra.mrb[0].mxu0 %v865
  %v1174 = vpop.f32.mrb[0].mxu0
  %v1175 = vadd.f32 %v783, %v1174
  %v1176 = vpop.f32.mrb[0].mxu0
  %1177 = vmatprep.mubr.f32.mxu0 0.0
  %1178 = vmatmul.mubr.f32.gmra.mrb[0].mxu0 %v868
  %v1179 = vpop.f32.mrb[0].mxu0
  %v1180 = vadd.f32 %v783, %v1179
  %v1181 = vpop.f32.mrb[0].mxu0
  %1182 = vmatprep.mubr.f32.mxu0 0.0
  %1183 = vmatmul.mubr.f32.gmra.mrb[0].mxu0 %v871
  %v1184 = vpop.f32.mrb[0].mxu0
  %v1185 = vadd.f32 %v783, %v1184
  %v1186 = vpop.f32.mrb[0].mxu0
  %1187 = vmatprep.mubr.f32.mxu0 0.0
  %1188 = vmatmul.mubr.f32.gmra.mrb[0].mxu0 %v874
  %v1189 = vpop.f32.mrb[0].mxu0
  %v1190 = vadd.f32 %v783, %v1189
  %v1191 = vpop.f32.mrb[0].mxu0
  %1192 = vmatprep.mubr.f32.mxu0 0.0
  %1193 = vmatmul.mubr.f32.gmra.mrb[0].mxu0 %v877
  %v1194 = vpop.f32.mrb[0].mxu0
  %v1195 = vadd.f32 %v783, %v1194
  %v1196 = vpop.f32.mrb[0].mxu0
  %1197 = vmatprep.mubr.f32.mxu0 0.0
  %1198 = vmatmul.mubr.f32.gmra.mrb[0].mxu0 %v880
  %v1199 = vpop.f32.mrb[0].mxu0
  %v1200 = vadd.f32 %v783, %v1199
  %v1201 = vpop.f32.mrb[0].mxu0
  %1202 = vmatprep.mubr.f32.mxu0 0.0
  %1203 = vmatmul.mubr.f32.gmra.mrb[0].mxu0 %v883
  %v1204 = vpop.f32.mrb[0].mxu0
  %v1205 = vadd.f32 %v783, %v1204
  %v1206 = vpop.f32.mrb[0].mxu0
  %1207 = vmatprep.mubr.f32.mxu0 0.0
  %1208 = vmatmul.mubr.f32.gmra.mrb[0].mxu0 %v886
  %v1209 = vpop.f32.mrb[0].mxu0
  %v1210 = vadd.f32 %v783, %v1209
  %v1211 = vpop.f32.mrb[0].mxu0
  %1212 = vmatprep.mubr.f32.mxu0 0.0
  %1213 = vmatmul.mubr.f32.gmra.mrb[0].mxu0 %v889
  %v1214 = vpop.f32.mrb[0].mxu0
  %v1215 = vadd.f32 %v783, %v1214
  %v1216 = vpop.f32.mrb[0].mxu0
  %1217 = vmatprep.mubr.f32.mxu0 0.0
  %1218 = vmatmul.mubr.f32.gmra.mrb[0].mxu0 %v892
  %v1219 = vpop.f32.mrb[0].mxu0
  %v1220 = vadd.f32 %v783, %v1219
  %v1221 = vpop.f32.mrb[0].mxu0
  %1222 = vmatprep.mubr.f32.mxu0 0.0
  %1223 = vmatmul.mubr.f32.gmra.mrb[0].mxu0 %v895
  %v1224 = vpop.f32.mrb[0].mxu0
  %v1225 = vadd.f32 %v783, %v1224
  %v1226 = vpop.f32.mrb[0].mxu0
  %1227 = vmatprep.mubr.f32.mxu0 0.0
  %1228 = vmatmul.mubr.f32.gmra.mrb[0].mxu0 %v898
  %v1229 = vpop.f32.mrb[0].mxu0
  %v1230 = vadd.f32 %v783, %v1229
  %v1231 = vpop.f32.mrb[0].mxu0
  %1232 = vmatprep.mubr.f32.mxu0 0.0
  %1233 = vmatmul.mubr.f32.gmra.mrb[0].mxu0 %v901
  %v1234 = vpop.f32.mrb[0].mxu0
  %v1235 = vadd.f32 %v783, %v1234
  %v1236 = vpop.f32.mrb[0].mxu0
  %1237 = vmatprep.mubr.f32.mxu0 0.0
  %1238 = vmatmul.mubr.f32.gmra.mrb[0].mxu0 %v904
  %v1239 = vpop.f32.mrb[0].mxu0
  %v1240 = vadd.f32 %v783, %v1239
  %v1241 = vpop.f32.mrb[0].mxu0
  %1242 = vmatprep.mubr.f32.mxu0 0.0
  %1243 = vmatmul.mubr.f32.gmra.mrb[0].mxu0 %v907
  %v1244 = vpop.f32.mrb[0].mxu0
  %v1245 = vadd.f32 %v783, %v1244
  %v1246 = vpop.f32.mrb[0].mxu0
  %1247 = vmatprep.mubr.f32.mxu0 0.0
  %1248 = vmatmul.mubr.f32.gmra.mrb[0].mxu0 %v910
  %v1249 = vpop.f32.mrb[0].mxu0
  %v1250 = vadd.f32 %v783, %v1249
  %v1251 = vpop.f32.mrb[0].mxu0
  %1252 = vmatprep.mubr.f32.mxu0 0.0
  %1253 = vmatmul.mubr.f32.gmra.mrb[0].mxu0 %v913
  %v1254 = vpop.f32.mrb[0].mxu0
  %v1255 = vadd.f32 %v783, %v1254
  %v1256 = vpop.f32.mrb[0].mxu0
  %1257 = vmatprep.mubr.f32.mxu0 0.0
  %1258 = vmatmul.mubr.f32.gmra.mrb[0].mxu0 %v916
  %v1259 = vpop.f32.mrb[0].mxu0
  %v1260 = vadd.f32 %v783, %v1259
  %v1261 = vpop.f32.mrb[0].mxu0
  %1262 = vmatprep.mubr.f32.mxu0 0.0
  %1263 = vmatmul.mubr.f32.gmra.mrb[0].mxu0 %v919
  %v1264 = vpop.f32.mrb[0].mxu0
  %v1265 = vadd.f32 %v783, %v1264
  %v1266 = vpop.f32.mrb[0].mxu0
  %1267 = vmatprep.mubr.f32.mxu0 0.0
  %1268 = vmatmul.mubr.f32.gmra.mrb[0].mxu0 %v922
  %v1269 = vpop.f32.mrb[0].mxu0
  %v1270 = vadd.f32 %v783, %v1269
  %v1271 = vpop.f32.mrb[0].mxu0
  %1272 = vmatprep.mubr.f32.mxu0 0.0
  %1273 = vmatmul.mubr.f32.gmra.mrb[0].mxu0 %v925
  %v1274 = vpop.f32.mrb[0].mxu0
  %v1275 = vadd.f32 %v783, %v1274
  %v1276 = vpop.f32.mrb[0].mxu0
  %1277 = vmatprep.mubr.f32.mxu0 0.0
  %1278 = vmatmul.mubr.f32.gmra.mrb[0].mxu0 %v928
  %v1279 = vpop.f32.mrb[0].mxu0
  %v1280 = vadd.f32 %v783, %v1279
  %v1281 = vpop.f32.mrb[0].mxu0
  %1282 = vmatprep.mubr.f32.mxu0 0.0
  %1283 = vmatmul.mubr.f32.gmra.mrb[0].mxu0 %v931
  %v1284 = vpop.f32.mrb[0].mxu0
  %v1285 = vadd.f32 %v783, %v1284
  %v1286 = vpop.f32.mrb[0].mxu0
  %1287 = vmatprep.mubr.f32.mxu0 0.0
  %1288 = vmatmul.mubr.f32.gmra.mrb[0].mxu0 %v934
  %v1289 = vpop.f32.mrb[0].mxu0
  %v1290 = vadd.f32 %v783, %v1289
  %v1291 = vpop.f32.mrb[0].mxu0
  %1292 = vmatprep.mubr.f32.mxu0 0.0
  %1293 = vmatmul.mubr.f32.gmra.mrb[0].mxu0 %v937
  %v1294 = vpop.f32.mrb[0].mxu0
  %v1295 = vadd.f32 %v783, %v1294
  %v1296 = vpop.f32.mrb[0].mxu0
  %1297 = vmatprep.mubr.f32.mxu0 0.0
  %1298 = vmatmul.mubr.f32.gmra.mrb[0].mxu0 %v940
  %v1299 = vpop.f32.mrb[0].mxu0
  %v1300 = vadd.f32 %v783, %v1299
  %v1301 = vpop.f32.mrb[0].mxu0
  %1302 = vmatprep.mubr.f32.mxu0 0.0
  %1303 = vmatmul.mubr.f32.gmra.mrb[0].mxu0 %v943
  %v1304 = vpop.f32.mrb[0].mxu0
  %v1305 = vadd.f32 %v783, %v1304
  %v1306 = vpop.f32.mrb[0].mxu0
  %1307 = vmatprep.mubr.f32.mxu0 0.0
  %1308 = vmatmul.mubr.f32.gmra.mrb[0].mxu0 %v946
  %v1309 = vpop.f32.mrb[0].mxu0
  %v1310 = vadd.f32 %v783, %v1309
  %v1311 = vpop.f32.mrb[0].mxu0
  %1312 = vmatprep.mubr.f32.mxu0 0.0
  %1313 = vmatmul.mubr.f32.gmra.mrb[0].mxu0 %v949
  %v1314 = vpop.f32.mrb[0].mxu0
  %v1315 = vadd.f32 %v783, %v1314
  %v1316 = vpop.f32.mrb[0].mxu0
  %1317 = vmatprep.mubr.f32.mxu0 0.0
  %1318 = vmatmul.mubr.f32.gmra.mrb[0].mxu0 %v952
  %v1319 = vpop.f32.mrb[0].mxu0
  %v1320 = vadd.f32 %v783, %v1319
  %v1321 = vpop.f32.mrb[0].mxu0
  %1322 = vmatprep.mubr.f32.mxu0 0.0
  %1323 = vmatmul.mubr.f32.gmra.mrb[0].mxu0 %v955
  %v1324 = vpop.f32.mrb[0].mxu0
  %v1325 = vadd.f32 %v783, %v1324
  %v1326 = vpop.f32.mrb[0].mxu0
  %1327 = vmatprep.mubr.f32.mxu0 0.0
  %1328 = vmatmul.mubr.f32.gmra.mrb[0].mxu0 %v958
  %v1329 = vpop.f32.mrb[0].mxu0
  %v1330 = vadd.f32 %v783, %v1329
  %v1331 = vpop.f32.mrb[0].mxu0
  %1332 = vmatprep.mubr.f32.mxu0 0.0
  %1333 = vmatmul.mubr.f32.gmra.mrb[0].mxu0 %v961
  %v1334 = vpop.f32.mrb[0].mxu0
  %v1335 = vadd.f32 %v783, %v1334
  %v1336 = vpop.f32.mrb[0].mxu0
  %1337 = vmatprep.mubr.f32.mxu0 0.0
  %1338 = vmatmul.mubr.f32.gmra.mrb[0].mxu0 %v964
  %v1339 = vpop.f32.mrb[0].mxu0
  %v1340 = vadd.f32 %v783, %v1339
  %v1341 = vpop.f32.mrb[0].mxu0
  %1342 = vmatprep.mubr.f32.mxu0 0.0
  %1343 = vmatmul.mubr.f32.gmra.mrb[0].mxu0 %v967
  %v1344 = vpop.f32.mrb[0].mxu0
  %v1345 = vadd.f32 %v783, %v1344
  %v1346 = vpop.f32.mrb[0].mxu0
  %1347 = vmatprep.mubr.f32.mxu0 0.0
  %1348 = vmatmul.mubr.f32.gmra.mrb[0].mxu0 %v970
  %v1349 = vpop.f32.mrb[0].mxu0
  %v1350 = vadd.f32 %v783, %v1349
  %v1351 = vpop.f32.mrb[0].mxu0
  %1352 = vmatprep.mubr.f32.mxu0 0.0
  %1353 = vmatmul.mubr.f32.gmra.mrb[0].mxu0 %v973
  %v1354 = vpop.f32.mrb[0].mxu0
  %v1355 = vadd.f32 %v783, %v1354
  %v1356 = vpop.f32.mrb[0].mxu0
  %1357 = vmatprep.mubr.f32.mxu0 0.0
  %1358 = vmatmul.mubr.f32.gmra.mrb[0].mxu0 %v976
  %v1359 = vpop.f32.mrb[0].mxu0
  %v1360 = vadd.f32 %v783, %v1359
  %v1361 = vpop.f32.mrb[0].mxu0
  %1362 = vdwg.mxu0
  %v1363 = vld [vmem:[%s1] sm:$0xff]
  %v1364 = vld [vmem:[%s1 + $0x8] sm:$0xff]
  %v1365 = vld [vmem:[%s1 + $0x10] sm:$0xff]
  %v1366 = vld [vmem:[%s1 + $0x18] sm:$0xff]
  %v1367 = vld [vmem:[%s1 + $0x20] sm:$0xff]
  %v1368 = vld [vmem:[%s1 + $0x28] sm:$0xff]
  %v1369 = vld [vmem:[%s1 + $0x30] sm:$0xff]
  %v1370 = vld [vmem:[%s1 + $0x38] sm:$0xff]
  %v1371 = vld [vmem:[%s1 + $0x40] sm:$0xff]
  %v1372 = vld [vmem:[%s1 + $0x48] sm:$0xff]
  %v1373 = vld [vmem:[%s1 + $0x50] sm:$0xff]
  %v1374 = vld [vmem:[%s1 + $0x58] sm:$0xff]
  %v1375 = vld [vmem:[%s1 + $0x60] sm:$0xff]
  %v1376 = vld [vmem:[%s1 + $0x68] sm:$0xff]
  %v1377 = vld [vmem:[%s1 + $0x70] sm:$0xff]
  %v1378 = vld [vmem:[%s1 + $0x78] sm:$0xff]
  %v1379 = vld [vmem:[%s1 + $0x80] sm:$0xff]
  %v1380 = vld [vmem:[%s1 + $0x88] sm:$0xff]
  %v1381 = vld [vmem:[%s1 + $0x90] sm:$0xff]
  %v1382 = vld [vmem:[%s1 + $0x98] sm:$0xff]
  %v1383 = vld [vmem:[%s1 + $0xa0] sm:$0xff]
  %v1384 = vld [vmem:[%s1 + $0xa8] sm:$0xff]
  %v1385 = vld [vmem:[%s1 + $0xb0] sm:$0xff]
  %v1386 = vld [vmem:[%s1 + $0xb8] sm:$0xff]
  %v1387 = vld [vmem:[%s1 + $0xc0] sm:$0xff]
  %v1388 = vld [vmem:[%s1 + $0xc8] sm:$0xff]
  %v1389 = vld [vmem:[%s1 + $0xd0] sm:$0xff]
  %v1390 = vld [vmem:[%s1 + $0xd8] sm:$0xff]
  %v1391 = vld [vmem:[%s1 + $0xe0] sm:$0xff]
  %v1392 = vld [vmem:[%s1 + $0xe8] sm:$0xff]
  %v1393 = vld [vmem:[%s1 + $0xf0] sm:$0xff]
  %v1394 = vld [vmem:[%s1 + $0xf8] sm:$0xff]
  %v1395 = vld [vmem:[%s1 + $0x100] sm:$0xff]
  %v1396 = vld [vmem:[%s1 + $0x108] sm:$0xff]
  %v1397 = vld [vmem:[%s1 + $0x110] sm:$0xff]
  %v1398 = vld [vmem:[%s1 + $0x118] sm:$0xff]
  %v1399 = vld [vmem:[%s1 + $0x120] sm:$0xff]
  %v1400 = vld [vmem:[%s1 + $0x128] sm:$0xff]
  %v1401 = vld [vmem:[%s1 + $0x130] sm:$0xff]
  %v1402 = vld [vmem:[%s1 + $0x138] sm:$0xff]
  %v1403 = vld [vmem:[%s1 + $0x140] sm:$0xff]
  %v1404 = vld [vmem:[%s1 + $0x148] sm:$0xff]
  %v1405 = vld [vmem:[%s1 + $0x150] sm:$0xff]
  %v1406 = vld [vmem:[%s1 + $0x158] sm:$0xff]
  %v1407 = vld [vmem:[%s1 + $0x160] sm:$0xff]
  %v1408 = vld [vmem:[%s1 + $0x168] sm:$0xff]
  %v1409 = vld [vmem:[%s1 + $0x170] sm:$0xff]
  %v1410 = vld [vmem:[%s1 + $0x178] sm:$0xff]
  %v1411 = vld [vmem:[%s1 + $0x180] sm:$0xff]
  %v1412 = vld [vmem:[%s1 + $0x188] sm:$0xff]
  %v1413 = vld [vmem:[%s1 + $0x190] sm:$0xff]
  %v1414 = vld [vmem:[%s1 + $0x198] sm:$0xff]
  %v1415 = vld [vmem:[%s1 + $0x1a0] sm:$0xff]
  %v1416 = vld [vmem:[%s1 + $0x1a8] sm:$0xff]
  %v1417 = vld [vmem:[%s1 + $0x1b0] sm:$0xff]
  %v1418 = vld [vmem:[%s1 + $0x1b8] sm:$0xff]
  %v1419 = vld [vmem:[%s1 + $0x1c0] sm:$0xff]
  %v1420 = vld [vmem:[%s1 + $0x1c8] sm:$0xff]
  %v1421 = vld [vmem:[%s1 + $0x1d0] sm:$0xff]
  %v1422 = vld [vmem:[%s1 + $0x1d8] sm:$0xff]
  %v1423 = vld [vmem:[%s1 + $0x1e0] sm:$0xff]
  %v1424 = vld [vmem:[%s1 + $0x1e8] sm:$0xff]
  %v1425 = vld [vmem:[%s1 + $0x1f0] sm:$0xff]
  %v1426 = vld [vmem:[%s1 + $0x1f8] sm:$0xff]
  %v1427 = vld [vmem:[%s6] sm:$0xff]
  %v1428 = vld [vmem:[%s6 + $0x8] sm:$0xff]
  %v1429 = vld [vmem:[%s7] sm:$0x1]
  %v1431 = vlaneseq
  %v1432 = vshrl.u32 %v1431, 7
  %v1433 = vsub.s32 0, %v1432
  %v1434 = vrot.slane %v1429, %v1433
  %vm1436 = vcmask 130048
  %v1438 = vsel %vm1436, %v1363, 0
  %v1441 = vsel %vm1436, %v1364, 0
  %v1444 = vsel %vm1436, %v1365, 0
  %v1447 = vsel %vm1436, %v1366, 0
  %v1450 = vsel %vm1436, %v1367, 0
  %v1453 = vsel %vm1436, %v1368, 0
  %v1456 = vsel %vm1436, %v1369, 0
  %v1459 = vsel %vm1436, %v1370, 0
  %v1462 = vsel %vm1436, %v1371, 0
  %v1465 = vsel %vm1436, %v1372, 0
  %v1468 = vsel %vm1436, %v1373, 0
  %v1471 = vsel %vm1436, %v1374, 0
  %v1474 = vsel %vm1436, %v1375, 0
  %v1477 = vsel %vm1436, %v1376, 0
  %v1480 = vsel %vm1436, %v1377, 0
  %v1483 = vsel %vm1436, %v1378, 0
  %v1486 = vsel %vm1436, %v1379, 0
  %v1489 = vsel %vm1436, %v1380, 0
  %v1492 = vsel %vm1436, %v1381, 0
  %v1495 = vsel %vm1436, %v1382, 0
  %v1498 = vsel %vm1436, %v1383, 0
  %v1501 = vsel %vm1436, %v1384, 0
  %v1504 = vsel %vm1436, %v1385, 0
  %v1507 = vsel %vm1436, %v1386, 0
  %v1510 = vsel %vm1436, %v1387, 0
  %v1513 = vsel %vm1436, %v1388, 0
  %v1516 = vsel %vm1436, %v1389, 0
  %v1519 = vsel %vm1436, %v1390, 0
  %v1522 = vsel %vm1436, %v1391, 0
  %v1525 = vsel %vm1436, %v1392, 0
  %v1528 = vsel %vm1436, %v1393, 0
  %v1531 = vsel %vm1436, %v1394, 0
  %v1534 = vsel %vm1436, %v1395, 0
  %v1537 = vsel %vm1436, %v1396, 0
  %v1540 = vsel %vm1436, %v1397, 0
  %v1543 = vsel %vm1436, %v1398, 0
  %v1546 = vsel %vm1436, %v1399, 0
  %v1549 = vsel %vm1436, %v1400, 0
  %v1552 = vsel %vm1436, %v1401, 0
  %v1555 = vsel %vm1436, %v1402, 0
  %v1558 = vsel %vm1436, %v1403, 0
  %v1561 = vsel %vm1436, %v1404, 0
  %v1564 = vsel %vm1436, %v1405, 0
  %v1567 = vsel %vm1436, %v1406, 0
  %v1570 = vsel %vm1436, %v1407, 0
  %v1573 = vsel %vm1436, %v1408, 0
  %v1576 = vsel %vm1436, %v1409, 0
  %v1579 = vsel %vm1436, %v1410, 0
  %v1582 = vsel %vm1436, %v1411, 0
  %v1585 = vsel %vm1436, %v1412, 0
  %v1588 = vsel %vm1436, %v1413, 0
  %v1591 = vsel %vm1436, %v1414, 0
  %v1594 = vsel %vm1436, %v1415, 0
  %v1597 = vsel %vm1436, %v1416, 0
  %v1600 = vsel %vm1436, %v1417, 0
  %v1603 = vsel %vm1436, %v1418, 0
  %v1606 = vsel %vm1436, %v1419, 0
  %v1609 = vsel %vm1436, %v1420, 0
  %v1612 = vsel %vm1436, %v1421, 0
  %v1615 = vsel %vm1436, %v1422, 0
  %v1618 = vsel %vm1436, %v1423, 0
  %v1621 = vsel %vm1436, %v1424, 0
  %v1624 = vsel %vm1436, %v1425, 0
  %v1627 = vsel %vm1436, %v1426, 0
  %1629 = vmatprep.subr.mxu0 0.0
  %1630 = vmatpush1.msra.mxu0 %v1427
  %1631 = vmatprep.subr.mxu0 0.0
  %1632 = vmatpush1.msra.mxu0 %v1428
  %1633 = vmatprep.subr.mxu0 0.0
  %1634 = vmatpush1.msra.mxu0 0.0
  %1635 = vmatprep.subr.mxu0 0.0
  %1636 = vmatpush1.msra.mxu0 0.0
  %1637 = vmatprep.subr.mxu0 0.0
  %1638 = vmatpush1.msra.mxu0 0.0
  %1639 = vmatprep.subr.mxu0 0.0
  %1640 = vmatpush1.msra.mxu0 0.0
  %1641 = vmatprep.subr.mxu0 0.0
  %1642 = vmatpush1.msra.mxu0 0.0
  %1643 = vmatprep.subr.mxu0 0.0
  %1644 = vmatpush1.msra.mxu0 0.0
  %1645 = vmatprep.subr.mxu0 0.0
  %1646 = vmatpush1.msra.mxu0 0.0
  %1647 = vmatprep.subr.mxu0 0.0
  %1648 = vmatpush1.msra.mxu0 0.0
  %1649 = vmatprep.subr.mxu0 0.0
  %1650 = vmatpush1.msra.mxu0 0.0
  %1651 = vmatprep.subr.mxu0 0.0
  %1652 = vmatpush1.msra.mxu0 0.0
  %1653 = vmatprep.subr.mxu0 0.0
  %1654 = vmatpush1.msra.mxu0 0.0
  %1655 = vmatprep.subr.mxu0 0.0
  %1656 = vmatpush1.msra.mxu0 0.0
  %1657 = vmatprep.subr.mxu0 0.0
  %1658 = vmatpush1.msra.mxu0 0.0
  %1659 = vmatprep.subr.mxu0 0.0
  %1660 = vmatpush1.msra.mxu0 0.0
  %1661 = vmatprep.subr.mxu0 0.0
  %1662 = vmatpush1.msra.mxu0 0.0
  %1663 = vmatprep.subr.mxu0 0.0
  %1664 = vmatpush1.msra.mxu0 0.0
  %1665 = vmatprep.subr.mxu0 0.0
  %1666 = vmatpush1.msra.mxu0 0.0
  %1667 = vmatprep.subr.mxu0 0.0
  %1668 = vmatpush1.msra.mxu0 0.0
  %1669 = vmatprep.subr.mxu0 0.0
  %1670 = vmatpush1.msra.mxu0 0.0
  %1671 = vmatprep.subr.mxu0 0.0
  %1672 = vmatpush1.msra.mxu0 0.0
  %1673 = vmatprep.subr.mxu0 0.0
  %1674 = vmatpush1.msra.mxu0 0.0
  %1675 = vmatprep.subr.mxu0 0.0
  %1676 = vmatpush1.msra.mxu0 0.0
  %1677 = vmatprep.subr.mxu0 0.0
  %1678 = vmatpush1.msra.mxu0 0.0
  %1679 = vmatprep.subr.mxu0 0.0
  %1680 = vmatpush1.msra.mxu0 0.0
  %1681 = vmatprep.subr.mxu0 0.0
  %1682 = vmatpush1.msra.mxu0 0.0
  %1683 = vmatprep.subr.mxu0 0.0
  %1684 = vmatpush1.msra.mxu0 0.0
  %1685 = vmatprep.subr.mxu0 0.0
  %1686 = vmatpush1.msra.mxu0 0.0
  %1687 = vmatprep.subr.mxu0 0.0
  %1688 = vmatpush1.msra.mxu0 0.0
  %1689 = vmatprep.subr.mxu0 0.0
  %1690 = vmatpush1.msra.mxu0 0.0
  %1691 = vmatprep.subr.mxu0 0.0
  %1692 = vmatpush1.msra.mxu0 0.0
  %1693 = vmatprep.mubr.f32.mxu0 0.0
  %1694 = vmatmul.mubr.f32.gmra.mrb[0].mxu0 %v1438
  %v1695 = vpop.f32.mrb[0].mxu0
  %v1696 = vadd.f32 %v1434, %v1695
  %v1697 = vpop.f32.mrb[0].mxu0
  %1698 = vmatprep.mubr.f32.mxu0 0.0
  %1699 = vmatmul.mubr.f32.gmra.mrb[0].mxu0 %v1441
  %v1700 = vpop.f32.mrb[0].mxu0
  %v1701 = vadd.f32 %v1434, %v1700
  %v1702 = vpop.f32.mrb[0].mxu0
  %1703 = vmatprep.mubr.f32.mxu0 0.0
  %1704 = vmatmul.mubr.f32.gmra.mrb[0].mxu0 %v1444
  %v1705 = vpop.f32.mrb[0].mxu0
  %v1706 = vadd.f32 %v1434, %v1705
  %v1707 = vpop.f32.mrb[0].mxu0
  %1708 = vmatprep.mubr.f32.mxu0 0.0
  %1709 = vmatmul.mubr.f32.gmra.mrb[0].mxu0 %v1447
  %v1710 = vpop.f32.mrb[0].mxu0
  %v1711 = vadd.f32 %v1434, %v1710
  %v1712 = vpop.f32.mrb[0].mxu0
  %1713 = vmatprep.mubr.f32.mxu0 0.0
  %1714 = vmatmul.mubr.f32.gmra.mrb[0].mxu0 %v1450
  %v1715 = vpop.f32.mrb[0].mxu0
  %v1716 = vadd.f32 %v1434, %v1715
  %v1717 = vpop.f32.mrb[0].mxu0
  %1718 = vmatprep.mubr.f32.mxu0 0.0
  %1719 = vmatmul.mubr.f32.gmra.mrb[0].mxu0 %v1453
  %v1720 = vpop.f32.mrb[0].mxu0
  %v1721 = vadd.f32 %v1434, %v1720
  %v1722 = vpop.f32.mrb[0].mxu0
  %1723 = vmatprep.mubr.f32.mxu0 0.0
  %1724 = vmatmul.mubr.f32.gmra.mrb[0].mxu0 %v1456
  %v1725 = vpop.f32.mrb[0].mxu0
  %v1726 = vadd.f32 %v1434, %v1725
  %v1727 = vpop.f32.mrb[0].mxu0
  %1728 = vmatprep.mubr.f32.mxu0 0.0
  %1729 = vmatmul.mubr.f32.gmra.mrb[0].mxu0 %v1459
  %v1730 = vpop.f32.mrb[0].mxu0
  %v1731 = vadd.f32 %v1434, %v1730
  %v1732 = vpop.f32.mrb[0].mxu0
  %1733 = vmatprep.mubr.f32.mxu0 0.0
  %1734 = vmatmul.mubr.f32.gmra.mrb[0].mxu0 %v1462
  %v1735 = vpop.f32.mrb[0].mxu0
  %v1736 = vadd.f32 %v1434, %v1735
  %v1737 = vpop.f32.mrb[0].mxu0
  %1738 = vmatprep.mubr.f32.mxu0 0.0
  %1739 = vmatmul.mubr.f32.gmra.mrb[0].mxu0 %v1465
  %v1740 = vpop.f32.mrb[0].mxu0
  %v1741 = vadd.f32 %v1434, %v1740
  %v1742 = vpop.f32.mrb[0].mxu0
  %1743 = vmatprep.mubr.f32.mxu0 0.0
  %1744 = vmatmul.mubr.f32.gmra.mrb[0].mxu0 %v1468
  %v1745 = vpop.f32.mrb[0].mxu0
  %v1746 = vadd.f32 %v1434, %v1745
  %v1747 = vpop.f32.mrb[0].mxu0
  %1748 = vmatprep.mubr.f32.mxu0 0.0
  %1749 = vmatmul.mubr.f32.gmra.mrb[0].mxu0 %v1471
  %v1750 = vpop.f32.mrb[0].mxu0
  %v1751 = vadd.f32 %v1434, %v1750
  %v1752 = vpop.f32.mrb[0].mxu0
  %1753 = vmatprep.mubr.f32.mxu0 0.0
  %1754 = vmatmul.mubr.f32.gmra.mrb[0].mxu0 %v1474
  %v1755 = vpop.f32.mrb[0].mxu0
  %v1756 = vadd.f32 %v1434, %v1755
  %v1757 = vpop.f32.mrb[0].mxu0
  %1758 = vmatprep.mubr.f32.mxu0 0.0
  %1759 = vmatmul.mubr.f32.gmra.mrb[0].mxu0 %v1477
  %v1760 = vpop.f32.mrb[0].mxu0
  %v1761 = vadd.f32 %v1434, %v1760
  %v1762 = vpop.f32.mrb[0].mxu0
  %1763 = vmatprep.mubr.f32.mxu0 0.0
  %1764 = vmatmul.mubr.f32.gmra.mrb[0].mxu0 %v1480
  %v1765 = vpop.f32.mrb[0].mxu0
  %v1766 = vadd.f32 %v1434, %v1765
  %v1767 = vpop.f32.mrb[0].mxu0
  %1768 = vmatprep.mubr.f32.mxu0 0.0
  %1769 = vmatmul.mubr.f32.gmra.mrb[0].mxu0 %v1483
  %v1770 = vpop.f32.mrb[0].mxu0
  %v1771 = vadd.f32 %v1434, %v1770
  %v1772 = vpop.f32.mrb[0].mxu0
  %1773 = vmatprep.mubr.f32.mxu0 0.0
  %1774 = vmatmul.mubr.f32.gmra.mrb[0].mxu0 %v1486
  %v1775 = vpop.f32.mrb[0].mxu0
  %v1776 = vadd.f32 %v1434, %v1775
  %v1777 = vpop.f32.mrb[0].mxu0
  %1778 = vmatprep.mubr.f32.mxu0 0.0
  %1779 = vmatmul.mubr.f32.gmra.mrb[0].mxu0 %v1489
  %v1780 = vpop.f32.mrb[0].mxu0
  %v1781 = vadd.f32 %v1434, %v1780
  %v1782 = vpop.f32.mrb[0].mxu0
  %1783 = vmatprep.mubr.f32.mxu0 0.0
  %1784 = vmatmul.mubr.f32.gmra.mrb[0].mxu0 %v1492
  %v1785 = vpop.f32.mrb[0].mxu0
  %v1786 = vadd.f32 %v1434, %v1785
  %v1787 = vpop.f32.mrb[0].mxu0
  %1788 = vmatprep.mubr.f32.mxu0 0.0
  %1789 = vmatmul.mubr.f32.gmra.mrb[0].mxu0 %v1495
  %v1790 = vpop.f32.mrb[0].mxu0
  %v1791 = vadd.f32 %v1434, %v1790
  %v1792 = vpop.f32.mrb[0].mxu0
  %1793 = vmatprep.mubr.f32.mxu0 0.0
  %1794 = vmatmul.mubr.f32.gmra.mrb[0].mxu0 %v1498
  %v1795 = vpop.f32.mrb[0].mxu0
  %v1796 = vadd.f32 %v1434, %v1795
  %v1797 = vpop.f32.mrb[0].mxu0
  %1798 = vmatprep.mubr.f32.mxu0 0.0
  %1799 = vmatmul.mubr.f32.gmra.mrb[0].mxu0 %v1501
  %v1800 = vpop.f32.mrb[0].mxu0
  %v1801 = vadd.f32 %v1434, %v1800
  %v1802 = vpop.f32.mrb[0].mxu0
  %1803 = vmatprep.mubr.f32.mxu0 0.0
  %1804 = vmatmul.mubr.f32.gmra.mrb[0].mxu0 %v1504
  %v1805 = vpop.f32.mrb[0].mxu0
  %v1806 = vadd.f32 %v1434, %v1805
  %v1807 = vpop.f32.mrb[0].mxu0
  %1808 = vmatprep.mubr.f32.mxu0 0.0
  %1809 = vmatmul.mubr.f32.gmra.mrb[0].mxu0 %v1507
  %v1810 = vpop.f32.mrb[0].mxu0
  %v1811 = vadd.f32 %v1434, %v1810
  %v1812 = vpop.f32.mrb[0].mxu0
  %1813 = vmatprep.mubr.f32.mxu0 0.0
  %1814 = vmatmul.mubr.f32.gmra.mrb[0].mxu0 %v1510
  %v1815 = vpop.f32.mrb[0].mxu0
  %v1816 = vadd.f32 %v1434, %v1815
  %v1817 = vpop.f32.mrb[0].mxu0
  %1818 = vmatprep.mubr.f32.mxu0 0.0
  %1819 = vmatmul.mubr.f32.gmra.mrb[0].mxu0 %v1513
  %v1820 = vpop.f32.mrb[0].mxu0
  %v1821 = vadd.f32 %v1434, %v1820
  %v1822 = vpop.f32.mrb[0].mxu0
  %1823 = vmatprep.mubr.f32.mxu0 0.0
  %1824 = vmatmul.mubr.f32.gmra.mrb[0].mxu0 %v1516
  %v1825 = vpop.f32.mrb[0].mxu0
  %v1826 = vadd.f32 %v1434, %v1825
  %v1827 = vpop.f32.mrb[0].mxu0
  %1828 = vmatprep.mubr.f32.mxu0 0.0
  %1829 = vmatmul.mubr.f32.gmra.mrb[0].mxu0 %v1519
  %v1830 = vpop.f32.mrb[0].mxu0
  %v1831 = vadd.f32 %v1434, %v1830
  %v1832 = vpop.f32.mrb[0].mxu0
  %1833 = vmatprep.mubr.f32.mxu0 0.0
  %1834 = vmatmul.mubr.f32.gmra.mrb[0].mxu0 %v1522
  %v1835 = vpop.f32.mrb[0].mxu0
  %v1836 = vadd.f32 %v1434, %v1835
  %v1837 = vpop.f32.mrb[0].mxu0
  %1838 = vmatprep.mubr.f32.mxu0 0.0
  %1839 = vmatmul.mubr.f32.gmra.mrb[0].mxu0 %v1525
  %v1840 = vpop.f32.mrb[0].mxu0
  %v1841 = vadd.f32 %v1434, %v1840
  %v1842 = vpop.f32.mrb[0].mxu0
  %1843 = vmatprep.mubr.f32.mxu0 0.0
  %1844 = vmatmul.mubr.f32.gmra.mrb[0].mxu0 %v1528
  %v1845 = vpop.f32.mrb[0].mxu0
  %v1846 = vadd.f32 %v1434, %v1845
  %v1847 = vpop.f32.mrb[0].mxu0
  %1848 = vmatprep.mubr.f32.mxu0 0.0
  %1849 = vmatmul.mubr.f32.gmra.mrb[0].mxu0 %v1531
  %v1850 = vpop.f32.mrb[0].mxu0
  %v1851 = vadd.f32 %v1434, %v1850
  %v1852 = vpop.f32.mrb[0].mxu0
  %1853 = vmatprep.mubr.f32.mxu0 0.0
  %1854 = vmatmul.mubr.f32.gmra.mrb[0].mxu0 %v1534
  %v1855 = vpop.f32.mrb[0].mxu0
  %v1856 = vadd.f32 %v1434, %v1855
  %v1857 = vpop.f32.mrb[0].mxu0
  %1858 = vmatprep.mubr.f32.mxu0 0.0
  %1859 = vmatmul.mubr.f32.gmra.mrb[0].mxu0 %v1537
  %v1860 = vpop.f32.mrb[0].mxu0
  %v1861 = vadd.f32 %v1434, %v1860
  %v1862 = vpop.f32.mrb[0].mxu0
  %1863 = vmatprep.mubr.f32.mxu0 0.0
  %1864 = vmatmul.mubr.f32.gmra.mrb[0].mxu0 %v1540
  %v1865 = vpop.f32.mrb[0].mxu0
  %v1866 = vadd.f32 %v1434, %v1865
  %v1867 = vpop.f32.mrb[0].mxu0
  %1868 = vmatprep.mubr.f32.mxu0 0.0
  %1869 = vmatmul.mubr.f32.gmra.mrb[0].mxu0 %v1543
  %v1870 = vpop.f32.mrb[0].mxu0
  %v1871 = vadd.f32 %v1434, %v1870
  %v1872 = vpop.f32.mrb[0].mxu0
  %1873 = vmatprep.mubr.f32.mxu0 0.0
  %1874 = vmatmul.mubr.f32.gmra.mrb[0].mxu0 %v1546
  %v1875 = vpop.f32.mrb[0].mxu0
  %v1876 = vadd.f32 %v1434, %v1875
  %v1877 = vpop.f32.mrb[0].mxu0
  %1878 = vmatprep.mubr.f32.mxu0 0.0
  %1879 = vmatmul.mubr.f32.gmra.mrb[0].mxu0 %v1549
  %v1880 = vpop.f32.mrb[0].mxu0
  %v1881 = vadd.f32 %v1434, %v1880
  %v1882 = vpop.f32.mrb[0].mxu0
  %1883 = vmatprep.mubr.f32.mxu0 0.0
  %1884 = vmatmul.mubr.f32.gmra.mrb[0].mxu0 %v1552
  %v1885 = vpop.f32.mrb[0].mxu0
  %v1886 = vadd.f32 %v1434, %v1885
  %v1887 = vpop.f32.mrb[0].mxu0
  %1888 = vmatprep.mubr.f32.mxu0 0.0
  %1889 = vmatmul.mubr.f32.gmra.mrb[0].mxu0 %v1555
  %v1890 = vpop.f32.mrb[0].mxu0
  %v1891 = vadd.f32 %v1434, %v1890
  %v1892 = vpop.f32.mrb[0].mxu0
  %1893 = vmatprep.mubr.f32.mxu0 0.0
  %1894 = vmatmul.mubr.f32.gmra.mrb[0].mxu0 %v1558
  %v1895 = vpop.f32.mrb[0].mxu0
  %v1896 = vadd.f32 %v1434, %v1895
  %v1897 = vpop.f32.mrb[0].mxu0
  %1898 = vmatprep.mubr.f32.mxu0 0.0
  %1899 = vmatmul.mubr.f32.gmra.mrb[0].mxu0 %v1561
  %v1900 = vpop.f32.mrb[0].mxu0
  %v1901 = vadd.f32 %v1434, %v1900
  %v1902 = vpop.f32.mrb[0].mxu0
  %1903 = vmatprep.mubr.f32.mxu0 0.0
  %1904 = vmatmul.mubr.f32.gmra.mrb[0].mxu0 %v1564
  %v1905 = vpop.f32.mrb[0].mxu0
  %v1906 = vadd.f32 %v1434, %v1905
  %v1907 = vpop.f32.mrb[0].mxu0
  %1908 = vmatprep.mubr.f32.mxu0 0.0
  %1909 = vmatmul.mubr.f32.gmra.mrb[0].mxu0 %v1567
  %v1910 = vpop.f32.mrb[0].mxu0
  %v1911 = vadd.f32 %v1434, %v1910
  %v1912 = vpop.f32.mrb[0].mxu0
  %1913 = vmatprep.mubr.f32.mxu0 0.0
  %1914 = vmatmul.mubr.f32.gmra.mrb[0].mxu0 %v1570
  %v1915 = vpop.f32.mrb[0].mxu0
  %v1916 = vadd.f32 %v1434, %v1915
  %v1917 = vpop.f32.mrb[0].mxu0
  %1918 = vmatprep.mubr.f32.mxu0 0.0
  %1919 = vmatmul.mubr.f32.gmra.mrb[0].mxu0 %v1573
  %v1920 = vpop.f32.mrb[0].mxu0
  %v1921 = vadd.f32 %v1434, %v1920
  %v1922 = vpop.f32.mrb[0].mxu0
  %1923 = vmatprep.mubr.f32.mxu0 0.0
  %1924 = vmatmul.mubr.f32.gmra.mrb[0].mxu0 %v1576
  %v1925 = vpop.f32.mrb[0].mxu0
  %v1926 = vadd.f32 %v1434, %v1925
  %v1927 = vpop.f32.mrb[0].mxu0
  %1928 = vmatprep.mubr.f32.mxu0 0.0
  %1929 = vmatmul.mubr.f32.gmra.mrb[0].mxu0 %v1579
  %v1930 = vpop.f32.mrb[0].mxu0
  %v1931 = vadd.f32 %v1434, %v1930
  %v1932 = vpop.f32.mrb[0].mxu0
  %1933 = vmatprep.mubr.f32.mxu0 0.0
  %1934 = vmatmul.mubr.f32.gmra.mrb[0].mxu0 %v1582
  %v1935 = vpop.f32.mrb[0].mxu0
  %v1936 = vadd.f32 %v1434, %v1935
  %v1937 = vpop.f32.mrb[0].mxu0
  %1938 = vmatprep.mubr.f32.mxu0 0.0
  %1939 = vmatmul.mubr.f32.gmra.mrb[0].mxu0 %v1585
  %v1940 = vpop.f32.mrb[0].mxu0
  %v1941 = vadd.f32 %v1434, %v1940
  %v1942 = vpop.f32.mrb[0].mxu0
  %1943 = vmatprep.mubr.f32.mxu0 0.0
  %1944 = vmatmul.mubr.f32.gmra.mrb[0].mxu0 %v1588
  %v1945 = vpop.f32.mrb[0].mxu0
  %v1946 = vadd.f32 %v1434, %v1945
  %v1947 = vpop.f32.mrb[0].mxu0
  %1948 = vmatprep.mubr.f32.mxu0 0.0
  %1949 = vmatmul.mubr.f32.gmra.mrb[0].mxu0 %v1591
  %v1950 = vpop.f32.mrb[0].mxu0
  %v1951 = vadd.f32 %v1434, %v1950
  %v1952 = vpop.f32.mrb[0].mxu0
  %1953 = vmatprep.mubr.f32.mxu0 0.0
  %1954 = vmatmul.mubr.f32.gmra.mrb[0].mxu0 %v1594
  %v1955 = vpop.f32.mrb[0].mxu0
  %v1956 = vadd.f32 %v1434, %v1955
  %v1957 = vpop.f32.mrb[0].mxu0
  %1958 = vmatprep.mubr.f32.mxu0 0.0
  %1959 = vmatmul.mubr.f32.gmra.mrb[0].mxu0 %v1597
  %v1960 = vpop.f32.mrb[0].mxu0
  %v1961 = vadd.f32 %v1434, %v1960
  %v1962 = vpop.f32.mrb[0].mxu0
  %1963 = vmatprep.mubr.f32.mxu0 0.0
  %1964 = vmatmul.mubr.f32.gmra.mrb[0].mxu0 %v1600
  %v1965 = vpop.f32.mrb[0].mxu0
  %v1966 = vadd.f32 %v1434, %v1965
  %v1967 = vpop.f32.mrb[0].mxu0
  %1968 = vmatprep.mubr.f32.mxu0 0.0
  %1969 = vmatmul.mubr.f32.gmra.mrb[0].mxu0 %v1603
  %v1970 = vpop.f32.mrb[0].mxu0
  %v1971 = vadd.f32 %v1434, %v1970
  %v1972 = vpop.f32.mrb[0].mxu0
  %1973 = vmatprep.mubr.f32.mxu0 0.0
  %1974 = vmatmul.mubr.f32.gmra.mrb[0].mxu0 %v1606
  %v1975 = vpop.f32.mrb[0].mxu0
  %v1976 = vadd.f32 %v1434, %v1975
  %v1977 = vpop.f32.mrb[0].mxu0
  %1978 = vmatprep.mubr.f32.mxu0 0.0
  %1979 = vmatmul.mubr.f32.gmra.mrb[0].mxu0 %v1609
  %v1980 = vpop.f32.mrb[0].mxu0
  %v1981 = vadd.f32 %v1434, %v1980
  %v1982 = vpop.f32.mrb[0].mxu0
  %1983 = vmatprep.mubr.f32.mxu0 0.0
  %1984 = vmatmul.mubr.f32.gmra.mrb[0].mxu0 %v1612
  %v1985 = vpop.f32.mrb[0].mxu0
  %v1986 = vadd.f32 %v1434, %v1985
  %v1987 = vpop.f32.mrb[0].mxu0
  %1988 = vmatprep.mubr.f32.mxu0 0.0
  %1989 = vmatmul.mubr.f32.gmra.mrb[0].mxu0 %v1615
  %v1990 = vpop.f32.mrb[0].mxu0
  %v1991 = vadd.f32 %v1434, %v1990
  %v1992 = vpop.f32.mrb[0].mxu0
  %1993 = vmatprep.mubr.f32.mxu0 0.0
  %1994 = vmatmul.mubr.f32.gmra.mrb[0].mxu0 %v1618
  %v1995 = vpop.f32.mrb[0].mxu0
  %v1996 = vadd.f32 %v1434, %v1995
  %v1997 = vpop.f32.mrb[0].mxu0
  %1998 = vmatprep.mubr.f32.mxu0 0.0
  %1999 = vmatmul.mubr.f32.gmra.mrb[0].mxu0 %v1621
  %v2000 = vpop.f32.mrb[0].mxu0
  %v2001 = vadd.f32 %v1434, %v2000
  %v2002 = vpop.f32.mrb[0].mxu0
  %2003 = vmatprep.mubr.f32.mxu0 0.0
  %2004 = vmatmul.mubr.f32.gmra.mrb[0].mxu0 %v1624
  %v2005 = vpop.f32.mrb[0].mxu0
  %v2006 = vadd.f32 %v1434, %v2005
  %v2007 = vpop.f32.mrb[0].mxu0
  %2008 = vmatprep.mubr.f32.mxu0 0.0
  %2009 = vmatmul.mubr.f32.gmra.mrb[0].mxu0 %v1627
  %v2010 = vpop.f32.mrb[0].mxu0
  %v2011 = vadd.f32 %v1434, %v2010
  %v2012 = vpop.f32.mrb[0].mxu0
  %2013 = vdwg.mxu0
  %v2014 = vmax.f32 %v1696, 0.0
  %v2015 = vmax.f32 %v1701, 0.0
  %v2016 = vmax.f32 %v1706, 0.0
  %v2017 = vmax.f32 %v1711, 0.0
  %v2018 = vmax.f32 %v1716, 0.0
  %v2019 = vmax.f32 %v1721, 0.0
  %v2020 = vmax.f32 %v1726, 0.0
  %v2021 = vmax.f32 %v1731, 0.0
  %v2022 = vmax.f32 %v1736, 0.0
  %v2023 = vmax.f32 %v1741, 0.0
  %v2024 = vmax.f32 %v1746, 0.0
  %v2025 = vmax.f32 %v1751, 0.0
  %v2026 = vmax.f32 %v1756, 0.0
  %v2027 = vmax.f32 %v1761, 0.0
  %v2028 = vmax.f32 %v1766, 0.0
  %v2029 = vmax.f32 %v1771, 0.0
  %v2030 = vmax.f32 %v1776, 0.0
  %v2031 = vmax.f32 %v1781, 0.0
  %v2032 = vmax.f32 %v1786, 0.0
  %v2033 = vmax.f32 %v1791, 0.0
  %v2034 = vmax.f32 %v1796, 0.0
  %v2035 = vmax.f32 %v1801, 0.0
  %v2036 = vmax.f32 %v1806, 0.0
  %v2037 = vmax.f32 %v1811, 0.0
  %v2038 = vmax.f32 %v1816, 0.0
  %v2039 = vmax.f32 %v1821, 0.0
  %v2040 = vmax.f32 %v1826, 0.0
  %v2041 = vmax.f32 %v1831, 0.0
  %v2042 = vmax.f32 %v1836, 0.0
  %v2043 = vmax.f32 %v1841, 0.0
  %v2044 = vmax.f32 %v1846, 0.0
  %v2045 = vmax.f32 %v1851, 0.0
  %v2046 = vmax.f32 %v1856, 0.0
  %v2047 = vmax.f32 %v1861, 0.0
  %v2048 = vmax.f32 %v1866, 0.0
  %v2049 = vmax.f32 %v1871, 0.0
  %v2050 = vmax.f32 %v1876, 0.0
  %v2051 = vmax.f32 %v1881, 0.0
  %v2052 = vmax.f32 %v1886, 0.0
  %v2053 = vmax.f32 %v1891, 0.0
  %v2054 = vmax.f32 %v1896, 0.0
  %v2055 = vmax.f32 %v1901, 0.0
  %v2056 = vmax.f32 %v1906, 0.0
  %v2057 = vmax.f32 %v1911, 0.0
  %v2058 = vmax.f32 %v1916, 0.0
  %v2059 = vmax.f32 %v1921, 0.0
  %v2060 = vmax.f32 %v1926, 0.0
  %v2061 = vmax.f32 %v1931, 0.0
  %v2062 = vmax.f32 %v1936, 0.0
  %v2063 = vmax.f32 %v1941, 0.0
  %v2064 = vmax.f32 %v1946, 0.0
  %v2065 = vmax.f32 %v1951, 0.0
  %v2066 = vmax.f32 %v1956, 0.0
  %v2067 = vmax.f32 %v1961, 0.0
  %v2068 = vmax.f32 %v1966, 0.0
  %v2069 = vmax.f32 %v1971, 0.0
  %v2070 = vmax.f32 %v1976, 0.0
  %v2071 = vmax.f32 %v1981, 0.0
  %v2072 = vmax.f32 %v1986, 0.0
  %v2073 = vmax.f32 %v1991, 0.0
  %v2074 = vmax.f32 %v1996, 0.0
  %v2075 = vmax.f32 %v2001, 0.0
  %v2076 = vmax.f32 %v2006, 0.0
  %v2077 = vmax.f32 %v2011, 0.0
  %v2078 = vld [vmem:[%s8] sm:$0xff]
  %v2079 = vld [vmem:[%s8 + $0x8] sm:$0xff]
  %v2080 = vld [vmem:[%s8 + $0x10] sm:$0xff]
  %v2081 = vld [vmem:[%s8 + $0x18] sm:$0xff]
  %v2082 = vld [vmem:[%s8 + $0x20] sm:$0xff]
  %v2083 = vld [vmem:[%s8 + $0x28] sm:$0xff]
  %v2084 = vld [vmem:[%s8 + $0x30] sm:$0xff]
  %v2085 = vld [vmem:[%s8 + $0x38] sm:$0xff]
  %v2086 = vld [vmem:[%s9] sm:$0x1]
  %v2088 = vlaneseq
  %v2089 = vshrl.u32 %v2088, 7
  %v2090 = vsub.s32 0, %v2089
  %v2091 = vrot.slane %v2086, %v2090
  %v2094 = vsel %vm785, %v2014, 0
  %v2097 = vsel %vm785, %v2015, 0
  %v2100 = vsel %vm785, %v2016, 0
  %v2103 = vsel %vm785, %v2017, 0
  %v2106 = vsel %vm785, %v2018, 0
  %v2109 = vsel %vm785, %v2019, 0
  %v2112 = vsel %vm785, %v2020, 0
  %v2115 = vsel %vm785, %v2021, 0
  %v2118 = vsel %vm785, %v2022, 0
  %v2121 = vsel %vm785, %v2023, 0
  %v2124 = vsel %vm785, %v2024, 0
  %v2127 = vsel %vm785, %v2025, 0
  %v2130 = vsel %vm785, %v2026, 0
  %v2133 = vsel %vm785, %v2027, 0
  %v2136 = vsel %vm785, %v2028, 0
  %v2139 = vsel %vm785, %v2029, 0
  %v2142 = vsel %vm785, %v2030, 0
  %v2145 = vsel %vm785, %v2031, 0
  %v2148 = vsel %vm785, %v2032, 0
  %v2151 = vsel %vm785, %v2033, 0
  %v2154 = vsel %vm785, %v2034, 0
  %v2157 = vsel %vm785, %v2035, 0
  %v2160 = vsel %vm785, %v2036, 0
  %v2163 = vsel %vm785, %v2037, 0
  %v2166 = vsel %vm785, %v2038, 0
  %v2169 = vsel %vm785, %v2039, 0
  %v2172 = vsel %vm785, %v2040, 0
  %v2175 = vsel %vm785, %v2041, 0
  %v2178 = vsel %vm785, %v2042, 0
  %v2181 = vsel %vm785, %v2043, 0
  %v2184 = vsel %vm785, %v2044, 0
  %v2187 = vsel %vm785, %v2045, 0
  %v2190 = vsel %vm785, %v2046, 0
  %v2193 = vsel %vm785, %v2047, 0
  %v2196 = vsel %vm785, %v2048, 0
  %v2199 = vsel %vm785, %v2049, 0
  %v2202 = vsel %vm785, %v2050, 0
  %v2205 = vsel %vm785, %v2051, 0
  %v2208 = vsel %vm785, %v2052, 0
  %v2211 = vsel %vm785, %v2053, 0
  %v2214 = vsel %vm785, %v2054, 0
  %v2217 = vsel %vm785, %v2055, 0
  %v2220 = vsel %vm785, %v2056, 0
  %v2223 = vsel %vm785, %v2057, 0
  %v2226 = vsel %vm785, %v2058, 0
  %v2229 = vsel %vm785, %v2059, 0
  %v2232 = vsel %vm785, %v2060, 0
  %v2235 = vsel %vm785, %v2061, 0
  %v2238 = vsel %vm785, %v2062, 0
  %v2241 = vsel %vm785, %v2063, 0
  %v2244 = vsel %vm785, %v2064, 0
  %v2247 = vsel %vm785, %v2065, 0
  %v2250 = vsel %vm785, %v2066, 0
  %v2253 = vsel %vm785, %v2067, 0
  %v2256 = vsel %vm785, %v2068, 0
  %v2259 = vsel %vm785, %v2069, 0
  %v2262 = vsel %vm785, %v2070, 0
  %v2265 = vsel %vm785, %v2071, 0
  %v2268 = vsel %vm785, %v2072, 0
  %v2271 = vsel %vm785, %v2073, 0
  %v2274 = vsel %vm785, %v2074, 0
  %v2277 = vsel %vm785, %v2075, 0
  %v2280 = vsel %vm785, %v2076, 0
  %v2283 = vsel %vm785, %v2077, 0
  %2285 = vmatprep.subr.mxu0 0.0
  %2286 = vmatpush1.msra.mxu0 %v2078
  %2287 = vmatprep.subr.mxu0 0.0
  %2288 = vmatpush1.msra.mxu0 %v2079
  %2289 = vmatprep.subr.mxu0 0.0
  %2290 = vmatpush1.msra.mxu0 %v2080
  %2291 = vmatprep.subr.mxu0 0.0
  %2292 = vmatpush1.msra.mxu0 %v2081
  %2293 = vmatprep.subr.mxu0 0.0
  %2294 = vmatpush1.msra.mxu0 %v2082
  %2295 = vmatprep.subr.mxu0 0.0
  %2296 = vmatpush1.msra.mxu0 %v2083
  %2297 = vmatprep.subr.mxu0 0.0
  %2298 = vmatpush1.msra.mxu0 %v2084
  %2299 = vmatprep.subr.mxu0 0.0
  %2300 = vmatpush1.msra.mxu0 %v2085
  %2301 = vmatprep.subr.mxu0 0.0
  %2302 = vmatpush1.msra.mxu0 0.0
  %2303 = vmatprep.subr.mxu0 0.0
  %2304 = vmatpush1.msra.mxu0 0.0
  %2305 = vmatprep.subr.mxu0 0.0
  %2306 = vmatpush1.msra.mxu0 0.0
  %2307 = vmatprep.subr.mxu0 0.0
  %2308 = vmatpush1.msra.mxu0 0.0
  %2309 = vmatprep.subr.mxu0 0.0
  %2310 = vmatpush1.msra.mxu0 0.0
  %2311 = vmatprep.subr.mxu0 0.0
  %2312 = vmatpush1.msra.mxu0 0.0
  %2313 = vmatprep.subr.mxu0 0.0
  %2314 = vmatpush1.msra.mxu0 0.0
  %2315 = vmatprep.subr.mxu0 0.0
  %2316 = vmatpush1.msra.mxu0 0.0
  %2317 = vmatprep.subr.mxu0 0.0
  %2318 = vmatpush1.msra.mxu0 0.0
  %2319 = vmatprep.subr.mxu0 0.0
  %2320 = vmatpush1.msra.mxu0 0.0
  %2321 = vmatprep.subr.mxu0 0.0
  %2322 = vmatpush1.msra.mxu0 0.0
  %2323 = vmatprep.subr.mxu0 0.0
  %2324 = vmatpush1.msra.mxu0 0.0
  %2325 = vmatprep.subr.mxu0 0.0
  %2326 = vmatpush1.msra.mxu0 0.0
  %2327 = vmatprep.subr.mxu0 0.0
  %2328 = vmatpush1.msra.mxu0 0.0
  %2329 = vmatprep.subr.mxu0 0.0
  %2330 = vmatpush1.msra.mxu0 0.0
  %2331 = vmatprep.subr.mxu0 0.0
  %2332 = vmatpush1.msra.mxu0 0.0
  %2333 = vmatprep.subr.mxu0 0.0
  %2334 = vmatpush1.msra.mxu0 0.0
  %2335 = vmatprep.subr.mxu0 0.0
  %2336 = vmatpush1.msra.mxu0 0.0
  %2337 = vmatprep.subr.mxu0 0.0
  %2338 = vmatpush1.msra.mxu0 0.0
  %2339 = vmatprep.subr.mxu0 0.0
  %2340 = vmatpush1.msra.mxu0 0.0
  %2341 = vmatprep.subr.mxu0 0.0
  %2342 = vmatpush1.msra.mxu0 0.0
  %2343 = vmatprep.subr.mxu0 0.0
  %2344 = vmatpush1.msra.mxu0 0.0
  %2345 = vmatprep.subr.mxu0 0.0
  %2346 = vmatpush1.msra.mxu0 0.0
  %2347 = vmatprep.subr.mxu0 0.0
  %2348 = vmatpush1.msra.mxu0 0.0
  %2349 = vmatprep.mubr.f32.mxu0 0.0
  %2350 = vmatmul.mubr.f32.gmra.mrb[0].mxu0 %v2094
  %v2351 = vpop.f32.mrb[0].mxu0
  %v2352 = vadd.f32 %v2091, %v2351
  %v2353 = vpop.f32.mrb[0].mxu0
  %2354 = vmatprep.mubr.f32.mxu0 0.0
  %2355 = vmatmul.mubr.f32.gmra.mrb[0].mxu0 %v2097
  %v2356 = vpop.f32.mrb[0].mxu0
  %v2357 = vadd.f32 %v2091, %v2356
  %v2358 = vpop.f32.mrb[0].mxu0
  %2359 = vmatprep.mubr.f32.mxu0 0.0
  %2360 = vmatmul.mubr.f32.gmra.mrb[0].mxu0 %v2100
  %v2361 = vpop.f32.mrb[0].mxu0
  %v2362 = vadd.f32 %v2091, %v2361
  %v2363 = vpop.f32.mrb[0].mxu0
  %2364 = vmatprep.mubr.f32.mxu0 0.0
  %2365 = vmatmul.mubr.f32.gmra.mrb[0].mxu0 %v2103
  %v2366 = vpop.f32.mrb[0].mxu0
  %v2367 = vadd.f32 %v2091, %v2366
  %v2368 = vpop.f32.mrb[0].mxu0
  %2369 = vmatprep.mubr.f32.mxu0 0.0
  %2370 = vmatmul.mubr.f32.gmra.mrb[0].mxu0 %v2106
  %v2371 = vpop.f32.mrb[0].mxu0
  %v2372 = vadd.f32 %v2091, %v2371
  %v2373 = vpop.f32.mrb[0].mxu0
  %2374 = vmatprep.mubr.f32.mxu0 0.0
  %2375 = vmatmul.mubr.f32.gmra.mrb[0].mxu0 %v2109
  %v2376 = vpop.f32.mrb[0].mxu0
  %v2377 = vadd.f32 %v2091, %v2376
  %v2378 = vpop.f32.mrb[0].mxu0
  %2379 = vmatprep.mubr.f32.mxu0 0.0
  %2380 = vmatmul.mubr.f32.gmra.mrb[0].mxu0 %v2112
  %v2381 = vpop.f32.mrb[0].mxu0
  %v2382 = vadd.f32 %v2091, %v2381
  %v2383 = vpop.f32.mrb[0].mxu0
  %2384 = vmatprep.mubr.f32.mxu0 0.0
  %2385 = vmatmul.mubr.f32.gmra.mrb[0].mxu0 %v2115
  %v2386 = vpop.f32.mrb[0].mxu0
  %v2387 = vadd.f32 %v2091, %v2386
  %v2388 = vpop.f32.mrb[0].mxu0
  %2389 = vmatprep.mubr.f32.mxu0 0.0
  %2390 = vmatmul.mubr.f32.gmra.mrb[0].mxu0 %v2118
  %v2391 = vpop.f32.mrb[0].mxu0
  %v2392 = vadd.f32 %v2091, %v2391
  %v2393 = vpop.f32.mrb[0].mxu0
  %2394 = vmatprep.mubr.f32.mxu0 0.0
  %2395 = vmatmul.mubr.f32.gmra.mrb[0].mxu0 %v2121
  %v2396 = vpop.f32.mrb[0].mxu0
  %v2397 = vadd.f32 %v2091, %v2396
  %v2398 = vpop.f32.mrb[0].mxu0
  %2399 = vmatprep.mubr.f32.mxu0 0.0
  %2400 = vmatmul.mubr.f32.gmra.mrb[0].mxu0 %v2124
  %v2401 = vpop.f32.mrb[0].mxu0
  %v2402 = vadd.f32 %v2091, %v2401
  %v2403 = vpop.f32.mrb[0].mxu0
  %2404 = vmatprep.mubr.f32.mxu0 0.0
  %2405 = vmatmul.mubr.f32.gmra.mrb[0].mxu0 %v2127
  %v2406 = vpop.f32.mrb[0].mxu0
  %v2407 = vadd.f32 %v2091, %v2406
  %v2408 = vpop.f32.mrb[0].mxu0
  %2409 = vmatprep.mubr.f32.mxu0 0.0
  %2410 = vmatmul.mubr.f32.gmra.mrb[0].mxu0 %v2130
  %v2411 = vpop.f32.mrb[0].mxu0
  %v2412 = vadd.f32 %v2091, %v2411
  %v2413 = vpop.f32.mrb[0].mxu0
  %2414 = vmatprep.mubr.f32.mxu0 0.0
  %2415 = vmatmul.mubr.f32.gmra.mrb[0].mxu0 %v2133
  %v2416 = vpop.f32.mrb[0].mxu0
  %v2417 = vadd.f32 %v2091, %v2416
  %v2418 = vpop.f32.mrb[0].mxu0
  %2419 = vmatprep.mubr.f32.mxu0 0.0
  %2420 = vmatmul.mubr.f32.gmra.mrb[0].mxu0 %v2136
  %v2421 = vpop.f32.mrb[0].mxu0
  %v2422 = vadd.f32 %v2091, %v2421
  %v2423 = vpop.f32.mrb[0].mxu0
  %2424 = vmatprep.mubr.f32.mxu0 0.0
  %2425 = vmatmul.mubr.f32.gmra.mrb[0].mxu0 %v2139
  %v2426 = vpop.f32.mrb[0].mxu0
  %v2427 = vadd.f32 %v2091, %v2426
  %v2428 = vpop.f32.mrb[0].mxu0
  %2429 = vmatprep.mubr.f32.mxu0 0.0
  %2430 = vmatmul.mubr.f32.gmra.mrb[0].mxu0 %v2142
  %v2431 = vpop.f32.mrb[0].mxu0
  %v2432 = vadd.f32 %v2091, %v2431
  %v2433 = vpop.f32.mrb[0].mxu0
  %2434 = vmatprep.mubr.f32.mxu0 0.0
  %2435 = vmatmul.mubr.f32.gmra.mrb[0].mxu0 %v2145
  %v2436 = vpop.f32.mrb[0].mxu0
  %v2437 = vadd.f32 %v2091, %v2436
  %v2438 = vpop.f32.mrb[0].mxu0
  %2439 = vmatprep.mubr.f32.mxu0 0.0
  %2440 = vmatmul.mubr.f32.gmra.mrb[0].mxu0 %v2148
  %v2441 = vpop.f32.mrb[0].mxu0
  %v2442 = vadd.f32 %v2091, %v2441
  %v2443 = vpop.f32.mrb[0].mxu0
  %2444 = vmatprep.mubr.f32.mxu0 0.0
  %2445 = vmatmul.mubr.f32.gmra.mrb[0].mxu0 %v2151
  %v2446 = vpop.f32.mrb[0].mxu0
  %v2447 = vadd.f32 %v2091, %v2446
  %v2448 = vpop.f32.mrb[0].mxu0
  %2449 = vmatprep.mubr.f32.mxu0 0.0
  %2450 = vmatmul.mubr.f32.gmra.mrb[0].mxu0 %v2154
  %v2451 = vpop.f32.mrb[0].mxu0
  %v2452 = vadd.f32 %v2091, %v2451
  %v2453 = vpop.f32.mrb[0].mxu0
  %2454 = vmatprep.mubr.f32.mxu0 0.0
  %2455 = vmatmul.mubr.f32.gmra.mrb[0].mxu0 %v2157
  %v2456 = vpop.f32.mrb[0].mxu0
  %v2457 = vadd.f32 %v2091, %v2456
  %v2458 = vpop.f32.mrb[0].mxu0
  %2459 = vmatprep.mubr.f32.mxu0 0.0
  %2460 = vmatmul.mubr.f32.gmra.mrb[0].mxu0 %v2160
  %v2461 = vpop.f32.mrb[0].mxu0
  %v2462 = vadd.f32 %v2091, %v2461
  %v2463 = vpop.f32.mrb[0].mxu0
  %2464 = vmatprep.mubr.f32.mxu0 0.0
  %2465 = vmatmul.mubr.f32.gmra.mrb[0].mxu0 %v2163
  %v2466 = vpop.f32.mrb[0].mxu0
  %v2467 = vadd.f32 %v2091, %v2466
  %v2468 = vpop.f32.mrb[0].mxu0
  %2469 = vmatprep.mubr.f32.mxu0 0.0
  %2470 = vmatmul.mubr.f32.gmra.mrb[0].mxu0 %v2166
  %v2471 = vpop.f32.mrb[0].mxu0
  %v2472 = vadd.f32 %v2091, %v2471
  %v2473 = vpop.f32.mrb[0].mxu0
  %2474 = vmatprep.mubr.f32.mxu0 0.0
  %2475 = vmatmul.mubr.f32.gmra.mrb[0].mxu0 %v2169
  %v2476 = vpop.f32.mrb[0].mxu0
  %v2477 = vadd.f32 %v2091, %v2476
  %v2478 = vpop.f32.mrb[0].mxu0
  %2479 = vmatprep.mubr.f32.mxu0 0.0
  %2480 = vmatmul.mubr.f32.gmra.mrb[0].mxu0 %v2172
  %v2481 = vpop.f32.mrb[0].mxu0
  %v2482 = vadd.f32 %v2091, %v2481
  %v2483 = vpop.f32.mrb[0].mxu0
  %2484 = vmatprep.mubr.f32.mxu0 0.0
  %2485 = vmatmul.mubr.f32.gmra.mrb[0].mxu0 %v2175
  %v2486 = vpop.f32.mrb[0].mxu0
  %v2487 = vadd.f32 %v2091, %v2486
  %v2488 = vpop.f32.mrb[0].mxu0
  %2489 = vmatprep.mubr.f32.mxu0 0.0
  %2490 = vmatmul.mubr.f32.gmra.mrb[0].mxu0 %v2178
  %v2491 = vpop.f32.mrb[0].mxu0
  %v2492 = vadd.f32 %v2091, %v2491
  %v2493 = vpop.f32.mrb[0].mxu0
  %2494 = vmatprep.mubr.f32.mxu0 0.0
  %2495 = vmatmul.mubr.f32.gmra.mrb[0].mxu0 %v2181
  %v2496 = vpop.f32.mrb[0].mxu0
  %v2497 = vadd.f32 %v2091, %v2496
  %v2498 = vpop.f32.mrb[0].mxu0
  %2499 = vmatprep.mubr.f32.mxu0 0.0
  %2500 = vmatmul.mubr.f32.gmra.mrb[0].mxu0 %v2184
  %v2501 = vpop.f32.mrb[0].mxu0
  %v2502 = vadd.f32 %v2091, %v2501
  %v2503 = vpop.f32.mrb[0].mxu0
  %2504 = vmatprep.mubr.f32.mxu0 0.0
  %2505 = vmatmul.mubr.f32.gmra.mrb[0].mxu0 %v2187
  %v2506 = vpop.f32.mrb[0].mxu0
  %v2507 = vadd.f32 %v2091, %v2506
  %v2508 = vpop.f32.mrb[0].mxu0
  %2509 = vmatprep.mubr.f32.mxu0 0.0
  %2510 = vmatmul.mubr.f32.gmra.mrb[0].mxu0 %v2190
  %v2511 = vpop.f32.mrb[0].mxu0
  %v2512 = vadd.f32 %v2091, %v2511
  %v2513 = vpop.f32.mrb[0].mxu0
  %2514 = vmatprep.mubr.f32.mxu0 0.0
  %2515 = vmatmul.mubr.f32.gmra.mrb[0].mxu0 %v2193
  %v2516 = vpop.f32.mrb[0].mxu0
  %v2517 = vadd.f32 %v2091, %v2516
  %v2518 = vpop.f32.mrb[0].mxu0
  %2519 = vmatprep.mubr.f32.mxu0 0.0
  %2520 = vmatmul.mubr.f32.gmra.mrb[0].mxu0 %v2196
  %v2521 = vpop.f32.mrb[0].mxu0
  %v2522 = vadd.f32 %v2091, %v2521
  %v2523 = vpop.f32.mrb[0].mxu0
  %2524 = vmatprep.mubr.f32.mxu0 0.0
  %2525 = vmatmul.mubr.f32.gmra.mrb[0].mxu0 %v2199
  %v2526 = vpop.f32.mrb[0].mxu0
  %v2527 = vadd.f32 %v2091, %v2526
  %v2528 = vpop.f32.mrb[0].mxu0
  %2529 = vmatprep.mubr.f32.mxu0 0.0
  %2530 = vmatmul.mubr.f32.gmra.mrb[0].mxu0 %v2202
  %v2531 = vpop.f32.mrb[0].mxu0
  %v2532 = vadd.f32 %v2091, %v2531
  %v2533 = vpop.f32.mrb[0].mxu0
  %2534 = vmatprep.mubr.f32.mxu0 0.0
  %2535 = vmatmul.mubr.f32.gmra.mrb[0].mxu0 %v2205
  %v2536 = vpop.f32.mrb[0].mxu0
  %v2537 = vadd.f32 %v2091, %v2536
  %v2538 = vpop.f32.mrb[0].mxu0
  %2539 = vmatprep.mubr.f32.mxu0 0.0
  %2540 = vmatmul.mubr.f32.gmra.mrb[0].mxu0 %v2208
  %v2541 = vpop.f32.mrb[0].mxu0
  %v2542 = vadd.f32 %v2091, %v2541
  %v2543 = vpop.f32.mrb[0].mxu0
  %2544 = vmatprep.mubr.f32.mxu0 0.0
  %2545 = vmatmul.mubr.f32.gmra.mrb[0].mxu0 %v2211
  %v2546 = vpop.f32.mrb[0].mxu0
  %v2547 = vadd.f32 %v2091, %v2546
  %v2548 = vpop.f32.mrb[0].mxu0
  %2549 = vmatprep.mubr.f32.mxu0 0.0
  %2550 = vmatmul.mubr.f32.gmra.mrb[0].mxu0 %v2214
  %v2551 = vpop.f32.mrb[0].mxu0
  %v2552 = vadd.f32 %v2091, %v2551
  %v2553 = vpop.f32.mrb[0].mxu0
  %2554 = vmatprep.mubr.f32.mxu0 0.0
  %2555 = vmatmul.mubr.f32.gmra.mrb[0].mxu0 %v2217
  %v2556 = vpop.f32.mrb[0].mxu0
  %v2557 = vadd.f32 %v2091, %v2556
  %v2558 = vpop.f32.mrb[0].mxu0
  %2559 = vmatprep.mubr.f32.mxu0 0.0
  %2560 = vmatmul.mubr.f32.gmra.mrb[0].mxu0 %v2220
  %v2561 = vpop.f32.mrb[0].mxu0
  %v2562 = vadd.f32 %v2091, %v2561
  %v2563 = vpop.f32.mrb[0].mxu0
  %2564 = vmatprep.mubr.f32.mxu0 0.0
  %2565 = vmatmul.mubr.f32.gmra.mrb[0].mxu0 %v2223
  %v2566 = vpop.f32.mrb[0].mxu0
  %v2567 = vadd.f32 %v2091, %v2566
  %v2568 = vpop.f32.mrb[0].mxu0
  %2569 = vmatprep.mubr.f32.mxu0 0.0
  %2570 = vmatmul.mubr.f32.gmra.mrb[0].mxu0 %v2226
  %v2571 = vpop.f32.mrb[0].mxu0
  %v2572 = vadd.f32 %v2091, %v2571
  %v2573 = vpop.f32.mrb[0].mxu0
  %2574 = vmatprep.mubr.f32.mxu0 0.0
  %2575 = vmatmul.mubr.f32.gmra.mrb[0].mxu0 %v2229
  %v2576 = vpop.f32.mrb[0].mxu0
  %v2577 = vadd.f32 %v2091, %v2576
  %v2578 = vpop.f32.mrb[0].mxu0
  %2579 = vmatprep.mubr.f32.mxu0 0.0
  %2580 = vmatmul.mubr.f32.gmra.mrb[0].mxu0 %v2232
  %v2581 = vpop.f32.mrb[0].mxu0
  %v2582 = vadd.f32 %v2091, %v2581
  %v2583 = vpop.f32.mrb[0].mxu0
  %2584 = vmatprep.mubr.f32.mxu0 0.0
  %2585 = vmatmul.mubr.f32.gmra.mrb[0].mxu0 %v2235
  %v2586 = vpop.f32.mrb[0].mxu0
  %v2587 = vadd.f32 %v2091, %v2586
  %v2588 = vpop.f32.mrb[0].mxu0
  %2589 = vmatprep.mubr.f32.mxu0 0.0
  %2590 = vmatmul.mubr.f32.gmra.mrb[0].mxu0 %v2238
  %v2591 = vpop.f32.mrb[0].mxu0
  %v2592 = vadd.f32 %v2091, %v2591
  %v2593 = vpop.f32.mrb[0].mxu0
  %2594 = vmatprep.mubr.f32.mxu0 0.0
  %2595 = vmatmul.mubr.f32.gmra.mrb[0].mxu0 %v2241
  %v2596 = vpop.f32.mrb[0].mxu0
  %v2597 = vadd.f32 %v2091, %v2596
  %v2598 = vpop.f32.mrb[0].mxu0
  %2599 = vmatprep.mubr.f32.mxu0 0.0
  %2600 = vmatmul.mubr.f32.gmra.mrb[0].mxu0 %v2244
  %v2601 = vpop.f32.mrb[0].mxu0
  %v2602 = vadd.f32 %v2091, %v2601
  %v2603 = vpop.f32.mrb[0].mxu0
  %2604 = vmatprep.mubr.f32.mxu0 0.0
  %2605 = vmatmul.mubr.f32.gmra.mrb[0].mxu0 %v2247
  %v2606 = vpop.f32.mrb[0].mxu0
  %v2607 = vadd.f32 %v2091, %v2606
  %v2608 = vpop.f32.mrb[0].mxu0
  %2609 = vmatprep.mubr.f32.mxu0 0.0
  %2610 = vmatmul.mubr.f32.gmra.mrb[0].mxu0 %v2250
  %v2611 = vpop.f32.mrb[0].mxu0
  %v2612 = vadd.f32 %v2091, %v2611
  %v2613 = vpop.f32.mrb[0].mxu0
  %2614 = vmatprep.mubr.f32.mxu0 0.0
  %2615 = vmatmul.mubr.f32.gmra.mrb[0].mxu0 %v2253
  %v2616 = vpop.f32.mrb[0].mxu0
  %v2617 = vadd.f32 %v2091, %v2616
  %v2618 = vpop.f32.mrb[0].mxu0
  %2619 = vmatprep.mubr.f32.mxu0 0.0
  %2620 = vmatmul.mubr.f32.gmra.mrb[0].mxu0 %v2256
  %v2621 = vpop.f32.mrb[0].mxu0
  %v2622 = vadd.f32 %v2091, %v2621
  %v2623 = vpop.f32.mrb[0].mxu0
  %2624 = vmatprep.mubr.f32.mxu0 0.0
  %2625 = vmatmul.mubr.f32.gmra.mrb[0].mxu0 %v2259
  %v2626 = vpop.f32.mrb[0].mxu0
  %v2627 = vadd.f32 %v2091, %v2626
  %v2628 = vpop.f32.mrb[0].mxu0
  %2629 = vmatprep.mubr.f32.mxu0 0.0
  %2630 = vmatmul.mubr.f32.gmra.mrb[0].mxu0 %v2262
  %v2631 = vpop.f32.mrb[0].mxu0
  %v2632 = vadd.f32 %v2091, %v2631
  %v2633 = vpop.f32.mrb[0].mxu0
  %2634 = vmatprep.mubr.f32.mxu0 0.0
  %2635 = vmatmul.mubr.f32.gmra.mrb[0].mxu0 %v2265
  %v2636 = vpop.f32.mrb[0].mxu0
  %v2637 = vadd.f32 %v2091, %v2636
  %v2638 = vpop.f32.mrb[0].mxu0
  %2639 = vmatprep.mubr.f32.mxu0 0.0
  %2640 = vmatmul.mubr.f32.gmra.mrb[0].mxu0 %v2268
  %v2641 = vpop.f32.mrb[0].mxu0
  %v2642 = vadd.f32 %v2091, %v2641
  %v2643 = vpop.f32.mrb[0].mxu0
  %2644 = vmatprep.mubr.f32.mxu0 0.0
  %2645 = vmatmul.mubr.f32.gmra.mrb[0].mxu0 %v2271
  %v2646 = vpop.f32.mrb[0].mxu0
  %v2647 = vadd.f32 %v2091, %v2646
  %v2648 = vpop.f32.mrb[0].mxu0
  %2649 = vmatprep.mubr.f32.mxu0 0.0
  %2650 = vmatmul.mubr.f32.gmra.mrb[0].mxu0 %v2274
  %v2651 = vpop.f32.mrb[0].mxu0
  %v2652 = vadd.f32 %v2091, %v2651
  %v2653 = vpop.f32.mrb[0].mxu0
  %2654 = vmatprep.mubr.f32.mxu0 0.0
  %2655 = vmatmul.mubr.f32.gmra.mrb[0].mxu0 %v2277
  %v2656 = vpop.f32.mrb[0].mxu0
  %v2657 = vadd.f32 %v2091, %v2656
  %v2658 = vpop.f32.mrb[0].mxu0
  %2659 = vmatprep.mubr.f32.mxu0 0.0
  %2660 = vmatmul.mubr.f32.gmra.mrb[0].mxu0 %v2280
  %v2661 = vpop.f32.mrb[0].mxu0
  %v2662 = vadd.f32 %v2091, %v2661
  %v2663 = vpop.f32.mrb[0].mxu0
  %2664 = vmatprep.mubr.f32.mxu0 0.0
  %2665 = vmatmul.mubr.f32.gmra.mrb[0].mxu0 %v2283
  %v2666 = vpop.f32.mrb[0].mxu0
  %v2667 = vadd.f32 %v2091, %v2666
  %v2668 = vpop.f32.mrb[0].mxu0
  %2669 = vdwg.mxu0
  %v2670 = vadd.f32 %v1045, %v2352
  %v2671 = vadd.f32 %v1050, %v2357
  %v2672 = vadd.f32 %v1055, %v2362
  %v2673 = vadd.f32 %v1060, %v2367
  %v2674 = vadd.f32 %v1065, %v2372
  %v2675 = vadd.f32 %v1070, %v2377
  %v2676 = vadd.f32 %v1075, %v2382
  %v2677 = vadd.f32 %v1080, %v2387
  %v2678 = vadd.f32 %v1085, %v2392
  %v2679 = vadd.f32 %v1090, %v2397
  %v2680 = vadd.f32 %v1095, %v2402
  %v2681 = vadd.f32 %v1100, %v2407
  %v2682 = vadd.f32 %v1105, %v2412
  %v2683 = vadd.f32 %v1110, %v2417
  %v2684 = vadd.f32 %v1115, %v2422
  %v2685 = vadd.f32 %v1120, %v2427
  %v2686 = vadd.f32 %v1125, %v2432
  %v2687 = vadd.f32 %v1130, %v2437
  %v2688 = vadd.f32 %v1135, %v2442
  %v2689 = vadd.f32 %v1140, %v2447
  %v2690 = vadd.f32 %v1145, %v2452
  %v2691 = vadd.f32 %v1150, %v2457
  %v2692 = vadd.f32 %v1155, %v2462
  %v2693 = vadd.f32 %v1160, %v2467
  %v2694 = vadd.f32 %v1165, %v2472
  %v2695 = vadd.f32 %v1170, %v2477
  %v2696 = vadd.f32 %v1175, %v2482
  %v2697 = vadd.f32 %v1180, %v2487
  %v2698 = vadd.f32 %v1185, %v2492
  %v2699 = vadd.f32 %v1190, %v2497
  %v2700 = vadd.f32 %v1195, %v2502
  %v2701 = vadd.f32 %v1200, %v2507
  %v2702 = vadd.f32 %v1205, %v2512
  %v2703 = vadd.f32 %v1210, %v2517
  %v2704 = vadd.f32 %v1215, %v2522
  %v2705 = vadd.f32 %v1220, %v2527
  %v2706 = vadd.f32 %v1225, %v2532
  %v2707 = vadd.f32 %v1230, %v2537
  %v2708 = vadd.f32 %v1235, %v2542
  %v2709 = vadd.f32 %v1240, %v2547
  %v2710 = vadd.f32 %v1245, %v2552
  %v2711 = vadd.f32 %v1250, %v2557
  %v2712 = vadd.f32 %v1255, %v2562
  %v2713 = vadd.f32 %v1260, %v2567
  %v2714 = vadd.f32 %v1265, %v2572
  %v2715 = vadd.f32 %v1270, %v2577
  %v2716 = vadd.f32 %v1275, %v2582
  %v2717 = vadd.f32 %v1280, %v2587
  %v2718 = vadd.f32 %v1285, %v2592
  %v2719 = vadd.f32 %v1290, %v2597
  %v2720 = vadd.f32 %v1295, %v2602
  %v2721 = vadd.f32 %v1300, %v2607
  %v2722 = vadd.f32 %v1305, %v2612
  %v2723 = vadd.f32 %v1310, %v2617
  %v2724 = vadd.f32 %v1315, %v2622
  %v2725 = vadd.f32 %v1320, %v2627
  %v2726 = vadd.f32 %v1325, %v2632
  %v2727 = vadd.f32 %v1330, %v2637
  %v2728 = vadd.f32 %v1335, %v2642
  %v2729 = vadd.f32 %v1340, %v2647
  %v2730 = vadd.f32 %v1345, %v2652
  %v2731 = vadd.f32 %v1350, %v2657
  %v2732 = vadd.f32 %v1355, %v2662
  %v2733 = vadd.f32 %v1360, %v2667
  %v2734 = vld [vmem:[%s10] sm:$0xff]
  %v2735 = vld [vmem:[%s10 + $0x8] sm:$0xff]
  %v2736 = vld [vmem:[%s10 + $0x10] sm:$0xff]
  %v2737 = vld [vmem:[%s10 + $0x18] sm:$0xff]
  %v2738 = vld [vmem:[%s10 + $0x20] sm:$0xff]
  %v2739 = vld [vmem:[%s10 + $0x28] sm:$0xff]
  %v2740 = vld [vmem:[%s10 + $0x30] sm:$0xff]
  %v2741 = vld [vmem:[%s10 + $0x38] sm:$0xff]
  %v2742 = vld [vmem:[%s11] sm:$0x1]
  %v2744 = vlaneseq
  %v2745 = vshrl.u32 %v2744, 7
  %v2746 = vsub.s32 0, %v2745
  %v2747 = vrot.slane %v2742, %v2746
  %v2750 = vsel %vm785, %v2670, 0
  %v2753 = vsel %vm785, %v2671, 0
  %v2756 = vsel %vm785, %v2672, 0
  %v2759 = vsel %vm785, %v2673, 0
  %v2762 = vsel %vm785, %v2674, 0
  %v2765 = vsel %vm785, %v2675, 0
  %v2768 = vsel %vm785, %v2676, 0
  %v2771 = vsel %vm785, %v2677, 0
  %v2774 = vsel %vm785, %v2678, 0
  %v2777 = vsel %vm785, %v2679, 0
  %v2780 = vsel %vm785, %v2680, 0
  %v2783 = vsel %vm785, %v2681, 0
  %v2786 = vsel %vm785, %v2682, 0
  %v2789 = vsel %vm785, %v2683, 0
  %v2792 = vsel %vm785, %v2684, 0
  %v2795 = vsel %vm785, %v2685, 0
  %v2798 = vsel %vm785, %v2686, 0
  %v2801 = vsel %vm785, %v2687, 0
  %v2804 = vsel %vm785, %v2688, 0
  %v2807 = vsel %vm785, %v2689, 0
  %v2810 = vsel %vm785, %v2690, 0
  %v2813 = vsel %vm785, %v2691, 0
  %v2816 = vsel %vm785, %v2692, 0
  %v2819 = vsel %vm785, %v2693, 0
  %v2822 = vsel %vm785, %v2694, 0
  %v2825 = vsel %vm785, %v2695, 0
  %v2828 = vsel %vm785, %v2696, 0
  %v2831 = vsel %vm785, %v2697, 0
  %v2834 = vsel %vm785, %v2698, 0
  %v2837 = vsel %vm785, %v2699, 0
  %v2840 = vsel %vm785, %v2700, 0
  %v2843 = vsel %vm785, %v2701, 0
  %v2846 = vsel %vm785, %v2702, 0
  %v2849 = vsel %vm785, %v2703, 0
  %v2852 = vsel %vm785, %v2704, 0
  %v2855 = vsel %vm785, %v2705, 0
  %v2858 = vsel %vm785, %v2706, 0
  %v2861 = vsel %vm785, %v2707, 0
  %v2864 = vsel %vm785, %v2708, 0
  %v2867 = vsel %vm785, %v2709, 0
  %v2870 = vsel %vm785, %v2710, 0
  %v2873 = vsel %vm785, %v2711, 0
  %v2876 = vsel %vm785, %v2712, 0
  %v2879 = vsel %vm785, %v2713, 0
  %v2882 = vsel %vm785, %v2714, 0
  %v2885 = vsel %vm785, %v2715, 0
  %v2888 = vsel %vm785, %v2716, 0
  %v2891 = vsel %vm785, %v2717, 0
  %v2894 = vsel %vm785, %v2718, 0
  %v2897 = vsel %vm785, %v2719, 0
  %v2900 = vsel %vm785, %v2720, 0
  %v2903 = vsel %vm785, %v2721, 0
  %v2906 = vsel %vm785, %v2722, 0
  %v2909 = vsel %vm785, %v2723, 0
  %v2912 = vsel %vm785, %v2724, 0
  %v2915 = vsel %vm785, %v2725, 0
  %v2918 = vsel %vm785, %v2726, 0
  %v2921 = vsel %vm785, %v2727, 0
  %v2924 = vsel %vm785, %v2728, 0
  %v2927 = vsel %vm785, %v2729, 0
  %v2930 = vsel %vm785, %v2730, 0
  %v2933 = vsel %vm785, %v2731, 0
  %v2936 = vsel %vm785, %v2732, 0
  %v2939 = vsel %vm785, %v2733, 0
  %2941 = vmatprep.subr.mxu0 0.0
  %2942 = vmatpush1.msra.mxu0 %v2734
  %2943 = vmatprep.subr.mxu0 0.0
  %2944 = vmatpush1.msra.mxu0 %v2735
  %2945 = vmatprep.subr.mxu0 0.0
  %2946 = vmatpush1.msra.mxu0 %v2736
  %2947 = vmatprep.subr.mxu0 0.0
  %2948 = vmatpush1.msra.mxu0 %v2737
  %2949 = vmatprep.subr.mxu0 0.0
  %2950 = vmatpush1.msra.mxu0 %v2738
  %2951 = vmatprep.subr.mxu0 0.0
  %2952 = vmatpush1.msra.mxu0 %v2739
  %2953 = vmatprep.subr.mxu0 0.0
  %2954 = vmatpush1.msra.mxu0 %v2740
  %2955 = vmatprep.subr.mxu0 0.0
  %2956 = vmatpush1.msra.mxu0 %v2741
  %2957 = vmatprep.subr.mxu0 0.0
  %2958 = vmatpush1.msra.mxu0 0.0
  %2959 = vmatprep.subr.mxu0 0.0
  %2960 = vmatpush1.msra.mxu0 0.0
  %2961 = vmatprep.subr.mxu0 0.0
  %2962 = vmatpush1.msra.mxu0 0.0
  %2963 = vmatprep.subr.mxu0 0.0
  %2964 = vmatpush1.msra.mxu0 0.0
  %2965 = vmatprep.subr.mxu0 0.0
  %2966 = vmatpush1.msra.mxu0 0.0
  %2967 = vmatprep.subr.mxu0 0.0
  %2968 = vmatpush1.msra.mxu0 0.0
  %2969 = vmatprep.subr.mxu0 0.0
  %2970 = vmatpush1.msra.mxu0 0.0
  %2971 = vmatprep.subr.mxu0 0.0
  %2972 = vmatpush1.msra.mxu0 0.0
  %2973 = vmatprep.subr.mxu0 0.0
  %2974 = vmatpush1.msra.mxu0 0.0
  %2975 = vmatprep.subr.mxu0 0.0
  %2976 = vmatpush1.msra.mxu0 0.0
  %2977 = vmatprep.subr.mxu0 0.0
  %2978 = vmatpush1.msra.mxu0 0.0
  %2979 = vmatprep.subr.mxu0 0.0
  %2980 = vmatpush1.msra.mxu0 0.0
  %2981 = vmatprep.subr.mxu0 0.0
  %2982 = vmatpush1.msra.mxu0 0.0
  %2983 = vmatprep.subr.mxu0 0.0
  %2984 = vmatpush1.msra.mxu0 0.0
  %2985 = vmatprep.subr.mxu0 0.0
  %2986 = vmatpush1.msra.mxu0 0.0
  %2987 = vmatprep.subr.mxu0 0.0
  %2988 = vmatpush1.msra.mxu0 0.0
  %2989 = vmatprep.subr.mxu0 0.0
  %2990 = vmatpush1.msra.mxu0 0.0
  %2991 = vmatprep.subr.mxu0 0.0
  %2992 = vmatpush1.msra.mxu0 0.0
  %2993 = vmatprep.subr.mxu0 0.0
  %2994 = vmatpush1.msra.mxu0 0.0
  %2995 = vmatprep.subr.mxu0 0.0
  %2996 = vmatpush1.msra.mxu0 0.0
  %2997 = vmatprep.subr.mxu0 0.0
  %2998 = vmatpush1.msra.mxu0 0.0
  %2999 = vmatprep.subr.mxu0 0.0
  %3000 = vmatpush1.msra.mxu0 0.0
  %3001 = vmatprep.subr.mxu0 0.0
  %3002 = vmatpush1.msra.mxu0 0.0
  %3003 = vmatprep.subr.mxu0 0.0
  %3004 = vmatpush1.msra.mxu0 0.0
  %3005 = vmatprep.mubr.f32.mxu0 0.0
  %3006 = vmatmul.mubr.f32.gmra.mrb[0].mxu0 %v2750
  %v3007 = vpop.f32.mrb[0].mxu0
  %v3008 = vadd.f32 %v2747, %v3007
  %v3009 = vpop.f32.mrb[0].mxu0
  %3010 = vmatprep.mubr.f32.mxu0 0.0
  %3011 = vmatmul.mubr.f32.gmra.mrb[0].mxu0 %v2753
  %v3012 = vpop.f32.mrb[0].mxu0
  %v3013 = vadd.f32 %v2747, %v3012
  %v3014 = vpop.f32.mrb[0].mxu0
  %3015 = vmatprep.mubr.f32.mxu0 0.0
  %3016 = vmatmul.mubr.f32.gmra.mrb[0].mxu0 %v2756
  %v3017 = vpop.f32.mrb[0].mxu0
  %v3018 = vadd.f32 %v2747, %v3017
  %v3019 = vpop.f32.mrb[0].mxu0
  %3020 = vmatprep.mubr.f32.mxu0 0.0
  %3021 = vmatmul.mubr.f32.gmra.mrb[0].mxu0 %v2759
  %v3022 = vpop.f32.mrb[0].mxu0
  %v3023 = vadd.f32 %v2747, %v3022
  %v3024 = vpop.f32.mrb[0].mxu0
  %3025 = vmatprep.mubr.f32.mxu0 0.0
  %3026 = vmatmul.mubr.f32.gmra.mrb[0].mxu0 %v2762
  %v3027 = vpop.f32.mrb[0].mxu0
  %v3028 = vadd.f32 %v2747, %v3027
  %v3029 = vpop.f32.mrb[0].mxu0
  %3030 = vmatprep.mubr.f32.mxu0 0.0
  %3031 = vmatmul.mubr.f32.gmra.mrb[0].mxu0 %v2765
  %v3032 = vpop.f32.mrb[0].mxu0
  %v3033 = vadd.f32 %v2747, %v3032
  %v3034 = vpop.f32.mrb[0].mxu0
  %3035 = vmatprep.mubr.f32.mxu0 0.0
  %3036 = vmatmul.mubr.f32.gmra.mrb[0].mxu0 %v2768
  %v3037 = vpop.f32.mrb[0].mxu0
  %v3038 = vadd.f32 %v2747, %v3037
  %v3039 = vpop.f32.mrb[0].mxu0
  %3040 = vmatprep.mubr.f32.mxu0 0.0
  %3041 = vmatmul.mubr.f32.gmra.mrb[0].mxu0 %v2771
  %v3042 = vpop.f32.mrb[0].mxu0
  %v3043 = vadd.f32 %v2747, %v3042
  %v3044 = vpop.f32.mrb[0].mxu0
  %3045 = vmatprep.mubr.f32.mxu0 0.0
  %3046 = vmatmul.mubr.f32.gmra.mrb[0].mxu0 %v2774
  %v3047 = vpop.f32.mrb[0].mxu0
  %v3048 = vadd.f32 %v2747, %v3047
  %v3049 = vpop.f32.mrb[0].mxu0
  %3050 = vmatprep.mubr.f32.mxu0 0.0
  %3051 = vmatmul.mubr.f32.gmra.mrb[0].mxu0 %v2777
  %v3052 = vpop.f32.mrb[0].mxu0
  %v3053 = vadd.f32 %v2747, %v3052
  %v3054 = vpop.f32.mrb[0].mxu0
  %3055 = vmatprep.mubr.f32.mxu0 0.0
  %3056 = vmatmul.mubr.f32.gmra.mrb[0].mxu0 %v2780
  %v3057 = vpop.f32.mrb[0].mxu0
  %v3058 = vadd.f32 %v2747, %v3057
  %v3059 = vpop.f32.mrb[0].mxu0
  %3060 = vmatprep.mubr.f32.mxu0 0.0
  %3061 = vmatmul.mubr.f32.gmra.mrb[0].mxu0 %v2783
  %v3062 = vpop.f32.mrb[0].mxu0
  %v3063 = vadd.f32 %v2747, %v3062
  %v3064 = vpop.f32.mrb[0].mxu0
  %3065 = vmatprep.mubr.f32.mxu0 0.0
  %3066 = vmatmul.mubr.f32.gmra.mrb[0].mxu0 %v2786
  %v3067 = vpop.f32.mrb[0].mxu0
  %v3068 = vadd.f32 %v2747, %v3067
  %v3069 = vpop.f32.mrb[0].mxu0
  %3070 = vmatprep.mubr.f32.mxu0 0.0
  %3071 = vmatmul.mubr.f32.gmra.mrb[0].mxu0 %v2789
  %v3072 = vpop.f32.mrb[0].mxu0
  %v3073 = vadd.f32 %v2747, %v3072
  %v3074 = vpop.f32.mrb[0].mxu0
  %3075 = vmatprep.mubr.f32.mxu0 0.0
  %3076 = vmatmul.mubr.f32.gmra.mrb[0].mxu0 %v2792
  %v3077 = vpop.f32.mrb[0].mxu0
  %v3078 = vadd.f32 %v2747, %v3077
  %v3079 = vpop.f32.mrb[0].mxu0
  %3080 = vmatprep.mubr.f32.mxu0 0.0
  %3081 = vmatmul.mubr.f32.gmra.mrb[0].mxu0 %v2795
  %v3082 = vpop.f32.mrb[0].mxu0
  %v3083 = vadd.f32 %v2747, %v3082
  %v3084 = vpop.f32.mrb[0].mxu0
  %3085 = vmatprep.mubr.f32.mxu0 0.0
  %3086 = vmatmul.mubr.f32.gmra.mrb[0].mxu0 %v2798
  %v3087 = vpop.f32.mrb[0].mxu0
  %v3088 = vadd.f32 %v2747, %v3087
  %v3089 = vpop.f32.mrb[0].mxu0
  %3090 = vmatprep.mubr.f32.mxu0 0.0
  %3091 = vmatmul.mubr.f32.gmra.mrb[0].mxu0 %v2801
  %v3092 = vpop.f32.mrb[0].mxu0
  %v3093 = vadd.f32 %v2747, %v3092
  %v3094 = vpop.f32.mrb[0].mxu0
  %3095 = vmatprep.mubr.f32.mxu0 0.0
  %3096 = vmatmul.mubr.f32.gmra.mrb[0].mxu0 %v2804
  %v3097 = vpop.f32.mrb[0].mxu0
  %v3098 = vadd.f32 %v2747, %v3097
  %v3099 = vpop.f32.mrb[0].mxu0
  %3100 = vmatprep.mubr.f32.mxu0 0.0
  %3101 = vmatmul.mubr.f32.gmra.mrb[0].mxu0 %v2807
  %v3102 = vpop.f32.mrb[0].mxu0
  %v3103 = vadd.f32 %v2747, %v3102
  %v3104 = vpop.f32.mrb[0].mxu0
  %3105 = vmatprep.mubr.f32.mxu0 0.0
  %3106 = vmatmul.mubr.f32.gmra.mrb[0].mxu0 %v2810
  %v3107 = vpop.f32.mrb[0].mxu0
  %v3108 = vadd.f32 %v2747, %v3107
  %v3109 = vpop.f32.mrb[0].mxu0
  %3110 = vmatprep.mubr.f32.mxu0 0.0
  %3111 = vmatmul.mubr.f32.gmra.mrb[0].mxu0 %v2813
  %v3112 = vpop.f32.mrb[0].mxu0
  %v3113 = vadd.f32 %v2747, %v3112
  %v3114 = vpop.f32.mrb[0].mxu0
  %3115 = vmatprep.mubr.f32.mxu0 0.0
  %3116 = vmatmul.mubr.f32.gmra.mrb[0].mxu0 %v2816
  %v3117 = vpop.f32.mrb[0].mxu0
  %v3118 = vadd.f32 %v2747, %v3117
  %v3119 = vpop.f32.mrb[0].mxu0
  %3120 = vmatprep.mubr.f32.mxu0 0.0
  %3121 = vmatmul.mubr.f32.gmra.mrb[0].mxu0 %v2819
  %v3122 = vpop.f32.mrb[0].mxu0
  %v3123 = vadd.f32 %v2747, %v3122
  %v3124 = vpop.f32.mrb[0].mxu0
  %3125 = vmatprep.mubr.f32.mxu0 0.0
  %3126 = vmatmul.mubr.f32.gmra.mrb[0].mxu0 %v2822
  %v3127 = vpop.f32.mrb[0].mxu0
  %v3128 = vadd.f32 %v2747, %v3127
  %v3129 = vpop.f32.mrb[0].mxu0
  %3130 = vmatprep.mubr.f32.mxu0 0.0
  %3131 = vmatmul.mubr.f32.gmra.mrb[0].mxu0 %v2825
  %v3132 = vpop.f32.mrb[0].mxu0
  %v3133 = vadd.f32 %v2747, %v3132
  %v3134 = vpop.f32.mrb[0].mxu0
  %3135 = vmatprep.mubr.f32.mxu0 0.0
  %3136 = vmatmul.mubr.f32.gmra.mrb[0].mxu0 %v2828
  %v3137 = vpop.f32.mrb[0].mxu0
  %v3138 = vadd.f32 %v2747, %v3137
  %v3139 = vpop.f32.mrb[0].mxu0
  %3140 = vmatprep.mubr.f32.mxu0 0.0
  %3141 = vmatmul.mubr.f32.gmra.mrb[0].mxu0 %v2831
  %v3142 = vpop.f32.mrb[0].mxu0
  %v3143 = vadd.f32 %v2747, %v3142
  %v3144 = vpop.f32.mrb[0].mxu0
  %3145 = vmatprep.mubr.f32.mxu0 0.0
  %3146 = vmatmul.mubr.f32.gmra.mrb[0].mxu0 %v2834
  %v3147 = vpop.f32.mrb[0].mxu0
  %v3148 = vadd.f32 %v2747, %v3147
  %v3149 = vpop.f32.mrb[0].mxu0
  %3150 = vmatprep.mubr.f32.mxu0 0.0
  %3151 = vmatmul.mubr.f32.gmra.mrb[0].mxu0 %v2837
  %v3152 = vpop.f32.mrb[0].mxu0
  %v3153 = vadd.f32 %v2747, %v3152
  %v3154 = vpop.f32.mrb[0].mxu0
  %3155 = vmatprep.mubr.f32.mxu0 0.0
  %3156 = vmatmul.mubr.f32.gmra.mrb[0].mxu0 %v2840
  %v3157 = vpop.f32.mrb[0].mxu0
  %v3158 = vadd.f32 %v2747, %v3157
  %v3159 = vpop.f32.mrb[0].mxu0
  %3160 = vmatprep.mubr.f32.mxu0 0.0
  %3161 = vmatmul.mubr.f32.gmra.mrb[0].mxu0 %v2843
  %v3162 = vpop.f32.mrb[0].mxu0
  %v3163 = vadd.f32 %v2747, %v3162
  %v3164 = vpop.f32.mrb[0].mxu0
  %3165 = vmatprep.mubr.f32.mxu0 0.0
  %3166 = vmatmul.mubr.f32.gmra.mrb[0].mxu0 %v2846
  %v3167 = vpop.f32.mrb[0].mxu0
  %v3168 = vadd.f32 %v2747, %v3167
  %v3169 = vpop.f32.mrb[0].mxu0
  %3170 = vmatprep.mubr.f32.mxu0 0.0
  %3171 = vmatmul.mubr.f32.gmra.mrb[0].mxu0 %v2849
  %v3172 = vpop.f32.mrb[0].mxu0
  %v3173 = vadd.f32 %v2747, %v3172
  %v3174 = vpop.f32.mrb[0].mxu0
  %3175 = vmatprep.mubr.f32.mxu0 0.0
  %3176 = vmatmul.mubr.f32.gmra.mrb[0].mxu0 %v2852
  %v3177 = vpop.f32.mrb[0].mxu0
  %v3178 = vadd.f32 %v2747, %v3177
  %v3179 = vpop.f32.mrb[0].mxu0
  %3180 = vmatprep.mubr.f32.mxu0 0.0
  %3181 = vmatmul.mubr.f32.gmra.mrb[0].mxu0 %v2855
  %v3182 = vpop.f32.mrb[0].mxu0
  %v3183 = vadd.f32 %v2747, %v3182
  %v3184 = vpop.f32.mrb[0].mxu0
  %3185 = vmatprep.mubr.f32.mxu0 0.0
  %3186 = vmatmul.mubr.f32.gmra.mrb[0].mxu0 %v2858
  %v3187 = vpop.f32.mrb[0].mxu0
  %v3188 = vadd.f32 %v2747, %v3187
  %v3189 = vpop.f32.mrb[0].mxu0
  %3190 = vmatprep.mubr.f32.mxu0 0.0
  %3191 = vmatmul.mubr.f32.gmra.mrb[0].mxu0 %v2861
  %v3192 = vpop.f32.mrb[0].mxu0
  %v3193 = vadd.f32 %v2747, %v3192
  %v3194 = vpop.f32.mrb[0].mxu0
  %3195 = vmatprep.mubr.f32.mxu0 0.0
  %3196 = vmatmul.mubr.f32.gmra.mrb[0].mxu0 %v2864
  %v3197 = vpop.f32.mrb[0].mxu0
  %v3198 = vadd.f32 %v2747, %v3197
  %v3199 = vpop.f32.mrb[0].mxu0
  %3200 = vmatprep.mubr.f32.mxu0 0.0
  %3201 = vmatmul.mubr.f32.gmra.mrb[0].mxu0 %v2867
  %v3202 = vpop.f32.mrb[0].mxu0
  %v3203 = vadd.f32 %v2747, %v3202
  %v3204 = vpop.f32.mrb[0].mxu0
  %3205 = vmatprep.mubr.f32.mxu0 0.0
  %3206 = vmatmul.mubr.f32.gmra.mrb[0].mxu0 %v2870
  %v3207 = vpop.f32.mrb[0].mxu0
  %v3208 = vadd.f32 %v2747, %v3207
  %v3209 = vpop.f32.mrb[0].mxu0
  %3210 = vmatprep.mubr.f32.mxu0 0.0
  %3211 = vmatmul.mubr.f32.gmra.mrb[0].mxu0 %v2873
  %v3212 = vpop.f32.mrb[0].mxu0
  %v3213 = vadd.f32 %v2747, %v3212
  %v3214 = vpop.f32.mrb[0].mxu0
  %3215 = vmatprep.mubr.f32.mxu0 0.0
  %3216 = vmatmul.mubr.f32.gmra.mrb[0].mxu0 %v2876
  %v3217 = vpop.f32.mrb[0].mxu0
  %v3218 = vadd.f32 %v2747, %v3217
  %v3219 = vpop.f32.mrb[0].mxu0
  %3220 = vmatprep.mubr.f32.mxu0 0.0
  %3221 = vmatmul.mubr.f32.gmra.mrb[0].mxu0 %v2879
  %v3222 = vpop.f32.mrb[0].mxu0
  %v3223 = vadd.f32 %v2747, %v3222
  %v3224 = vpop.f32.mrb[0].mxu0
  %3225 = vmatprep.mubr.f32.mxu0 0.0
  %3226 = vmatmul.mubr.f32.gmra.mrb[0].mxu0 %v2882
  %v3227 = vpop.f32.mrb[0].mxu0
  %v3228 = vadd.f32 %v2747, %v3227
  %v3229 = vpop.f32.mrb[0].mxu0
  %3230 = vmatprep.mubr.f32.mxu0 0.0
  %3231 = vmatmul.mubr.f32.gmra.mrb[0].mxu0 %v2885
  %v3232 = vpop.f32.mrb[0].mxu0
  %v3233 = vadd.f32 %v2747, %v3232
  %v3234 = vpop.f32.mrb[0].mxu0
  %3235 = vmatprep.mubr.f32.mxu0 0.0
  %3236 = vmatmul.mubr.f32.gmra.mrb[0].mxu0 %v2888
  %v3237 = vpop.f32.mrb[0].mxu0
  %v3238 = vadd.f32 %v2747, %v3237
  %v3239 = vpop.f32.mrb[0].mxu0
  %3240 = vmatprep.mubr.f32.mxu0 0.0
  %3241 = vmatmul.mubr.f32.gmra.mrb[0].mxu0 %v2891
  %v3242 = vpop.f32.mrb[0].mxu0
  %v3243 = vadd.f32 %v2747, %v3242
  %v3244 = vpop.f32.mrb[0].mxu0
  %3245 = vmatprep.mubr.f32.mxu0 0.0
  %3246 = vmatmul.mubr.f32.gmra.mrb[0].mxu0 %v2894
  %v3247 = vpop.f32.mrb[0].mxu0
  %v3248 = vadd.f32 %v2747, %v3247
  %v3249 = vpop.f32.mrb[0].mxu0
  %3250 = vmatprep.mubr.f32.mxu0 0.0
  %3251 = vmatmul.mubr.f32.gmra.mrb[0].mxu0 %v2897
  %v3252 = vpop.f32.mrb[0].mxu0
  %v3253 = vadd.f32 %v2747, %v3252
  %v3254 = vpop.f32.mrb[0].mxu0
  %3255 = vmatprep.mubr.f32.mxu0 0.0
  %3256 = vmatmul.mubr.f32.gmra.mrb[0].mxu0 %v2900
  %v3257 = vpop.f32.mrb[0].mxu0
  %v3258 = vadd.f32 %v2747, %v3257
  %v3259 = vpop.f32.mrb[0].mxu0
  %3260 = vmatprep.mubr.f32.mxu0 0.0
  %3261 = vmatmul.mubr.f32.gmra.mrb[0].mxu0 %v2903
  %v3262 = vpop.f32.mrb[0].mxu0
  %v3263 = vadd.f32 %v2747, %v3262
  %v3264 = vpop.f32.mrb[0].mxu0
  %3265 = vmatprep.mubr.f32.mxu0 0.0
  %3266 = vmatmul.mubr.f32.gmra.mrb[0].mxu0 %v2906
  %v3267 = vpop.f32.mrb[0].mxu0
  %v3268 = vadd.f32 %v2747, %v3267
  %v3269 = vpop.f32.mrb[0].mxu0
  %3270 = vmatprep.mubr.f32.mxu0 0.0
  %3271 = vmatmul.mubr.f32.gmra.mrb[0].mxu0 %v2909
  %v3272 = vpop.f32.mrb[0].mxu0
  %v3273 = vadd.f32 %v2747, %v3272
  %v3274 = vpop.f32.mrb[0].mxu0
  %3275 = vmatprep.mubr.f32.mxu0 0.0
  %3276 = vmatmul.mubr.f32.gmra.mrb[0].mxu0 %v2912
  %v3277 = vpop.f32.mrb[0].mxu0
  %v3278 = vadd.f32 %v2747, %v3277
  %v3279 = vpop.f32.mrb[0].mxu0
  %3280 = vmatprep.mubr.f32.mxu0 0.0
  %3281 = vmatmul.mubr.f32.gmra.mrb[0].mxu0 %v2915
  %v3282 = vpop.f32.mrb[0].mxu0
  %v3283 = vadd.f32 %v2747, %v3282
  %v3284 = vpop.f32.mrb[0].mxu0
  %3285 = vmatprep.mubr.f32.mxu0 0.0
  %3286 = vmatmul.mubr.f32.gmra.mrb[0].mxu0 %v2918
  %v3287 = vpop.f32.mrb[0].mxu0
  %v3288 = vadd.f32 %v2747, %v3287
  %v3289 = vpop.f32.mrb[0].mxu0
  %3290 = vmatprep.mubr.f32.mxu0 0.0
  %3291 = vmatmul.mubr.f32.gmra.mrb[0].mxu0 %v2921
  %v3292 = vpop.f32.mrb[0].mxu0
  %v3293 = vadd.f32 %v2747, %v3292
  %v3294 = vpop.f32.mrb[0].mxu0
  %3295 = vmatprep.mubr.f32.mxu0 0.0
  %3296 = vmatmul.mubr.f32.gmra.mrb[0].mxu0 %v2924
  %v3297 = vpop.f32.mrb[0].mxu0
  %v3298 = vadd.f32 %v2747, %v3297
  %v3299 = vpop.f32.mrb[0].mxu0
  %3300 = vmatprep.mubr.f32.mxu0 0.0
  %3301 = vmatmul.mubr.f32.gmra.mrb[0].mxu0 %v2927
  %v3302 = vpop.f32.mrb[0].mxu0
  %v3303 = vadd.f32 %v2747, %v3302
  %v3304 = vpop.f32.mrb[0].mxu0
  %3305 = vmatprep.mubr.f32.mxu0 0.0
  %3306 = vmatmul.mubr.f32.gmra.mrb[0].mxu0 %v2930
  %v3307 = vpop.f32.mrb[0].mxu0
  %v3308 = vadd.f32 %v2747, %v3307
  %v3309 = vpop.f32.mrb[0].mxu0
  %3310 = vmatprep.mubr.f32.mxu0 0.0
  %3311 = vmatmul.mubr.f32.gmra.mrb[0].mxu0 %v2933
  %v3312 = vpop.f32.mrb[0].mxu0
  %v3313 = vadd.f32 %v2747, %v3312
  %v3314 = vpop.f32.mrb[0].mxu0
  %3315 = vmatprep.mubr.f32.mxu0 0.0
  %3316 = vmatmul.mubr.f32.gmra.mrb[0].mxu0 %v2936
  %v3317 = vpop.f32.mrb[0].mxu0
  %v3318 = vadd.f32 %v2747, %v3317
  %v3319 = vpop.f32.mrb[0].mxu0
  %3320 = vmatprep.mubr.f32.mxu0 0.0
  %3321 = vmatmul.mubr.f32.gmra.mrb[0].mxu0 %v2939
  %v3322 = vpop.f32.mrb[0].mxu0
  %v3323 = vadd.f32 %v2747, %v3322
  %v3324 = vpop.f32.mrb[0].mxu0
  %3325 = vdwg.mxu0
  %v3326 = vmax.f32 %v3008, 0.0
  %v3327 = vmax.f32 %v3013, 0.0
  %v3328 = vmax.f32 %v3018, 0.0
  %v3329 = vmax.f32 %v3023, 0.0
  %v3330 = vmax.f32 %v3028, 0.0
  %v3331 = vmax.f32 %v3033, 0.0
  %v3332 = vmax.f32 %v3038, 0.0
  %v3333 = vmax.f32 %v3043, 0.0
  %v3334 = vmax.f32 %v3048, 0.0
  %v3335 = vmax.f32 %v3053, 0.0
  %v3336 = vmax.f32 %v3058, 0.0
  %v3337 = vmax.f32 %v3063, 0.0
  %v3338 = vmax.f32 %v3068, 0.0
  %v3339 = vmax.f32 %v3073, 0.0
  %v3340 = vmax.f32 %v3078, 0.0
  %v3341 = vmax.f32 %v3083, 0.0
  %v3342 = vmax.f32 %v3088, 0.0
  %v3343 = vmax.f32 %v3093, 0.0
  %v3344 = vmax.f32 %v3098, 0.0
  %v3345 = vmax.f32 %v3103, 0.0
  %v3346 = vmax.f32 %v3108, 0.0
  %v3347 = vmax.f32 %v3113, 0.0
  %v3348 = vmax.f32 %v3118, 0.0
  %v3349 = vmax.f32 %v3123, 0.0
  %v3350 = vmax.f32 %v3128, 0.0
  %v3351 = vmax.f32 %v3133, 0.0
  %v3352 = vmax.f32 %v3138, 0.0
  %v3353 = vmax.f32 %v3143, 0.0
  %v3354 = vmax.f32 %v3148, 0.0
  %v3355 = vmax.f32 %v3153, 0.0
  %v3356 = vmax.f32 %v3158, 0.0
  %v3357 = vmax.f32 %v3163, 0.0
  %v3358 = vmax.f32 %v3168, 0.0
  %v3359 = vmax.f32 %v3173, 0.0
  %v3360 = vmax.f32 %v3178, 0.0
  %v3361 = vmax.f32 %v3183, 0.0
  %v3362 = vmax.f32 %v3188, 0.0
  %v3363 = vmax.f32 %v3193, 0.0
  %v3364 = vmax.f32 %v3198, 0.0
  %v3365 = vmax.f32 %v3203, 0.0
  %v3366 = vmax.f32 %v3208, 0.0
  %v3367 = vmax.f32 %v3213, 0.0
  %v3368 = vmax.f32 %v3218, 0.0
  %v3369 = vmax.f32 %v3223, 0.0
  %v3370 = vmax.f32 %v3228, 0.0
  %v3371 = vmax.f32 %v3233, 0.0
  %v3372 = vmax.f32 %v3238, 0.0
  %v3373 = vmax.f32 %v3243, 0.0
  %v3374 = vmax.f32 %v3248, 0.0
  %v3375 = vmax.f32 %v3253, 0.0
  %v3376 = vmax.f32 %v3258, 0.0
  %v3377 = vmax.f32 %v3263, 0.0
  %v3378 = vmax.f32 %v3268, 0.0
  %v3379 = vmax.f32 %v3273, 0.0
  %v3380 = vmax.f32 %v3278, 0.0
  %v3381 = vmax.f32 %v3283, 0.0
  %v3382 = vmax.f32 %v3288, 0.0
  %v3383 = vmax.f32 %v3293, 0.0
  %v3384 = vmax.f32 %v3298, 0.0
  %v3385 = vmax.f32 %v3303, 0.0
  %v3386 = vmax.f32 %v3308, 0.0
  %v3387 = vmax.f32 %v3313, 0.0
  %v3388 = vmax.f32 %v3318, 0.0
  %v3389 = vmax.f32 %v3323, 0.0
  %v3390 = vld [vmem:[%s12] sm:$0xff]
  %v3391 = vld [vmem:[%s12 + $0x8] sm:$0xff]
  %v3392 = vld [vmem:[%s12 + $0x10] sm:$0xff]
  %v3393 = vld [vmem:[%s12 + $0x18] sm:$0xff]
  %v3394 = vld [vmem:[%s12 + $0x20] sm:$0xff]
  %v3395 = vld [vmem:[%s12 + $0x28] sm:$0xff]
  %v3396 = vld [vmem:[%s12 + $0x30] sm:$0xff]
  %v3397 = vld [vmem:[%s12 + $0x38] sm:$0xff]
  %v3398 = vld [vmem:[%s13] sm:$0x1]
  %v3400 = vlaneseq
  %v3401 = vshrl.u32 %v3400, 7
  %v3402 = vsub.s32 0, %v3401
  %v3403 = vrot.slane %v3398, %v3402
  %v3406 = vsel %vm785, %v3326, 0
  %v3409 = vsel %vm785, %v3327, 0
  %v3412 = vsel %vm785, %v3328, 0
  %v3415 = vsel %vm785, %v3329, 0
  %v3418 = vsel %vm785, %v3330, 0
  %v3421 = vsel %vm785, %v3331, 0
  %v3424 = vsel %vm785, %v3332, 0
  %v3427 = vsel %vm785, %v3333, 0
  %v3430 = vsel %vm785, %v3334, 0
  %v3433 = vsel %vm785, %v3335, 0
  %v3436 = vsel %vm785, %v3336, 0
  %v3439 = vsel %vm785, %v3337, 0
  %v3442 = vsel %vm785, %v3338, 0
  %v3445 = vsel %vm785, %v3339, 0
  %v3448 = vsel %vm785, %v3340, 0
  %v3451 = vsel %vm785, %v3341, 0
  %v3454 = vsel %vm785, %v3342, 0
  %v3457 = vsel %vm785, %v3343, 0
  %v3460 = vsel %vm785, %v3344, 0
  %v3463 = vsel %vm785, %v3345, 0
  %v3466 = vsel %vm785, %v3346, 0
  %v3469 = vsel %vm785, %v3347, 0
  %v3472 = vsel %vm785, %v3348, 0
  %v3475 = vsel %vm785, %v3349, 0
  %v3478 = vsel %vm785, %v3350, 0
  %v3481 = vsel %vm785, %v3351, 0
  %v3484 = vsel %vm785, %v3352, 0
  %v3487 = vsel %vm785, %v3353, 0
  %v3490 = vsel %vm785, %v3354, 0
  %v3493 = vsel %vm785, %v3355, 0
  %v3496 = vsel %vm785, %v3356, 0
  %v3499 = vsel %vm785, %v3357, 0
  %v3502 = vsel %vm785, %v3358, 0
  %v3505 = vsel %vm785, %v3359, 0
  %v3508 = vsel %vm785, %v3360, 0
  %v3511 = vsel %vm785, %v3361, 0
  %v3514 = vsel %vm785, %v3362, 0
  %v3517 = vsel %vm785, %v3363, 0
  %v3520 = vsel %vm785, %v3364, 0
  %v3523 = vsel %vm785, %v3365, 0
  %v3526 = vsel %vm785, %v3366, 0
  %v3529 = vsel %vm785, %v3367, 0
  %v3532 = vsel %vm785, %v3368, 0
  %v3535 = vsel %vm785, %v3369, 0
  %v3538 = vsel %vm785, %v3370, 0
  %v3541 = vsel %vm785, %v3371, 0
  %v3544 = vsel %vm785, %v3372, 0
  %v3547 = vsel %vm785, %v3373, 0
  %v3550 = vsel %vm785, %v3374, 0
  %v3553 = vsel %vm785, %v3375, 0
  %v3556 = vsel %vm785, %v3376, 0
  %v3559 = vsel %vm785, %v3377, 0
  %v3562 = vsel %vm785, %v3378, 0
  %v3565 = vsel %vm785, %v3379, 0
  %v3568 = vsel %vm785, %v3380, 0
  %v3571 = vsel %vm785, %v3381, 0
  %v3574 = vsel %vm785, %v3382, 0
  %v3577 = vsel %vm785, %v3383, 0
  %v3580 = vsel %vm785, %v3384, 0
  %v3583 = vsel %vm785, %v3385, 0
  %v3586 = vsel %vm785, %v3386, 0
  %v3589 = vsel %vm785, %v3387, 0
  %v3592 = vsel %vm785, %v3388, 0
  %v3595 = vsel %vm785, %v3389, 0
  %3597 = vmatprep.subr.mxu0 0.0
  %3598 = vmatpush1.msra.mxu0 %v3390
  %3599 = vmatprep.subr.mxu0 0.0
  %3600 = vmatpush1.msra.mxu0 %v3391
  %3601 = vmatprep.subr.mxu0 0.0
  %3602 = vmatpush1.msra.mxu0 %v3392
  %3603 = vmatprep.subr.mxu0 0.0
  %3604 = vmatpush1.msra.mxu0 %v3393
  %3605 = vmatprep.subr.mxu0 0.0
  %3606 = vmatpush1.msra.mxu0 %v3394
  %3607 = vmatprep.subr.mxu0 0.0
  %3608 = vmatpush1.msra.mxu0 %v3395
  %3609 = vmatprep.subr.mxu0 0.0
  %3610 = vmatpush1.msra.mxu0 %v3396
  %3611 = vmatprep.subr.mxu0 0.0
  %3612 = vmatpush1.msra.mxu0 %v3397
  %3613 = vmatprep.subr.mxu0 0.0
  %3614 = vmatpush1.msra.mxu0 0.0
  %3615 = vmatprep.subr.mxu0 0.0
  %3616 = vmatpush1.msra.mxu0 0.0
  %3617 = vmatprep.subr.mxu0 0.0
  %3618 = vmatpush1.msra.mxu0 0.0
  %3619 = vmatprep.subr.mxu0 0.0
  %3620 = vmatpush1.msra.mxu0 0.0
  %3621 = vmatprep.subr.mxu0 0.0
  %3622 = vmatpush1.msra.mxu0 0.0
  %3623 = vmatprep.subr.mxu0 0.0
  %3624 = vmatpush1.msra.mxu0 0.0
  %3625 = vmatprep.subr.mxu0 0.0
  %3626 = vmatpush1.msra.mxu0 0.0
  %3627 = vmatprep.subr.mxu0 0.0
  %3628 = vmatpush1.msra.mxu0 0.0
  %3629 = vmatprep.subr.mxu0 0.0
  %3630 = vmatpush1.msra.mxu0 0.0
  %3631 = vmatprep.subr.mxu0 0.0
  %3632 = vmatpush1.msra.mxu0 0.0
  %3633 = vmatprep.subr.mxu0 0.0
  %3634 = vmatpush1.msra.mxu0 0.0
  %3635 = vmatprep.subr.mxu0 0.0
  %3636 = vmatpush1.msra.mxu0 0.0
  %3637 = vmatprep.subr.mxu0 0.0
  %3638 = vmatpush1.msra.mxu0 0.0
  %3639 = vmatprep.subr.mxu0 0.0
  %3640 = vmatpush1.msra.mxu0 0.0
  %3641 = vmatprep.subr.mxu0 0.0
  %3642 = vmatpush1.msra.mxu0 0.0
  %3643 = vmatprep.subr.mxu0 0.0
  %3644 = vmatpush1.msra.mxu0 0.0
  %3645 = vmatprep.subr.mxu0 0.0
  %3646 = vmatpush1.msra.mxu0 0.0
  %3647 = vmatprep.subr.mxu0 0.0
  %3648 = vmatpush1.msra.mxu0 0.0
  %3649 = vmatprep.subr.mxu0 0.0
  %3650 = vmatpush1.msra.mxu0 0.0
  %3651 = vmatprep.subr.mxu0 0.0
  %3652 = vmatpush1.msra.mxu0 0.0
  %3653 = vmatprep.subr.mxu0 0.0
  %3654 = vmatpush1.msra.mxu0 0.0
  %3655 = vmatprep.subr.mxu0 0.0
  %3656 = vmatpush1.msra.mxu0 0.0
  %3657 = vmatprep.subr.mxu0 0.0
  %3658 = vmatpush1.msra.mxu0 0.0
  %3659 = vmatprep.subr.mxu0 0.0
  %3660 = vmatpush1.msra.mxu0 0.0
  %3661 = vmatprep.mubr.f32.mxu0 0.0
  %3662 = vmatmul.mubr.f32.gmra.mrb[0].mxu0 %v3406
  %v3663 = vpop.f32.mrb[0].mxu0
  %v3664 = vadd.f32 %v3403, %v3663
  %v3665 = vpop.f32.mrb[0].mxu0
  %3666 = vmatprep.mubr.f32.mxu0 0.0
  %3667 = vmatmul.mubr.f32.gmra.mrb[0].mxu0 %v3409
  %v3668 = vpop.f32.mrb[0].mxu0
  %v3669 = vadd.f32 %v3403, %v3668
  %v3670 = vpop.f32.mrb[0].mxu0
  %3671 = vmatprep.mubr.f32.mxu0 0.0
  %3672 = vmatmul.mubr.f32.gmra.mrb[0].mxu0 %v3412
  %v3673 = vpop.f32.mrb[0].mxu0
  %v3674 = vadd.f32 %v3403, %v3673
  %v3675 = vpop.f32.mrb[0].mxu0
  %3676 = vmatprep.mubr.f32.mxu0 0.0
  %3677 = vmatmul.mubr.f32.gmra.mrb[0].mxu0 %v3415
  %v3678 = vpop.f32.mrb[0].mxu0
  %v3679 = vadd.f32 %v3403, %v3678
  %v3680 = vpop.f32.mrb[0].mxu0
  %3681 = vmatprep.mubr.f32.mxu0 0.0
  %3682 = vmatmul.mubr.f32.gmra.mrb[0].mxu0 %v3418
  %v3683 = vpop.f32.mrb[0].mxu0
  %v3684 = vadd.f32 %v3403, %v3683
  %v3685 = vpop.f32.mrb[0].mxu0
  %3686 = vmatprep.mubr.f32.mxu0 0.0
  %3687 = vmatmul.mubr.f32.gmra.mrb[0].mxu0 %v3421
  %v3688 = vpop.f32.mrb[0].mxu0
  %v3689 = vadd.f32 %v3403, %v3688
  %v3690 = vpop.f32.mrb[0].mxu0
  %3691 = vmatprep.mubr.f32.mxu0 0.0
  %3692 = vmatmul.mubr.f32.gmra.mrb[0].mxu0 %v3424
  %v3693 = vpop.f32.mrb[0].mxu0
  %v3694 = vadd.f32 %v3403, %v3693
  %v3695 = vpop.f32.mrb[0].mxu0
  %3696 = vmatprep.mubr.f32.mxu0 0.0
  %3697 = vmatmul.mubr.f32.gmra.mrb[0].mxu0 %v3427
  %v3698 = vpop.f32.mrb[0].mxu0
  %v3699 = vadd.f32 %v3403, %v3698
  %v3700 = vpop.f32.mrb[0].mxu0
  %3701 = vmatprep.mubr.f32.mxu0 0.0
  %3702 = vmatmul.mubr.f32.gmra.mrb[0].mxu0 %v3430
  %v3703 = vpop.f32.mrb[0].mxu0
  %v3704 = vadd.f32 %v3403, %v3703
  %v3705 = vpop.f32.mrb[0].mxu0
  %3706 = vmatprep.mubr.f32.mxu0 0.0
  %3707 = vmatmul.mubr.f32.gmra.mrb[0].mxu0 %v3433
  %v3708 = vpop.f32.mrb[0].mxu0
  %v3709 = vadd.f32 %v3403, %v3708
  %v3710 = vpop.f32.mrb[0].mxu0
  %3711 = vmatprep.mubr.f32.mxu0 0.0
  %3712 = vmatmul.mubr.f32.gmra.mrb[0].mxu0 %v3436
  %v3713 = vpop.f32.mrb[0].mxu0
  %v3714 = vadd.f32 %v3403, %v3713
  %v3715 = vpop.f32.mrb[0].mxu0
  %3716 = vmatprep.mubr.f32.mxu0 0.0
  %3717 = vmatmul.mubr.f32.gmra.mrb[0].mxu0 %v3439
  %v3718 = vpop.f32.mrb[0].mxu0
  %v3719 = vadd.f32 %v3403, %v3718
  %v3720 = vpop.f32.mrb[0].mxu0
  %3721 = vmatprep.mubr.f32.mxu0 0.0
  %3722 = vmatmul.mubr.f32.gmra.mrb[0].mxu0 %v3442
  %v3723 = vpop.f32.mrb[0].mxu0
  %v3724 = vadd.f32 %v3403, %v3723
  %v3725 = vpop.f32.mrb[0].mxu0
  %3726 = vmatprep.mubr.f32.mxu0 0.0
  %3727 = vmatmul.mubr.f32.gmra.mrb[0].mxu0 %v3445
  %v3728 = vpop.f32.mrb[0].mxu0
  %v3729 = vadd.f32 %v3403, %v3728
  %v3730 = vpop.f32.mrb[0].mxu0
  %3731 = vmatprep.mubr.f32.mxu0 0.0
  %3732 = vmatmul.mubr.f32.gmra.mrb[0].mxu0 %v3448
  %v3733 = vpop.f32.mrb[0].mxu0
  %v3734 = vadd.f32 %v3403, %v3733
  %v3735 = vpop.f32.mrb[0].mxu0
  %3736 = vmatprep.mubr.f32.mxu0 0.0
  %3737 = vmatmul.mubr.f32.gmra.mrb[0].mxu0 %v3451
  %v3738 = vpop.f32.mrb[0].mxu0
  %v3739 = vadd.f32 %v3403, %v3738
  %v3740 = vpop.f32.mrb[0].mxu0
  %3741 = vmatprep.mubr.f32.mxu0 0.0
  %3742 = vmatmul.mubr.f32.gmra.mrb[0].mxu0 %v3454
  %v3743 = vpop.f32.mrb[0].mxu0
  %v3744 = vadd.f32 %v3403, %v3743
  %v3745 = vpop.f32.mrb[0].mxu0
  %3746 = vmatprep.mubr.f32.mxu0 0.0
  %3747 = vmatmul.mubr.f32.gmra.mrb[0].mxu0 %v3457
  %v3748 = vpop.f32.mrb[0].mxu0
  %v3749 = vadd.f32 %v3403, %v3748
  %v3750 = vpop.f32.mrb[0].mxu0
  %3751 = vmatprep.mubr.f32.mxu0 0.0
  %3752 = vmatmul.mubr.f32.gmra.mrb[0].mxu0 %v3460
  %v3753 = vpop.f32.mrb[0].mxu0
  %v3754 = vadd.f32 %v3403, %v3753
  %v3755 = vpop.f32.mrb[0].mxu0
  %3756 = vmatprep.mubr.f32.mxu0 0.0
  %3757 = vmatmul.mubr.f32.gmra.mrb[0].mxu0 %v3463
  %v3758 = vpop.f32.mrb[0].mxu0
  %v3759 = vadd.f32 %v3403, %v3758
  %v3760 = vpop.f32.mrb[0].mxu0
  %3761 = vmatprep.mubr.f32.mxu0 0.0
  %3762 = vmatmul.mubr.f32.gmra.mrb[0].mxu0 %v3466
  %v3763 = vpop.f32.mrb[0].mxu0
  %v3764 = vadd.f32 %v3403, %v3763
  %v3765 = vpop.f32.mrb[0].mxu0
  %3766 = vmatprep.mubr.f32.mxu0 0.0
  %3767 = vmatmul.mubr.f32.gmra.mrb[0].mxu0 %v3469
  %v3768 = vpop.f32.mrb[0].mxu0
  %v3769 = vadd.f32 %v3403, %v3768
  %v3770 = vpop.f32.mrb[0].mxu0
  %3771 = vmatprep.mubr.f32.mxu0 0.0
  %3772 = vmatmul.mubr.f32.gmra.mrb[0].mxu0 %v3472
  %v3773 = vpop.f32.mrb[0].mxu0
  %v3774 = vadd.f32 %v3403, %v3773
  %v3775 = vpop.f32.mrb[0].mxu0
  %3776 = vmatprep.mubr.f32.mxu0 0.0
  %3777 = vmatmul.mubr.f32.gmra.mrb[0].mxu0 %v3475
  %v3778 = vpop.f32.mrb[0].mxu0
  %v3779 = vadd.f32 %v3403, %v3778
  %v3780 = vpop.f32.mrb[0].mxu0
  %3781 = vmatprep.mubr.f32.mxu0 0.0
  %3782 = vmatmul.mubr.f32.gmra.mrb[0].mxu0 %v3478
  %v3783 = vpop.f32.mrb[0].mxu0
  %v3784 = vadd.f32 %v3403, %v3783
  %v3785 = vpop.f32.mrb[0].mxu0
  %3786 = vmatprep.mubr.f32.mxu0 0.0
  %3787 = vmatmul.mubr.f32.gmra.mrb[0].mxu0 %v3481
  %v3788 = vpop.f32.mrb[0].mxu0
  %v3789 = vadd.f32 %v3403, %v3788
  %v3790 = vpop.f32.mrb[0].mxu0
  %3791 = vmatprep.mubr.f32.mxu0 0.0
  %3792 = vmatmul.mubr.f32.gmra.mrb[0].mxu0 %v3484
  %v3793 = vpop.f32.mrb[0].mxu0
  %v3794 = vadd.f32 %v3403, %v3793
  %v3795 = vpop.f32.mrb[0].mxu0
  %3796 = vmatprep.mubr.f32.mxu0 0.0
  %3797 = vmatmul.mubr.f32.gmra.mrb[0].mxu0 %v3487
  %v3798 = vpop.f32.mrb[0].mxu0
  %v3799 = vadd.f32 %v3403, %v3798
  %v3800 = vpop.f32.mrb[0].mxu0
  %3801 = vmatprep.mubr.f32.mxu0 0.0
  %3802 = vmatmul.mubr.f32.gmra.mrb[0].mxu0 %v3490
  %v3803 = vpop.f32.mrb[0].mxu0
  %v3804 = vadd.f32 %v3403, %v3803
  %v3805 = vpop.f32.mrb[0].mxu0
  %3806 = vmatprep.mubr.f32.mxu0 0.0
  %3807 = vmatmul.mubr.f32.gmra.mrb[0].mxu0 %v3493
  %v3808 = vpop.f32.mrb[0].mxu0
  %v3809 = vadd.f32 %v3403, %v3808
  %v3810 = vpop.f32.mrb[0].mxu0
  %3811 = vmatprep.mubr.f32.mxu0 0.0
  %3812 = vmatmul.mubr.f32.gmra.mrb[0].mxu0 %v3496
  %v3813 = vpop.f32.mrb[0].mxu0
  %v3814 = vadd.f32 %v3403, %v3813
  %v3815 = vpop.f32.mrb[0].mxu0
  %3816 = vmatprep.mubr.f32.mxu0 0.0
  %3817 = vmatmul.mubr.f32.gmra.mrb[0].mxu0 %v3499
  %v3818 = vpop.f32.mrb[0].mxu0
  %v3819 = vadd.f32 %v3403, %v3818
  %v3820 = vpop.f32.mrb[0].mxu0
  %3821 = vmatprep.mubr.f32.mxu0 0.0
  %3822 = vmatmul.mubr.f32.gmra.mrb[0].mxu0 %v3502
  %v3823 = vpop.f32.mrb[0].mxu0
  %v3824 = vadd.f32 %v3403, %v3823
  %v3825 = vpop.f32.mrb[0].mxu0
  %3826 = vmatprep.mubr.f32.mxu0 0.0
  %3827 = vmatmul.mubr.f32.gmra.mrb[0].mxu0 %v3505
  %v3828 = vpop.f32.mrb[0].mxu0
  %v3829 = vadd.f32 %v3403, %v3828
  %v3830 = vpop.f32.mrb[0].mxu0
  %3831 = vmatprep.mubr.f32.mxu0 0.0
  %3832 = vmatmul.mubr.f32.gmra.mrb[0].mxu0 %v3508
  %v3833 = vpop.f32.mrb[0].mxu0
  %v3834 = vadd.f32 %v3403, %v3833
  %v3835 = vpop.f32.mrb[0].mxu0
  %3836 = vmatprep.mubr.f32.mxu0 0.0
  %3837 = vmatmul.mubr.f32.gmra.mrb[0].mxu0 %v3511
  %v3838 = vpop.f32.mrb[0].mxu0
  %v3839 = vadd.f32 %v3403, %v3838
  %v3840 = vpop.f32.mrb[0].mxu0
  %3841 = vmatprep.mubr.f32.mxu0 0.0
  %3842 = vmatmul.mubr.f32.gmra.mrb[0].mxu0 %v3514
  %v3843 = vpop.f32.mrb[0].mxu0
  %v3844 = vadd.f32 %v3403, %v3843
  %v3845 = vpop.f32.mrb[0].mxu0
  %3846 = vmatprep.mubr.f32.mxu0 0.0
  %3847 = vmatmul.mubr.f32.gmra.mrb[0].mxu0 %v3517
  %v3848 = vpop.f32.mrb[0].mxu0
  %v3849 = vadd.f32 %v3403, %v3848
  %v3850 = vpop.f32.mrb[0].mxu0
  %3851 = vmatprep.mubr.f32.mxu0 0.0
  %3852 = vmatmul.mubr.f32.gmra.mrb[0].mxu0 %v3520
  %v3853 = vpop.f32.mrb[0].mxu0
  %v3854 = vadd.f32 %v3403, %v3853
  %v3855 = vpop.f32.mrb[0].mxu0
  %3856 = vmatprep.mubr.f32.mxu0 0.0
  %3857 = vmatmul.mubr.f32.gmra.mrb[0].mxu0 %v3523
  %v3858 = vpop.f32.mrb[0].mxu0
  %v3859 = vadd.f32 %v3403, %v3858
  %v3860 = vpop.f32.mrb[0].mxu0
  %3861 = vmatprep.mubr.f32.mxu0 0.0
  %3862 = vmatmul.mubr.f32.gmra.mrb[0].mxu0 %v3526
  %v3863 = vpop.f32.mrb[0].mxu0
  %v3864 = vadd.f32 %v3403, %v3863
  %v3865 = vpop.f32.mrb[0].mxu0
  %3866 = vmatprep.mubr.f32.mxu0 0.0
  %3867 = vmatmul.mubr.f32.gmra.mrb[0].mxu0 %v3529
  %v3868 = vpop.f32.mrb[0].mxu0
  %v3869 = vadd.f32 %v3403, %v3868
  %v3870 = vpop.f32.mrb[0].mxu0
  %3871 = vmatprep.mubr.f32.mxu0 0.0
  %3872 = vmatmul.mubr.f32.gmra.mrb[0].mxu0 %v3532
  %v3873 = vpop.f32.mrb[0].mxu0
  %v3874 = vadd.f32 %v3403, %v3873
  %v3875 = vpop.f32.mrb[0].mxu0
  %3876 = vmatprep.mubr.f32.mxu0 0.0
  %3877 = vmatmul.mubr.f32.gmra.mrb[0].mxu0 %v3535
  %v3878 = vpop.f32.mrb[0].mxu0
  %v3879 = vadd.f32 %v3403, %v3878
  %v3880 = vpop.f32.mrb[0].mxu0
  %3881 = vmatprep.mubr.f32.mxu0 0.0
  %3882 = vmatmul.mubr.f32.gmra.mrb[0].mxu0 %v3538
  %v3883 = vpop.f32.mrb[0].mxu0
  %v3884 = vadd.f32 %v3403, %v3883
  %v3885 = vpop.f32.mrb[0].mxu0
  %3886 = vmatprep.mubr.f32.mxu0 0.0
  %3887 = vmatmul.mubr.f32.gmra.mrb[0].mxu0 %v3541
  %v3888 = vpop.f32.mrb[0].mxu0
  %v3889 = vadd.f32 %v3403, %v3888
  %v3890 = vpop.f32.mrb[0].mxu0
  %3891 = vmatprep.mubr.f32.mxu0 0.0
  %3892 = vmatmul.mubr.f32.gmra.mrb[0].mxu0 %v3544
  %v3893 = vpop.f32.mrb[0].mxu0
  %v3894 = vadd.f32 %v3403, %v3893
  %v3895 = vpop.f32.mrb[0].mxu0
  %3896 = vmatprep.mubr.f32.mxu0 0.0
  %3897 = vmatmul.mubr.f32.gmra.mrb[0].mxu0 %v3547
  %v3898 = vpop.f32.mrb[0].mxu0
  %v3899 = vadd.f32 %v3403, %v3898
  %v3900 = vpop.f32.mrb[0].mxu0
  %3901 = vmatprep.mubr.f32.mxu0 0.0
  %3902 = vmatmul.mubr.f32.gmra.mrb[0].mxu0 %v3550
  %v3903 = vpop.f32.mrb[0].mxu0
  %v3904 = vadd.f32 %v3403, %v3903
  %v3905 = vpop.f32.mrb[0].mxu0
  %3906 = vmatprep.mubr.f32.mxu0 0.0
  %3907 = vmatmul.mubr.f32.gmra.mrb[0].mxu0 %v3553
  %v3908 = vpop.f32.mrb[0].mxu0
  %v3909 = vadd.f32 %v3403, %v3908
  %v3910 = vpop.f32.mrb[0].mxu0
  %3911 = vmatprep.mubr.f32.mxu0 0.0
  %3912 = vmatmul.mubr.f32.gmra.mrb[0].mxu0 %v3556
  %v3913 = vpop.f32.mrb[0].mxu0
  %v3914 = vadd.f32 %v3403, %v3913
  %v3915 = vpop.f32.mrb[0].mxu0
  %3916 = vmatprep.mubr.f32.mxu0 0.0
  %3917 = vmatmul.mubr.f32.gmra.mrb[0].mxu0 %v3559
  %v3918 = vpop.f32.mrb[0].mxu0
  %v3919 = vadd.f32 %v3403, %v3918
  %v3920 = vpop.f32.mrb[0].mxu0
  %3921 = vmatprep.mubr.f32.mxu0 0.0
  %3922 = vmatmul.mubr.f32.gmra.mrb[0].mxu0 %v3562
  %v3923 = vpop.f32.mrb[0].mxu0
  %v3924 = vadd.f32 %v3403, %v3923
  %v3925 = vpop.f32.mrb[0].mxu0
  %3926 = vmatprep.mubr.f32.mxu0 0.0
  %3927 = vmatmul.mubr.f32.gmra.mrb[0].mxu0 %v3565
  %v3928 = vpop.f32.mrb[0].mxu0
  %v3929 = vadd.f32 %v3403, %v3928
  %v3930 = vpop.f32.mrb[0].mxu0
  %3931 = vmatprep.mubr.f32.mxu0 0.0
  %3932 = vmatmul.mubr.f32.gmra.mrb[0].mxu0 %v3568
  %v3933 = vpop.f32.mrb[0].mxu0
  %v3934 = vadd.f32 %v3403, %v3933
  %v3935 = vpop.f32.mrb[0].mxu0
  %3936 = vmatprep.mubr.f32.mxu0 0.0
  %3937 = vmatmul.mubr.f32.gmra.mrb[0].mxu0 %v3571
  %v3938 = vpop.f32.mrb[0].mxu0
  %v3939 = vadd.f32 %v3403, %v3938
  %v3940 = vpop.f32.mrb[0].mxu0
  %3941 = vmatprep.mubr.f32.mxu0 0.0
  %3942 = vmatmul.mubr.f32.gmra.mrb[0].mxu0 %v3574
  %v3943 = vpop.f32.mrb[0].mxu0
  %v3944 = vadd.f32 %v3403, %v3943
  %v3945 = vpop.f32.mrb[0].mxu0
  %3946 = vmatprep.mubr.f32.mxu0 0.0
  %3947 = vmatmul.mubr.f32.gmra.mrb[0].mxu0 %v3577
  %v3948 = vpop.f32.mrb[0].mxu0
  %v3949 = vadd.f32 %v3403, %v3948
  %v3950 = vpop.f32.mrb[0].mxu0
  %3951 = vmatprep.mubr.f32.mxu0 0.0
  %3952 = vmatmul.mubr.f32.gmra.mrb[0].mxu0 %v3580
  %v3953 = vpop.f32.mrb[0].mxu0
  %v3954 = vadd.f32 %v3403, %v3953
  %v3955 = vpop.f32.mrb[0].mxu0
  %3956 = vmatprep.mubr.f32.mxu0 0.0
  %3957 = vmatmul.mubr.f32.gmra.mrb[0].mxu0 %v3583
  %v3958 = vpop.f32.mrb[0].mxu0
  %v3959 = vadd.f32 %v3403, %v3958
  %v3960 = vpop.f32.mrb[0].mxu0
  %3961 = vmatprep.mubr.f32.mxu0 0.0
  %3962 = vmatmul.mubr.f32.gmra.mrb[0].mxu0 %v3586
  %v3963 = vpop.f32.mrb[0].mxu0
  %v3964 = vadd.f32 %v3403, %v3963
  %v3965 = vpop.f32.mrb[0].mxu0
  %3966 = vmatprep.mubr.f32.mxu0 0.0
  %3967 = vmatmul.mubr.f32.gmra.mrb[0].mxu0 %v3589
  %v3968 = vpop.f32.mrb[0].mxu0
  %v3969 = vadd.f32 %v3403, %v3968
  %v3970 = vpop.f32.mrb[0].mxu0
  %3971 = vmatprep.mubr.f32.mxu0 0.0
  %3972 = vmatmul.mubr.f32.gmra.mrb[0].mxu0 %v3592
  %v3973 = vpop.f32.mrb[0].mxu0
  %v3974 = vadd.f32 %v3403, %v3973
  %v3975 = vpop.f32.mrb[0].mxu0
  %3976 = vmatprep.mubr.f32.mxu0 0.0
  %3977 = vmatmul.mubr.f32.gmra.mrb[0].mxu0 %v3595
  %v3978 = vpop.f32.mrb[0].mxu0
  %v3979 = vadd.f32 %v3403, %v3978
  %v3980 = vpop.f32.mrb[0].mxu0
  %3981 = vdwg.mxu0
  %v3982 = vsel %vm785, %v3664, 0.0
  %3983 = vadd.xlane.f32.xlu0 %v3982
  %v3984 = vpop.xlane.xlu0 %3983
  %v3985 = vsel %vm785, %v3669, 0.0
  %3986 = vadd.xlane.f32.xlu0 %v3985
  %v3987 = vpop.xlane.xlu0 %3986
  %v3988 = vsel %vm785, %v3674, 0.0
  %3989 = vadd.xlane.f32.xlu0 %v3988
  %v3990 = vpop.xlane.xlu0 %3989
  %v3991 = vsel %vm785, %v3679, 0.0
  %3992 = vadd.xlane.f32.xlu0 %v3991
  %v3993 = vpop.xlane.xlu0 %3992
  %v3994 = vsel %vm785, %v3684, 0.0
  %3995 = vadd.xlane.f32.xlu0 %v3994
  %v3996 = vpop.xlane.xlu0 %3995
  %v3997 = vsel %vm785, %v3689, 0.0
  %3998 = vadd.xlane.f32.xlu0 %v3997
  %v3999 = vpop.xlane.xlu0 %3998
  %v4000 = vsel %vm785, %v3694, 0.0
  %4001 = vadd.xlane.f32.xlu0 %v4000
  %v4002 = vpop.xlane.xlu0 %4001
  %v4003 = vsel %vm785, %v3699, 0.0
  %4004 = vadd.xlane.f32.xlu0 %v4003
  %v4005 = vpop.xlane.xlu0 %4004
  %v4006 = vsel %vm785, %v3704, 0.0
  %4007 = vadd.xlane.f32.xlu0 %v4006
  %v4008 = vpop.xlane.xlu0 %4007
  %v4009 = vsel %vm785, %v3709, 0.0
  %4010 = vadd.xlane.f32.xlu0 %v4009
  %v4011 = vpop.xlane.xlu0 %4010
  %v4012 = vsel %vm785, %v3714, 0.0
  %4013 = vadd.xlane.f32.xlu0 %v4012
  %v4014 = vpop.xlane.xlu0 %4013
  %v4015 = vsel %vm785, %v3719, 0.0
  %4016 = vadd.xlane.f32.xlu0 %v4015
  %v4017 = vpop.xlane.xlu0 %4016
  %v4018 = vsel %vm785, %v3724, 0.0
  %4019 = vadd.xlane.f32.xlu0 %v4018
  %v4020 = vpop.xlane.xlu0 %4019
  %v4021 = vsel %vm785, %v3729, 0.0
  %4022 = vadd.xlane.f32.xlu0 %v4021
  %v4023 = vpop.xlane.xlu0 %4022
  %v4024 = vsel %vm785, %v3734, 0.0
  %4025 = vadd.xlane.f32.xlu0 %v4024
  %v4026 = vpop.xlane.xlu0 %4025
  %v4027 = vsel %vm785, %v3739, 0.0
  %4028 = vadd.xlane.f32.xlu0 %v4027
  %v4029 = vpop.xlane.xlu0 %4028
  %v4030 = vsel %vm785, %v3744, 0.0
  %4031 = vadd.xlane.f32.xlu0 %v4030
  %v4032 = vpop.xlane.xlu0 %4031
  %v4033 = vsel %vm785, %v3749, 0.0
  %4034 = vadd.xlane.f32.xlu0 %v4033
  %v4035 = vpop.xlane.xlu0 %4034
  %v4036 = vsel %vm785, %v3754, 0.0
  %4037 = vadd.xlane.f32.xlu0 %v4036
  %v4038 = vpop.xlane.xlu0 %4037
  %v4039 = vsel %vm785, %v3759, 0.0
  %4040 = vadd.xlane.f32.xlu0 %v4039
  %v4041 = vpop.xlane.xlu0 %4040
  %v4042 = vsel %vm785, %v3764, 0.0
  %4043 = vadd.xlane.f32.xlu0 %v4042
  %v4044 = vpop.xlane.xlu0 %4043
  %v4045 = vsel %vm785, %v3769, 0.0
  %4046 = vadd.xlane.f32.xlu0 %v4045
  %v4047 = vpop.xlane.xlu0 %4046
  %v4048 = vsel %vm785, %v3774, 0.0
  %4049 = vadd.xlane.f32.xlu0 %v4048
  %v4050 = vpop.xlane.xlu0 %4049
  %v4051 = vsel %vm785, %v3779, 0.0
  %4052 = vadd.xlane.f32.xlu0 %v4051
  %v4053 = vpop.xlane.xlu0 %4052
  %v4054 = vsel %vm785, %v3784, 0.0
  %4055 = vadd.xlane.f32.xlu0 %v4054
  %v4056 = vpop.xlane.xlu0 %4055
  %v4057 = vsel %vm785, %v3789, 0.0
  %4058 = vadd.xlane.f32.xlu0 %v4057
  %v4059 = vpop.xlane.xlu0 %4058
  %v4060 = vsel %vm785, %v3794, 0.0
  %4061 = vadd.xlane.f32.xlu0 %v4060
  %v4062 = vpop.xlane.xlu0 %4061
  %v4063 = vsel %vm785, %v3799, 0.0
  %4064 = vadd.xlane.f32.xlu0 %v4063
  %v4065 = vpop.xlane.xlu0 %4064
  %v4066 = vsel %vm785, %v3804, 0.0
  %4067 = vadd.xlane.f32.xlu0 %v4066
  %v4068 = vpop.xlane.xlu0 %4067
  %v4069 = vsel %vm785, %v3809, 0.0
  %4070 = vadd.xlane.f32.xlu0 %v4069
  %v4071 = vpop.xlane.xlu0 %4070
  %v4072 = vsel %vm785, %v3814, 0.0
  %4073 = vadd.xlane.f32.xlu0 %v4072
  %v4074 = vpop.xlane.xlu0 %4073
  %v4075 = vsel %vm785, %v3819, 0.0
  %4076 = vadd.xlane.f32.xlu0 %v4075
  %v4077 = vpop.xlane.xlu0 %4076
  %v4078 = vsel %vm785, %v3824, 0.0
  %4079 = vadd.xlane.f32.xlu0 %v4078
  %v4080 = vpop.xlane.xlu0 %4079
  %v4081 = vsel %vm785, %v3829, 0.0
  %4082 = vadd.xlane.f32.xlu0 %v4081
  %v4083 = vpop.xlane.xlu0 %4082
  %v4084 = vsel %vm785, %v3834, 0.0
  %4085 = vadd.xlane.f32.xlu0 %v4084
  %v4086 = vpop.xlane.xlu0 %4085
  %v4087 = vsel %vm785, %v3839, 0.0
  %4088 = vadd.xlane.f32.xlu0 %v4087
  %v4089 = vpop.xlane.xlu0 %4088
  %v4090 = vsel %vm785, %v3844, 0.0
  %4091 = vadd.xlane.f32.xlu0 %v4090
  %v4092 = vpop.xlane.xlu0 %4091
  %v4093 = vsel %vm785, %v3849, 0.0
  %4094 = vadd.xlane.f32.xlu0 %v4093
  %v4095 = vpop.xlane.xlu0 %4094
  %v4096 = vsel %vm785, %v3854, 0.0
  %4097 = vadd.xlane.f32.xlu0 %v4096
  %v4098 = vpop.xlane.xlu0 %4097
  %v4099 = vsel %vm785, %v3859, 0.0
  %4100 = vadd.xlane.f32.xlu0 %v4099
  %v4101 = vpop.xlane.xlu0 %4100
  %v4102 = vsel %vm785, %v3864, 0.0
  %4103 = vadd.xlane.f32.xlu0 %v4102
  %v4104 = vpop.xlane.xlu0 %4103
  %v4105 = vsel %vm785, %v3869, 0.0
  %4106 = vadd.xlane.f32.xlu0 %v4105
  %v4107 = vpop.xlane.xlu0 %4106
  %v4108 = vsel %vm785, %v3874, 0.0
  %4109 = vadd.xlane.f32.xlu0 %v4108
  %v4110 = vpop.xlane.xlu0 %4109
  %v4111 = vsel %vm785, %v3879, 0.0
  %4112 = vadd.xlane.f32.xlu0 %v4111
  %v4113 = vpop.xlane.xlu0 %4112
  %v4114 = vsel %vm785, %v3884, 0.0
  %4115 = vadd.xlane.f32.xlu0 %v4114
  %v4116 = vpop.xlane.xlu0 %4115
  %v4117 = vsel %vm785, %v3889, 0.0
  %4118 = vadd.xlane.f32.xlu0 %v4117
  %v4119 = vpop.xlane.xlu0 %4118
  %v4120 = vsel %vm785, %v3894, 0.0
  %4121 = vadd.xlane.f32.xlu0 %v4120
  %v4122 = vpop.xlane.xlu0 %4121
  %v4123 = vsel %vm785, %v3899, 0.0
  %4124 = vadd.xlane.f32.xlu0 %v4123
  %v4125 = vpop.xlane.xlu0 %4124
  %v4126 = vsel %vm785, %v3904, 0.0
  %4127 = vadd.xlane.f32.xlu0 %v4126
  %v4128 = vpop.xlane.xlu0 %4127
  %v4129 = vsel %vm785, %v3909, 0.0
  %4130 = vadd.xlane.f32.xlu0 %v4129
  %v4131 = vpop.xlane.xlu0 %4130
  %v4132 = vsel %vm785, %v3914, 0.0
  %4133 = vadd.xlane.f32.xlu0 %v4132
  %v4134 = vpop.xlane.xlu0 %4133
  %v4135 = vsel %vm785, %v3919, 0.0
  %4136 = vadd.xlane.f32.xlu0 %v4135
  %v4137 = vpop.xlane.xlu0 %4136
  %v4138 = vsel %vm785, %v3924, 0.0
  %4139 = vadd.xlane.f32.xlu0 %v4138
  %v4140 = vpop.xlane.xlu0 %4139
  %v4141 = vsel %vm785, %v3929, 0.0
  %4142 = vadd.xlane.f32.xlu0 %v4141
  %v4143 = vpop.xlane.xlu0 %4142
  %v4144 = vsel %vm785, %v3934, 0.0
  %4145 = vadd.xlane.f32.xlu0 %v4144
  %v4146 = vpop.xlane.xlu0 %4145
  %v4147 = vsel %vm785, %v3939, 0.0
  %4148 = vadd.xlane.f32.xlu0 %v4147
  %v4149 = vpop.xlane.xlu0 %4148
  %v4150 = vsel %vm785, %v3944, 0.0
  %4151 = vadd.xlane.f32.xlu0 %v4150
  %v4152 = vpop.xlane.xlu0 %4151
  %v4153 = vsel %vm785, %v3949, 0.0
  %4154 = vadd.xlane.f32.xlu0 %v4153
  %v4155 = vpop.xlane.xlu0 %4154
  %v4156 = vsel %vm785, %v3954, 0.0
  %4157 = vadd.xlane.f32.xlu0 %v4156
  %v4158 = vpop.xlane.xlu0 %4157
  %v4159 = vsel %vm785, %v3959, 0.0
  %4160 = vadd.xlane.f32.xlu0 %v4159
  %v4161 = vpop.xlane.xlu0 %4160
  %v4162 = vsel %vm785, %v3964, 0.0
  %4163 = vadd.xlane.f32.xlu0 %v4162
  %v4164 = vpop.xlane.xlu0 %4163
  %v4165 = vsel %vm785, %v3969, 0.0
  %4166 = vadd.xlane.f32.xlu0 %v4165
  %v4167 = vpop.xlane.xlu0 %4166
  %v4168 = vsel %vm785, %v3974, 0.0
  %4169 = vadd.xlane.f32.xlu0 %v4168
  %v4170 = vpop.xlane.xlu0 %4169
  %v4171 = vsel %vm785, %v3979, 0.0
  %4172 = vadd.xlane.f32.xlu0 %v4171
  %v4173 = vpop.xlane.xlu0 %4172
  %v4174 = vmul.f32 %v3984, 0.015625
  %v4175 = vmul.f32 %v3987, 0.015625
  %v4176 = vmul.f32 %v3990, 0.015625
  %v4177 = vmul.f32 %v3993, 0.015625
  %v4178 = vmul.f32 %v3996, 0.015625
  %v4179 = vmul.f32 %v3999, 0.015625
  %v4180 = vmul.f32 %v4002, 0.015625
  %v4181 = vmul.f32 %v4005, 0.015625
  %v4182 = vmul.f32 %v4008, 0.015625
  %v4183 = vmul.f32 %v4011, 0.015625
  %v4184 = vmul.f32 %v4014, 0.015625
  %v4185 = vmul.f32 %v4017, 0.015625
  %v4186 = vmul.f32 %v4020, 0.015625
  %v4187 = vmul.f32 %v4023, 0.015625
  %v4188 = vmul.f32 %v4026, 0.015625
  %v4189 = vmul.f32 %v4029, 0.015625
  %v4190 = vmul.f32 %v4032, 0.015625
  %v4191 = vmul.f32 %v4035, 0.015625
  %v4192 = vmul.f32 %v4038, 0.015625
  %v4193 = vmul.f32 %v4041, 0.015625
  %v4194 = vmul.f32 %v4044, 0.015625
  %v4195 = vmul.f32 %v4047, 0.015625
  %v4196 = vmul.f32 %v4050, 0.015625
  %v4197 = vmul.f32 %v4053, 0.015625
  %v4198 = vmul.f32 %v4056, 0.015625
  %v4199 = vmul.f32 %v4059, 0.015625
  %v4200 = vmul.f32 %v4062, 0.015625
  %v4201 = vmul.f32 %v4065, 0.015625
  %v4202 = vmul.f32 %v4068, 0.015625
  %v4203 = vmul.f32 %v4071, 0.015625
  %v4204 = vmul.f32 %v4074, 0.015625
  %v4205 = vmul.f32 %v4077, 0.015625
  %v4206 = vmul.f32 %v4080, 0.015625
  %v4207 = vmul.f32 %v4083, 0.015625
  %v4208 = vmul.f32 %v4086, 0.015625
  %v4209 = vmul.f32 %v4089, 0.015625
  %v4210 = vmul.f32 %v4092, 0.015625
  %v4211 = vmul.f32 %v4095, 0.015625
  %v4212 = vmul.f32 %v4098, 0.015625
  %v4213 = vmul.f32 %v4101, 0.015625
  %v4214 = vmul.f32 %v4104, 0.015625
  %v4215 = vmul.f32 %v4107, 0.015625
  %v4216 = vmul.f32 %v4110, 0.015625
  %v4217 = vmul.f32 %v4113, 0.015625
  %v4218 = vmul.f32 %v4116, 0.015625
  %v4219 = vmul.f32 %v4119, 0.015625
  %v4220 = vmul.f32 %v4122, 0.015625
  %v4221 = vmul.f32 %v4125, 0.015625
  %v4222 = vmul.f32 %v4128, 0.015625
  %v4223 = vmul.f32 %v4131, 0.015625
  %v4224 = vmul.f32 %v4134, 0.015625
  %v4225 = vmul.f32 %v4137, 0.015625
  %v4226 = vmul.f32 %v4140, 0.015625
  %v4227 = vmul.f32 %v4143, 0.015625
  %v4228 = vmul.f32 %v4146, 0.015625
  %v4229 = vmul.f32 %v4149, 0.015625
  %v4230 = vmul.f32 %v4152, 0.015625
  %v4231 = vmul.f32 %v4155, 0.015625
  %v4232 = vmul.f32 %v4158, 0.015625
  %v4233 = vmul.f32 %v4161, 0.015625
  %v4234 = vmul.f32 %v4164, 0.015625
  %v4235 = vmul.f32 %v4167, 0.015625
  %v4236 = vmul.f32 %v4170, 0.015625
  %v4237 = vmul.f32 %v4173, 0.015625
  %v4238 = vsub.f32 %v3664, %v4174
  %v4239 = vsub.f32 %v3669, %v4175
  %v4240 = vsub.f32 %v3674, %v4176
  %v4241 = vsub.f32 %v3679, %v4177
  %v4242 = vsub.f32 %v3684, %v4178
  %v4243 = vsub.f32 %v3689, %v4179
  %v4244 = vsub.f32 %v3694, %v4180
  %v4245 = vsub.f32 %v3699, %v4181
  %v4246 = vsub.f32 %v3704, %v4182
  %v4247 = vsub.f32 %v3709, %v4183
  %v4248 = vsub.f32 %v3714, %v4184
  %v4249 = vsub.f32 %v3719, %v4185
  %v4250 = vsub.f32 %v3724, %v4186
  %v4251 = vsub.f32 %v3729, %v4187
  %v4252 = vsub.f32 %v3734, %v4188
  %v4253 = vsub.f32 %v3739, %v4189
  %v4254 = vsub.f32 %v3744, %v4190
  %v4255 = vsub.f32 %v3749, %v4191
  %v4256 = vsub.f32 %v3754, %v4192
  %v4257 = vsub.f32 %v3759, %v4193
  %v4258 = vsub.f32 %v3764, %v4194
  %v4259 = vsub.f32 %v3769, %v4195
  %v4260 = vsub.f32 %v3774, %v4196
  %v4261 = vsub.f32 %v3779, %v4197
  %v4262 = vsub.f32 %v3784, %v4198
  %v4263 = vsub.f32 %v3789, %v4199
  %v4264 = vsub.f32 %v3794, %v4200
  %v4265 = vsub.f32 %v3799, %v4201
  %v4266 = vsub.f32 %v3804, %v4202
  %v4267 = vsub.f32 %v3809, %v4203
  %v4268 = vsub.f32 %v3814, %v4204
  %v4269 = vsub.f32 %v3819, %v4205
  %v4270 = vsub.f32 %v3824, %v4206
  %v4271 = vsub.f32 %v3829, %v4207
  %v4272 = vsub.f32 %v3834, %v4208
  %v4273 = vsub.f32 %v3839, %v4209
  %v4274 = vsub.f32 %v3844, %v4210
  %v4275 = vsub.f32 %v3849, %v4211
  %v4276 = vsub.f32 %v3854, %v4212
  %v4277 = vsub.f32 %v3859, %v4213
  %v4278 = vsub.f32 %v3864, %v4214
  %v4279 = vsub.f32 %v3869, %v4215
  %v4280 = vsub.f32 %v3874, %v4216
  %v4281 = vsub.f32 %v3879, %v4217
  %v4282 = vsub.f32 %v3884, %v4218
  %v4283 = vsub.f32 %v3889, %v4219
  %v4284 = vsub.f32 %v3894, %v4220
  %v4285 = vsub.f32 %v3899, %v4221
  %v4286 = vsub.f32 %v3904, %v4222
  %v4287 = vsub.f32 %v3909, %v4223
  %v4288 = vsub.f32 %v3914, %v4224
  %v4289 = vsub.f32 %v3919, %v4225
  %v4290 = vsub.f32 %v3924, %v4226
  %v4291 = vsub.f32 %v3929, %v4227
  %v4292 = vsub.f32 %v3934, %v4228
  %v4293 = vsub.f32 %v3939, %v4229
  %v4294 = vsub.f32 %v3944, %v4230
  %v4295 = vsub.f32 %v3949, %v4231
  %v4296 = vsub.f32 %v3954, %v4232
  %v4297 = vsub.f32 %v3959, %v4233
  %v4298 = vsub.f32 %v3964, %v4234
  %v4299 = vsub.f32 %v3969, %v4235
  %v4300 = vsub.f32 %v3974, %v4236
  %v4301 = vsub.f32 %v3979, %v4237
  %v4302 = vmul.f32 %v4238, %v4238
  %v4303 = vmul.f32 %v4239, %v4239
  %v4304 = vmul.f32 %v4240, %v4240
  %v4305 = vmul.f32 %v4241, %v4241
  %v4306 = vmul.f32 %v4242, %v4242
  %v4307 = vmul.f32 %v4243, %v4243
  %v4308 = vmul.f32 %v4244, %v4244
  %v4309 = vmul.f32 %v4245, %v4245
  %v4310 = vmul.f32 %v4246, %v4246
  %v4311 = vmul.f32 %v4247, %v4247
  %v4312 = vmul.f32 %v4248, %v4248
  %v4313 = vmul.f32 %v4249, %v4249
  %v4314 = vmul.f32 %v4250, %v4250
  %v4315 = vmul.f32 %v4251, %v4251
  %v4316 = vmul.f32 %v4252, %v4252
  %v4317 = vmul.f32 %v4253, %v4253
  %v4318 = vmul.f32 %v4254, %v4254
  %v4319 = vmul.f32 %v4255, %v4255
  %v4320 = vmul.f32 %v4256, %v4256
  %v4321 = vmul.f32 %v4257, %v4257
  %v4322 = vmul.f32 %v4258, %v4258
  %v4323 = vmul.f32 %v4259, %v4259
  %v4324 = vmul.f32 %v4260, %v4260
  %v4325 = vmul.f32 %v4261, %v4261
  %v4326 = vmul.f32 %v4262, %v4262
  %v4327 = vmul.f32 %v4263, %v4263
  %v4328 = vmul.f32 %v4264, %v4264
  %v4329 = vmul.f32 %v4265, %v4265
  %v4330 = vmul.f32 %v4266, %v4266
  %v4331 = vmul.f32 %v4267, %v4267
  %v4332 = vmul.f32 %v4268, %v4268
  %v4333 = vmul.f32 %v4269, %v4269
  %v4334 = vmul.f32 %v4270, %v4270
  %v4335 = vmul.f32 %v4271, %v4271
  %v4336 = vmul.f32 %v4272, %v4272
  %v4337 = vmul.f32 %v4273, %v4273
  %v4338 = vmul.f32 %v4274, %v4274
  %v4339 = vmul.f32 %v4275, %v4275
  %v4340 = vmul.f32 %v4276, %v4276
  %v4341 = vmul.f32 %v4277, %v4277
  %v4342 = vmul.f32 %v4278, %v4278
  %v4343 = vmul.f32 %v4279, %v4279
  %v4344 = vmul.f32 %v4280, %v4280
  %v4345 = vmul.f32 %v4281, %v4281
  %v4346 = vmul.f32 %v4282, %v4282
  %v4347 = vmul.f32 %v4283, %v4283
  %v4348 = vmul.f32 %v4284, %v4284
  %v4349 = vmul.f32 %v4285, %v4285
  %v4350 = vmul.f32 %v4286, %v4286
  %v4351 = vmul.f32 %v4287, %v4287
  %v4352 = vmul.f32 %v4288, %v4288
  %v4353 = vmul.f32 %v4289, %v4289
  %v4354 = vmul.f32 %v4290, %v4290
  %v4355 = vmul.f32 %v4291, %v4291
  %v4356 = vmul.f32 %v4292, %v4292
  %v4357 = vmul.f32 %v4293, %v4293
  %v4358 = vmul.f32 %v4294, %v4294
  %v4359 = vmul.f32 %v4295, %v4295
  %v4360 = vmul.f32 %v4296, %v4296
  %v4361 = vmul.f32 %v4297, %v4297
  %v4362 = vmul.f32 %v4298, %v4298
  %v4363 = vmul.f32 %v4299, %v4299
  %v4364 = vmul.f32 %v4300, %v4300
  %v4365 = vmul.f32 %v4301, %v4301
  %v4366 = vsel %vm785, %v4302, 0.0
  %4367 = vadd.xlane.f32.xlu0 %v4366
  %v4368 = vpop.xlane.xlu0 %4367
  %v4369 = vsel %vm785, %v4303, 0.0
  %4370 = vadd.xlane.f32.xlu0 %v4369
  %v4371 = vpop.xlane.xlu0 %4370
  %v4372 = vsel %vm785, %v4304, 0.0
  %4373 = vadd.xlane.f32.xlu0 %v4372
  %v4374 = vpop.xlane.xlu0 %4373
  %v4375 = vsel %vm785, %v4305, 0.0
  %4376 = vadd.xlane.f32.xlu0 %v4375
  %v4377 = vpop.xlane.xlu0 %4376
  %v4378 = vsel %vm785, %v4306, 0.0
  %4379 = vadd.xlane.f32.xlu0 %v4378
  %v4380 = vpop.xlane.xlu0 %4379
  %v4381 = vsel %vm785, %v4307, 0.0
  %4382 = vadd.xlane.f32.xlu0 %v4381
  %v4383 = vpop.xlane.xlu0 %4382
  %v4384 = vsel %vm785, %v4308, 0.0
  %4385 = vadd.xlane.f32.xlu0 %v4384
  %v4386 = vpop.xlane.xlu0 %4385
  %v4387 = vsel %vm785, %v4309, 0.0
  %4388 = vadd.xlane.f32.xlu0 %v4387
  %v4389 = vpop.xlane.xlu0 %4388
  %v4390 = vsel %vm785, %v4310, 0.0
  %4391 = vadd.xlane.f32.xlu0 %v4390
  %v4392 = vpop.xlane.xlu0 %4391
  %v4393 = vsel %vm785, %v4311, 0.0
  %4394 = vadd.xlane.f32.xlu0 %v4393
  %v4395 = vpop.xlane.xlu0 %4394
  %v4396 = vsel %vm785, %v4312, 0.0
  %4397 = vadd.xlane.f32.xlu0 %v4396
  %v4398 = vpop.xlane.xlu0 %4397
  %v4399 = vsel %vm785, %v4313, 0.0
  %4400 = vadd.xlane.f32.xlu0 %v4399
  %v4401 = vpop.xlane.xlu0 %4400
  %v4402 = vsel %vm785, %v4314, 0.0
  %4403 = vadd.xlane.f32.xlu0 %v4402
  %v4404 = vpop.xlane.xlu0 %4403
  %v4405 = vsel %vm785, %v4315, 0.0
  %4406 = vadd.xlane.f32.xlu0 %v4405
  %v4407 = vpop.xlane.xlu0 %4406
  %v4408 = vsel %vm785, %v4316, 0.0
  %4409 = vadd.xlane.f32.xlu0 %v4408
  %v4410 = vpop.xlane.xlu0 %4409
  %v4411 = vsel %vm785, %v4317, 0.0
  %4412 = vadd.xlane.f32.xlu0 %v4411
  %v4413 = vpop.xlane.xlu0 %4412
  %v4414 = vsel %vm785, %v4318, 0.0
  %4415 = vadd.xlane.f32.xlu0 %v4414
  %v4416 = vpop.xlane.xlu0 %4415
  %v4417 = vsel %vm785, %v4319, 0.0
  %4418 = vadd.xlane.f32.xlu0 %v4417
  %v4419 = vpop.xlane.xlu0 %4418
  %v4420 = vsel %vm785, %v4320, 0.0
  %4421 = vadd.xlane.f32.xlu0 %v4420
  %v4422 = vpop.xlane.xlu0 %4421
  %v4423 = vsel %vm785, %v4321, 0.0
  %4424 = vadd.xlane.f32.xlu0 %v4423
  %v4425 = vpop.xlane.xlu0 %4424
  %v4426 = vsel %vm785, %v4322, 0.0
  %4427 = vadd.xlane.f32.xlu0 %v4426
  %v4428 = vpop.xlane.xlu0 %4427
  %v4429 = vsel %vm785, %v4323, 0.0
  %4430 = vadd.xlane.f32.xlu0 %v4429
  %v4431 = vpop.xlane.xlu0 %4430
  %v4432 = vsel %vm785, %v4324, 0.0
  %4433 = vadd.xlane.f32.xlu0 %v4432
  %v4434 = vpop.xlane.xlu0 %4433
  %v4435 = vsel %vm785, %v4325, 0.0
  %4436 = vadd.xlane.f32.xlu0 %v4435
  %v4437 = vpop.xlane.xlu0 %4436
  %v4438 = vsel %vm785, %v4326, 0.0
  %4439 = vadd.xlane.f32.xlu0 %v4438
  %v4440 = vpop.xlane.xlu0 %4439
  %v4441 = vsel %vm785, %v4327, 0.0
  %4442 = vadd.xlane.f32.xlu0 %v4441
  %v4443 = vpop.xlane.xlu0 %4442
  %v4444 = vsel %vm785, %v4328, 0.0
  %4445 = vadd.xlane.f32.xlu0 %v4444
  %v4446 = vpop.xlane.xlu0 %4445
  %v4447 = vsel %vm785, %v4329, 0.0
  %4448 = vadd.xlane.f32.xlu0 %v4447
  %v4449 = vpop.xlane.xlu0 %4448
  %v4450 = vsel %vm785, %v4330, 0.0
  %4451 = vadd.xlane.f32.xlu0 %v4450
  %v4452 = vpop.xlane.xlu0 %4451
  %v4453 = vsel %vm785, %v4331, 0.0
  %4454 = vadd.xlane.f32.xlu0 %v4453
  %v4455 = vpop.xlane.xlu0 %4454
  %v4456 = vsel %vm785, %v4332, 0.0
  %4457 = vadd.xlane.f32.xlu0 %v4456
  %v4458 = vpop.xlane.xlu0 %4457
  %v4459 = vsel %vm785, %v4333, 0.0
  %4460 = vadd.xlane.f32.xlu0 %v4459
  %v4461 = vpop.xlane.xlu0 %4460
  %v4462 = vsel %vm785, %v4334, 0.0
  %4463 = vadd.xlane.f32.xlu0 %v4462
  %v4464 = vpop.xlane.xlu0 %4463
  %v4465 = vsel %vm785, %v4335, 0.0
  %4466 = vadd.xlane.f32.xlu0 %v4465
  %v4467 = vpop.xlane.xlu0 %4466
  %v4468 = vsel %vm785, %v4336, 0.0
  %4469 = vadd.xlane.f32.xlu0 %v4468
  %v4470 = vpop.xlane.xlu0 %4469
  %v4471 = vsel %vm785, %v4337, 0.0
  %4472 = vadd.xlane.f32.xlu0 %v4471
  %v4473 = vpop.xlane.xlu0 %4472
  %v4474 = vsel %vm785, %v4338, 0.0
  %4475 = vadd.xlane.f32.xlu0 %v4474
  %v4476 = vpop.xlane.xlu0 %4475
  %v4477 = vsel %vm785, %v4339, 0.0
  %4478 = vadd.xlane.f32.xlu0 %v4477
  %v4479 = vpop.xlane.xlu0 %4478
  %v4480 = vsel %vm785, %v4340, 0.0
  %4481 = vadd.xlane.f32.xlu0 %v4480
  %v4482 = vpop.xlane.xlu0 %4481
  %v4483 = vsel %vm785, %v4341, 0.0
  %4484 = vadd.xlane.f32.xlu0 %v4483
  %v4485 = vpop.xlane.xlu0 %4484
  %v4486 = vsel %vm785, %v4342, 0.0
  %4487 = vadd.xlane.f32.xlu0 %v4486
  %v4488 = vpop.xlane.xlu0 %4487
  %v4489 = vsel %vm785, %v4343, 0.0
  %4490 = vadd.xlane.f32.xlu0 %v4489
  %v4491 = vpop.xlane.xlu0 %4490
  %v4492 = vsel %vm785, %v4344, 0.0
  %4493 = vadd.xlane.f32.xlu0 %v4492
  %v4494 = vpop.xlane.xlu0 %4493
  %v4495 = vsel %vm785, %v4345, 0.0
  %4496 = vadd.xlane.f32.xlu0 %v4495
  %v4497 = vpop.xlane.xlu0 %4496
  %v4498 = vsel %vm785, %v4346, 0.0
  %4499 = vadd.xlane.f32.xlu0 %v4498
  %v4500 = vpop.xlane.xlu0 %4499
  %v4501 = vsel %vm785, %v4347, 0.0
  %4502 = vadd.xlane.f32.xlu0 %v4501
  %v4503 = vpop.xlane.xlu0 %4502
  %v4504 = vsel %vm785, %v4348, 0.0
  %4505 = vadd.xlane.f32.xlu0 %v4504
  %v4506 = vpop.xlane.xlu0 %4505
  %v4507 = vsel %vm785, %v4349, 0.0
  %4508 = vadd.xlane.f32.xlu0 %v4507
  %v4509 = vpop.xlane.xlu0 %4508
  %v4510 = vsel %vm785, %v4350, 0.0
  %4511 = vadd.xlane.f32.xlu0 %v4510
  %v4512 = vpop.xlane.xlu0 %4511
  %v4513 = vsel %vm785, %v4351, 0.0
  %4514 = vadd.xlane.f32.xlu0 %v4513
  %v4515 = vpop.xlane.xlu0 %4514
  %v4516 = vsel %vm785, %v4352, 0.0
  %4517 = vadd.xlane.f32.xlu0 %v4516
  %v4518 = vpop.xlane.xlu0 %4517
  %v4519 = vsel %vm785, %v4353, 0.0
  %4520 = vadd.xlane.f32.xlu0 %v4519
  %v4521 = vpop.xlane.xlu0 %4520
  %v4522 = vsel %vm785, %v4354, 0.0
  %4523 = vadd.xlane.f32.xlu0 %v4522
  %v4524 = vpop.xlane.xlu0 %4523
  %v4525 = vsel %vm785, %v4355, 0.0
  %4526 = vadd.xlane.f32.xlu0 %v4525
  %v4527 = vpop.xlane.xlu0 %4526
  %v4528 = vsel %vm785, %v4356, 0.0
  %4529 = vadd.xlane.f32.xlu0 %v4528
  %v4530 = vpop.xlane.xlu0 %4529
  %v4531 = vsel %vm785, %v4357, 0.0
  %4532 = vadd.xlane.f32.xlu0 %v4531
  %v4533 = vpop.xlane.xlu0 %4532
  %v4534 = vsel %vm785, %v4358, 0.0
  %4535 = vadd.xlane.f32.xlu0 %v4534
  %v4536 = vpop.xlane.xlu0 %4535
  %v4537 = vsel %vm785, %v4359, 0.0
  %4538 = vadd.xlane.f32.xlu0 %v4537
  %v4539 = vpop.xlane.xlu0 %4538
  %v4540 = vsel %vm785, %v4360, 0.0
  %4541 = vadd.xlane.f32.xlu0 %v4540
  %v4542 = vpop.xlane.xlu0 %4541
  %v4543 = vsel %vm785, %v4361, 0.0
  %4544 = vadd.xlane.f32.xlu0 %v4543
  %v4545 = vpop.xlane.xlu0 %4544
  %v4546 = vsel %vm785, %v4362, 0.0
  %4547 = vadd.xlane.f32.xlu0 %v4546
  %v4548 = vpop.xlane.xlu0 %4547
  %v4549 = vsel %vm785, %v4363, 0.0
  %4550 = vadd.xlane.f32.xlu0 %v4549
  %v4551 = vpop.xlane.xlu0 %4550
  %v4552 = vsel %vm785, %v4364, 0.0
  %4553 = vadd.xlane.f32.xlu0 %v4552
  %v4554 = vpop.xlane.xlu0 %4553
  %v4555 = vsel %vm785, %v4365, 0.0
  %4556 = vadd.xlane.f32.xlu0 %v4555
  %v4557 = vpop.xlane.xlu0 %4556
  %v4558 = vmul.f32 %v4368, 0.015625
  %v4559 = vmul.f32 %v4371, 0.015625
  %v4560 = vmul.f32 %v4374, 0.015625
  %v4561 = vmul.f32 %v4377, 0.015625
  %v4562 = vmul.f32 %v4380, 0.015625
  %v4563 = vmul.f32 %v4383, 0.015625
  %v4564 = vmul.f32 %v4386, 0.015625
  %v4565 = vmul.f32 %v4389, 0.015625
  %v4566 = vmul.f32 %v4392, 0.015625
  %v4567 = vmul.f32 %v4395, 0.015625
  %v4568 = vmul.f32 %v4398, 0.015625
  %v4569 = vmul.f32 %v4401, 0.015625
  %v4570 = vmul.f32 %v4404, 0.015625
  %v4571 = vmul.f32 %v4407, 0.015625
  %v4572 = vmul.f32 %v4410, 0.015625
  %v4573 = vmul.f32 %v4413, 0.015625
  %v4574 = vmul.f32 %v4416, 0.015625
  %v4575 = vmul.f32 %v4419, 0.015625
  %v4576 = vmul.f32 %v4422, 0.015625
  %v4577 = vmul.f32 %v4425, 0.015625
  %v4578 = vmul.f32 %v4428, 0.015625
  %v4579 = vmul.f32 %v4431, 0.015625
  %v4580 = vmul.f32 %v4434, 0.015625
  %v4581 = vmul.f32 %v4437, 0.015625
  %v4582 = vmul.f32 %v4440, 0.015625
  %v4583 = vmul.f32 %v4443, 0.015625
  %v4584 = vmul.f32 %v4446, 0.015625
  %v4585 = vmul.f32 %v4449, 0.015625
  %v4586 = vmul.f32 %v4452, 0.015625
  %v4587 = vmul.f32 %v4455, 0.015625
  %v4588 = vmul.f32 %v4458, 0.015625
  %v4589 = vmul.f32 %v4461, 0.015625
  %v4590 = vmul.f32 %v4464, 0.015625
  %v4591 = vmul.f32 %v4467, 0.015625
  %v4592 = vmul.f32 %v4470, 0.015625
  %v4593 = vmul.f32 %v4473, 0.015625
  %v4594 = vmul.f32 %v4476, 0.015625
  %v4595 = vmul.f32 %v4479, 0.015625
  %v4596 = vmul.f32 %v4482, 0.015625
  %v4597 = vmul.f32 %v4485, 0.015625
  %v4598 = vmul.f32 %v4488, 0.015625
  %v4599 = vmul.f32 %v4491, 0.015625
  %v4600 = vmul.f32 %v4494, 0.015625
  %v4601 = vmul.f32 %v4497, 0.015625
  %v4602 = vmul.f32 %v4500, 0.015625
  %v4603 = vmul.f32 %v4503, 0.015625
  %v4604 = vmul.f32 %v4506, 0.015625
  %v4605 = vmul.f32 %v4509, 0.015625
  %v4606 = vmul.f32 %v4512, 0.015625
  %v4607 = vmul.f32 %v4515, 0.015625
  %v4608 = vmul.f32 %v4518, 0.015625
  %v4609 = vmul.f32 %v4521, 0.015625
  %v4610 = vmul.f32 %v4524, 0.015625
  %v4611 = vmul.f32 %v4527, 0.015625
  %v4612 = vmul.f32 %v4530, 0.015625
  %v4613 = vmul.f32 %v4533, 0.015625
  %v4614 = vmul.f32 %v4536, 0.015625
  %v4615 = vmul.f32 %v4539, 0.015625
  %v4616 = vmul.f32 %v4542, 0.015625
  %v4617 = vmul.f32 %v4545, 0.015625
  %v4618 = vmul.f32 %v4548, 0.015625
  %v4619 = vmul.f32 %v4551, 0.015625
  %v4620 = vmul.f32 %v4554, 0.015625
  %v4621 = vmul.f32 %v4557, 0.015625
  %v4622 = vadd.f32 %v4558, 1e-05
  %v4623 = vadd.f32 %v4559, 1e-05
  %v4624 = vadd.f32 %v4560, 1e-05
  %v4625 = vadd.f32 %v4561, 1e-05
  %v4626 = vadd.f32 %v4562, 1e-05
  %v4627 = vadd.f32 %v4563, 1e-05
  %v4628 = vadd.f32 %v4564, 1e-05
  %v4629 = vadd.f32 %v4565, 1e-05
  %v4630 = vadd.f32 %v4566, 1e-05
  %v4631 = vadd.f32 %v4567, 1e-05
  %v4632 = vadd.f32 %v4568, 1e-05
  %v4633 = vadd.f32 %v4569, 1e-05
  %v4634 = vadd.f32 %v4570, 1e-05
  %v4635 = vadd.f32 %v4571, 1e-05
  %v4636 = vadd.f32 %v4572, 1e-05
  %v4637 = vadd.f32 %v4573, 1e-05
  %v4638 = vadd.f32 %v4574, 1e-05
  %v4639 = vadd.f32 %v4575, 1e-05
  %v4640 = vadd.f32 %v4576, 1e-05
  %v4641 = vadd.f32 %v4577, 1e-05
  %v4642 = vadd.f32 %v4578, 1e-05
  %v4643 = vadd.f32 %v4579, 1e-05
  %v4644 = vadd.f32 %v4580, 1e-05
  %v4645 = vadd.f32 %v4581, 1e-05
  %v4646 = vadd.f32 %v4582, 1e-05
  %v4647 = vadd.f32 %v4583, 1e-05
  %v4648 = vadd.f32 %v4584, 1e-05
  %v4649 = vadd.f32 %v4585, 1e-05
  %v4650 = vadd.f32 %v4586, 1e-05
  %v4651 = vadd.f32 %v4587, 1e-05
  %v4652 = vadd.f32 %v4588, 1e-05
  %v4653 = vadd.f32 %v4589, 1e-05
  %v4654 = vadd.f32 %v4590, 1e-05
  %v4655 = vadd.f32 %v4591, 1e-05
  %v4656 = vadd.f32 %v4592, 1e-05
  %v4657 = vadd.f32 %v4593, 1e-05
  %v4658 = vadd.f32 %v4594, 1e-05
  %v4659 = vadd.f32 %v4595, 1e-05
  %v4660 = vadd.f32 %v4596, 1e-05
  %v4661 = vadd.f32 %v4597, 1e-05
  %v4662 = vadd.f32 %v4598, 1e-05
  %v4663 = vadd.f32 %v4599, 1e-05
  %v4664 = vadd.f32 %v4600, 1e-05
  %v4665 = vadd.f32 %v4601, 1e-05
  %v4666 = vadd.f32 %v4602, 1e-05
  %v4667 = vadd.f32 %v4603, 1e-05
  %v4668 = vadd.f32 %v4604, 1e-05
  %v4669 = vadd.f32 %v4605, 1e-05
  %v4670 = vadd.f32 %v4606, 1e-05
  %v4671 = vadd.f32 %v4607, 1e-05
  %v4672 = vadd.f32 %v4608, 1e-05
  %v4673 = vadd.f32 %v4609, 1e-05
  %v4674 = vadd.f32 %v4610, 1e-05
  %v4675 = vadd.f32 %v4611, 1e-05
  %v4676 = vadd.f32 %v4612, 1e-05
  %v4677 = vadd.f32 %v4613, 1e-05
  %v4678 = vadd.f32 %v4614, 1e-05
  %v4679 = vadd.f32 %v4615, 1e-05
  %v4680 = vadd.f32 %v4616, 1e-05
  %v4681 = vadd.f32 %v4617, 1e-05
  %v4682 = vadd.f32 %v4618, 1e-05
  %v4683 = vadd.f32 %v4619, 1e-05
  %v4684 = vadd.f32 %v4620, 1e-05
  %v4685 = vadd.f32 %v4621, 1e-05
  %v4686 = vrsqrt.pop %v4622
  %v4687 = vrsqrt.pop %v4623
  %v4688 = vrsqrt.pop %v4624
  %v4689 = vrsqrt.pop %v4625
  %v4690 = vrsqrt.pop %v4626
  %v4691 = vrsqrt.pop %v4627
  %v4692 = vrsqrt.pop %v4628
  %v4693 = vrsqrt.pop %v4629
  %v4694 = vrsqrt.pop %v4630
  %v4695 = vrsqrt.pop %v4631
  %v4696 = vrsqrt.pop %v4632
  %v4697 = vrsqrt.pop %v4633
  %v4698 = vrsqrt.pop %v4634
  %v4699 = vrsqrt.pop %v4635
  %v4700 = vrsqrt.pop %v4636
  %v4701 = vrsqrt.pop %v4637
  %v4702 = vrsqrt.pop %v4638
  %v4703 = vrsqrt.pop %v4639
  %v4704 = vrsqrt.pop %v4640
  %v4705 = vrsqrt.pop %v4641
  %v4706 = vrsqrt.pop %v4642
  %v4707 = vrsqrt.pop %v4643
  %v4708 = vrsqrt.pop %v4644
  %v4709 = vrsqrt.pop %v4645
  %v4710 = vrsqrt.pop %v4646
  %v4711 = vrsqrt.pop %v4647
  %v4712 = vrsqrt.pop %v4648
  %v4713 = vrsqrt.pop %v4649
  %v4714 = vrsqrt.pop %v4650
  %v4715 = vrsqrt.pop %v4651
  %v4716 = vrsqrt.pop %v4652
  %v4717 = vrsqrt.pop %v4653
  %v4718 = vrsqrt.pop %v4654
  %v4719 = vrsqrt.pop %v4655
  %v4720 = vrsqrt.pop %v4656
  %v4721 = vrsqrt.pop %v4657
  %v4722 = vrsqrt.pop %v4658
  %v4723 = vrsqrt.pop %v4659
  %v4724 = vrsqrt.pop %v4660
  %v4725 = vrsqrt.pop %v4661
  %v4726 = vrsqrt.pop %v4662
  %v4727 = vrsqrt.pop %v4663
  %v4728 = vrsqrt.pop %v4664
  %v4729 = vrsqrt.pop %v4665
  %v4730 = vrsqrt.pop %v4666
  %v4731 = vrsqrt.pop %v4667
  %v4732 = vrsqrt.pop %v4668
  %v4733 = vrsqrt.pop %v4669
  %v4734 = vrsqrt.pop %v4670
  %v4735 = vrsqrt.pop %v4671
  %v4736 = vrsqrt.pop %v4672
  %v4737 = vrsqrt.pop %v4673
  %v4738 = vrsqrt.pop %v4674
  %v4739 = vrsqrt.pop %v4675
  %v4740 = vrsqrt.pop %v4676
  %v4741 = vrsqrt.pop %v4677
  %v4742 = vrsqrt.pop %v4678
  %v4743 = vrsqrt.pop %v4679
  %v4744 = vrsqrt.pop %v4680
  %v4745 = vrsqrt.pop %v4681
  %v4746 = vrsqrt.pop %v4682
  %v4747 = vrsqrt.pop %v4683
  %v4748 = vrsqrt.pop %v4684
  %v4749 = vrsqrt.pop %v4685
  %v4750 = vmul.f32 %v4238, %v4686
  %v4751 = vmul.f32 %v4239, %v4687
  %v4752 = vmul.f32 %v4240, %v4688
  %v4753 = vmul.f32 %v4241, %v4689
  %v4754 = vmul.f32 %v4242, %v4690
  %v4755 = vmul.f32 %v4243, %v4691
  %v4756 = vmul.f32 %v4244, %v4692
  %v4757 = vmul.f32 %v4245, %v4693
  %v4758 = vmul.f32 %v4246, %v4694
  %v4759 = vmul.f32 %v4247, %v4695
  %v4760 = vmul.f32 %v4248, %v4696
  %v4761 = vmul.f32 %v4249, %v4697
  %v4762 = vmul.f32 %v4250, %v4698
  %v4763 = vmul.f32 %v4251, %v4699
  %v4764 = vmul.f32 %v4252, %v4700
  %v4765 = vmul.f32 %v4253, %v4701
  %v4766 = vmul.f32 %v4254, %v4702
  %v4767 = vmul.f32 %v4255, %v4703
  %v4768 = vmul.f32 %v4256, %v4704
  %v4769 = vmul.f32 %v4257, %v4705
  %v4770 = vmul.f32 %v4258, %v4706
  %v4771 = vmul.f32 %v4259, %v4707
  %v4772 = vmul.f32 %v4260, %v4708
  %v4773 = vmul.f32 %v4261, %v4709
  %v4774 = vmul.f32 %v4262, %v4710
  %v4775 = vmul.f32 %v4263, %v4711
  %v4776 = vmul.f32 %v4264, %v4712
  %v4777 = vmul.f32 %v4265, %v4713
  %v4778 = vmul.f32 %v4266, %v4714
  %v4779 = vmul.f32 %v4267, %v4715
  %v4780 = vmul.f32 %v4268, %v4716
  %v4781 = vmul.f32 %v4269, %v4717
  %v4782 = vmul.f32 %v4270, %v4718
  %v4783 = vmul.f32 %v4271, %v4719
  %v4784 = vmul.f32 %v4272, %v4720
  %v4785 = vmul.f32 %v4273, %v4721
  %v4786 = vmul.f32 %v4274, %v4722
  %v4787 = vmul.f32 %v4275, %v4723
  %v4788 = vmul.f32 %v4276, %v4724
  %v4789 = vmul.f32 %v4277, %v4725
  %v4790 = vmul.f32 %v4278, %v4726
  %v4791 = vmul.f32 %v4279, %v4727
  %v4792 = vmul.f32 %v4280, %v4728
  %v4793 = vmul.f32 %v4281, %v4729
  %v4794 = vmul.f32 %v4282, %v4730
  %v4795 = vmul.f32 %v4283, %v4731
  %v4796 = vmul.f32 %v4284, %v4732
  %v4797 = vmul.f32 %v4285, %v4733
  %v4798 = vmul.f32 %v4286, %v4734
  %v4799 = vmul.f32 %v4287, %v4735
  %v4800 = vmul.f32 %v4288, %v4736
  %v4801 = vmul.f32 %v4289, %v4737
  %v4802 = vmul.f32 %v4290, %v4738
  %v4803 = vmul.f32 %v4291, %v4739
  %v4804 = vmul.f32 %v4292, %v4740
  %v4805 = vmul.f32 %v4293, %v4741
  %v4806 = vmul.f32 %v4294, %v4742
  %v4807 = vmul.f32 %v4295, %v4743
  %v4808 = vmul.f32 %v4296, %v4744
  %v4809 = vmul.f32 %v4297, %v4745
  %v4810 = vmul.f32 %v4298, %v4746
  %v4811 = vmul.f32 %v4299, %v4747
  %v4812 = vmul.f32 %v4300, %v4748
  %v4813 = vmul.f32 %v4301, %v4749
  %v4814 = vld [vmem:[%s14] sm:$0x1]
  %v4816 = vlaneseq
  %v4817 = vshrl.u32 %v4816, 7
  %v4818 = vsub.s32 0, %v4817
  %v4819 = vrot.slane %v4814, %v4818
  %v4821 = vmul.f32 %v4750, %v4819
  %v4822 = vmul.f32 %v4751, %v4819
  %v4823 = vmul.f32 %v4752, %v4819
  %v4824 = vmul.f32 %v4753, %v4819
  %v4825 = vmul.f32 %v4754, %v4819
  %v4826 = vmul.f32 %v4755, %v4819
  %v4827 = vmul.f32 %v4756, %v4819
  %v4828 = vmul.f32 %v4757, %v4819
  %v4829 = vmul.f32 %v4758, %v4819
  %v4830 = vmul.f32 %v4759, %v4819
  %v4831 = vmul.f32 %v4760, %v4819
  %v4832 = vmul.f32 %v4761, %v4819
  %v4833 = vmul.f32 %v4762, %v4819
  %v4834 = vmul.f32 %v4763, %v4819
  %v4835 = vmul.f32 %v4764, %v4819
  %v4836 = vmul.f32 %v4765, %v4819
  %v4837 = vmul.f32 %v4766, %v4819
  %v4838 = vmul.f32 %v4767, %v4819
  %v4839 = vmul.f32 %v4768, %v4819
  %v4840 = vmul.f32 %v4769, %v4819
  %v4841 = vmul.f32 %v4770, %v4819
  %v4842 = vmul.f32 %v4771, %v4819
  %v4843 = vmul.f32 %v4772, %v4819
  %v4844 = vmul.f32 %v4773, %v4819
  %v4845 = vmul.f32 %v4774, %v4819
  %v4846 = vmul.f32 %v4775, %v4819
  %v4847 = vmul.f32 %v4776, %v4819
  %v4848 = vmul.f32 %v4777, %v4819
  %v4849 = vmul.f32 %v4778, %v4819
  %v4850 = vmul.f32 %v4779, %v4819
  %v4851 = vmul.f32 %v4780, %v4819
  %v4852 = vmul.f32 %v4781, %v4819
  %v4853 = vmul.f32 %v4782, %v4819
  %v4854 = vmul.f32 %v4783, %v4819
  %v4855 = vmul.f32 %v4784, %v4819
  %v4856 = vmul.f32 %v4785, %v4819
  %v4857 = vmul.f32 %v4786, %v4819
  %v4858 = vmul.f32 %v4787, %v4819
  %v4859 = vmul.f32 %v4788, %v4819
  %v4860 = vmul.f32 %v4789, %v4819
  %v4861 = vmul.f32 %v4790, %v4819
  %v4862 = vmul.f32 %v4791, %v4819
  %v4863 = vmul.f32 %v4792, %v4819
  %v4864 = vmul.f32 %v4793, %v4819
  %v4865 = vmul.f32 %v4794, %v4819
  %v4866 = vmul.f32 %v4795, %v4819
  %v4867 = vmul.f32 %v4796, %v4819
  %v4868 = vmul.f32 %v4797, %v4819
  %v4869 = vmul.f32 %v4798, %v4819
  %v4870 = vmul.f32 %v4799, %v4819
  %v4871 = vmul.f32 %v4800, %v4819
  %v4872 = vmul.f32 %v4801, %v4819
  %v4873 = vmul.f32 %v4802, %v4819
  %v4874 = vmul.f32 %v4803, %v4819
  %v4875 = vmul.f32 %v4804, %v4819
  %v4876 = vmul.f32 %v4805, %v4819
  %v4877 = vmul.f32 %v4806, %v4819
  %v4878 = vmul.f32 %v4807, %v4819
  %v4879 = vmul.f32 %v4808, %v4819
  %v4880 = vmul.f32 %v4809, %v4819
  %v4881 = vmul.f32 %v4810, %v4819
  %v4882 = vmul.f32 %v4811, %v4819
  %v4883 = vmul.f32 %v4812, %v4819
  %v4884 = vmul.f32 %v4813, %v4819
  %v4885 = vld [vmem:[%s15] sm:$0x1]
  %v4887 = vlaneseq
  %v4888 = vshrl.u32 %v4887, 7
  %v4889 = vsub.s32 0, %v4888
  %v4890 = vrot.slane %v4885, %v4889
  %v4892 = vadd.f32 %v4821, %v4890
  %v4893 = vadd.f32 %v4822, %v4890
  %v4894 = vadd.f32 %v4823, %v4890
  %v4895 = vadd.f32 %v4824, %v4890
  %v4896 = vadd.f32 %v4825, %v4890
  %v4897 = vadd.f32 %v4826, %v4890
  %v4898 = vadd.f32 %v4827, %v4890
  %v4899 = vadd.f32 %v4828, %v4890
  %v4900 = vadd.f32 %v4829, %v4890
  %v4901 = vadd.f32 %v4830, %v4890
  %v4902 = vadd.f32 %v4831, %v4890
  %v4903 = vadd.f32 %v4832, %v4890
  %v4904 = vadd.f32 %v4833, %v4890
  %v4905 = vadd.f32 %v4834, %v4890
  %v4906 = vadd.f32 %v4835, %v4890
  %v4907 = vadd.f32 %v4836, %v4890
  %v4908 = vadd.f32 %v4837, %v4890
  %v4909 = vadd.f32 %v4838, %v4890
  %v4910 = vadd.f32 %v4839, %v4890
  %v4911 = vadd.f32 %v4840, %v4890
  %v4912 = vadd.f32 %v4841, %v4890
  %v4913 = vadd.f32 %v4842, %v4890
  %v4914 = vadd.f32 %v4843, %v4890
  %v4915 = vadd.f32 %v4844, %v4890
  %v4916 = vadd.f32 %v4845, %v4890
  %v4917 = vadd.f32 %v4846, %v4890
  %v4918 = vadd.f32 %v4847, %v4890
  %v4919 = vadd.f32 %v4848, %v4890
  %v4920 = vadd.f32 %v4849, %v4890
  %v4921 = vadd.f32 %v4850, %v4890
  %v4922 = vadd.f32 %v4851, %v4890
  %v4923 = vadd.f32 %v4852, %v4890
  %v4924 = vadd.f32 %v4853, %v4890
  %v4925 = vadd.f32 %v4854, %v4890
  %v4926 = vadd.f32 %v4855, %v4890
  %v4927 = vadd.f32 %v4856, %v4890
  %v4928 = vadd.f32 %v4857, %v4890
  %v4929 = vadd.f32 %v4858, %v4890
  %v4930 = vadd.f32 %v4859, %v4890
  %v4931 = vadd.f32 %v4860, %v4890
  %v4932 = vadd.f32 %v4861, %v4890
  %v4933 = vadd.f32 %v4862, %v4890
  %v4934 = vadd.f32 %v4863, %v4890
  %v4935 = vadd.f32 %v4864, %v4890
  %v4936 = vadd.f32 %v4865, %v4890
  %v4937 = vadd.f32 %v4866, %v4890
  %v4938 = vadd.f32 %v4867, %v4890
  %v4939 = vadd.f32 %v4868, %v4890
  %v4940 = vadd.f32 %v4869, %v4890
  %v4941 = vadd.f32 %v4870, %v4890
  %v4942 = vadd.f32 %v4871, %v4890
  %v4943 = vadd.f32 %v4872, %v4890
  %v4944 = vadd.f32 %v4873, %v4890
  %v4945 = vadd.f32 %v4874, %v4890
  %v4946 = vadd.f32 %v4875, %v4890
  %v4947 = vadd.f32 %v4876, %v4890
  %v4948 = vadd.f32 %v4877, %v4890
  %v4949 = vadd.f32 %v4878, %v4890
  %v4950 = vadd.f32 %v4879, %v4890
  %v4951 = vadd.f32 %v4880, %v4890
  %v4952 = vadd.f32 %v4881, %v4890
  %v4953 = vadd.f32 %v4882, %v4890
  %v4954 = vadd.f32 %v4883, %v4890
  %v4955 = vadd.f32 %v4884, %v4890
  %4956 = vst.msk [vmem:[%s16] sm:$0xff] %vm785, %v4892
  %4957 = vst.msk [vmem:[%s16 + $0x8] sm:$0xff] %vm785, %v4893
  %4958 = vst.msk [vmem:[%s16 + $0x10] sm:$0xff] %vm785, %v4894
  %4959 = vst.msk [vmem:[%s16 + $0x18] sm:$0xff] %vm785, %v4895
  %4960 = vst.msk [vmem:[%s16 + $0x20] sm:$0xff] %vm785, %v4896
  %4961 = vst.msk [vmem:[%s16 + $0x28] sm:$0xff] %vm785, %v4897
  %4962 = vst.msk [vmem:[%s16 + $0x30] sm:$0xff] %vm785, %v4898
  %4963 = vst.msk [vmem:[%s16 + $0x38] sm:$0xff] %vm785, %v4899
  %4964 = vst.msk [vmem:[%s16 + $0x40] sm:$0xff] %vm785, %v4900
  %4965 = vst.msk [vmem:[%s16 + $0x48] sm:$0xff] %vm785, %v4901
  %4966 = vst.msk [vmem:[%s16 + $0x50] sm:$0xff] %vm785, %v4902
  %4967 = vst.msk [vmem:[%s16 + $0x58] sm:$0xff] %vm785, %v4903
  %4968 = vst.msk [vmem:[%s16 + $0x60] sm:$0xff] %vm785, %v4904
  %4969 = vst.msk [vmem:[%s16 + $0x68] sm:$0xff] %vm785, %v4905
  %4970 = vst.msk [vmem:[%s16 + $0x70] sm:$0xff] %vm785, %v4906
  %4971 = vst.msk [vmem:[%s16 + $0x78] sm:$0xff] %vm785, %v4907
  %4972 = vst.msk [vmem:[%s16 + $0x80] sm:$0xff] %vm785, %v4908
  %4973 = vst.msk [vmem:[%s16 + $0x88] sm:$0xff] %vm785, %v4909
  %4974 = vst.msk [vmem:[%s16 + $0x90] sm:$0xff] %vm785, %v4910
  %4975 = vst.msk [vmem:[%s16 + $0x98] sm:$0xff] %vm785, %v4911
  %4976 = vst.msk [vmem:[%s16 + $0xa0] sm:$0xff] %vm785, %v4912
  %4977 = vst.msk [vmem:[%s16 + $0xa8] sm:$0xff] %vm785, %v4913
  %4978 = vst.msk [vmem:[%s16 + $0xb0] sm:$0xff] %vm785, %v4914
  %4979 = vst.msk [vmem:[%s16 + $0xb8] sm:$0xff] %vm785, %v4915
  %4980 = vst.msk [vmem:[%s16 + $0xc0] sm:$0xff] %vm785, %v4916
  %4981 = vst.msk [vmem:[%s16 + $0xc8] sm:$0xff] %vm785, %v4917
  %4982 = vst.msk [vmem:[%s16 + $0xd0] sm:$0xff] %vm785, %v4918
  %4983 = vst.msk [vmem:[%s16 + $0xd8] sm:$0xff] %vm785, %v4919
  %4984 = vst.msk [vmem:[%s16 + $0xe0] sm:$0xff] %vm785, %v4920
  %4985 = vst.msk [vmem:[%s16 + $0xe8] sm:$0xff] %vm785, %v4921
  %4986 = vst.msk [vmem:[%s16 + $0xf0] sm:$0xff] %vm785, %v4922
  %4987 = vst.msk [vmem:[%s16 + $0xf8] sm:$0xff] %vm785, %v4923
  %4988 = vst.msk [vmem:[%s16 + $0x100] sm:$0xff] %vm785, %v4924
  %4989 = vst.msk [vmem:[%s16 + $0x108] sm:$0xff] %vm785, %v4925
  %4990 = vst.msk [vmem:[%s16 + $0x110] sm:$0xff] %vm785, %v4926
  %4991 = vst.msk [vmem:[%s16 + $0x118] sm:$0xff] %vm785, %v4927
  %4992 = vst.msk [vmem:[%s16 + $0x120] sm:$0xff] %vm785, %v4928
  %4993 = vst.msk [vmem:[%s16 + $0x128] sm:$0xff] %vm785, %v4929
  %4994 = vst.msk [vmem:[%s16 + $0x130] sm:$0xff] %vm785, %v4930
  %4995 = vst.msk [vmem:[%s16 + $0x138] sm:$0xff] %vm785, %v4931
  %4996 = vst.msk [vmem:[%s16 + $0x140] sm:$0xff] %vm785, %v4932
  %4997 = vst.msk [vmem:[%s16 + $0x148] sm:$0xff] %vm785, %v4933
  %4998 = vst.msk [vmem:[%s16 + $0x150] sm:$0xff] %vm785, %v4934
  %4999 = vst.msk [vmem:[%s16 + $0x158] sm:$0xff] %vm785, %v4935
  %5000 = vst.msk [vmem:[%s16 + $0x160] sm:$0xff] %vm785, %v4936
  %5001 = vst.msk [vmem:[%s16 + $0x168] sm:$0xff] %vm785, %v4937
  %5002 = vst.msk [vmem:[%s16 + $0x170] sm:$0xff] %vm785, %v4938
  %5003 = vst.msk [vmem:[%s16 + $0x178] sm:$0xff] %vm785, %v4939
  %5004 = vst.msk [vmem:[%s16 + $0x180] sm:$0xff] %vm785, %v4940
  %5005 = vst.msk [vmem:[%s16 + $0x188] sm:$0xff] %vm785, %v4941
  %5006 = vst.msk [vmem:[%s16 + $0x190] sm:$0xff] %vm785, %v4942
  %5007 = vst.msk [vmem:[%s16 + $0x198] sm:$0xff] %vm785, %v4943
  %5008 = vst.msk [vmem:[%s16 + $0x1a0] sm:$0xff] %vm785, %v4944
  %5009 = vst.msk [vmem:[%s16 + $0x1a8] sm:$0xff] %vm785, %v4945
  %5010 = vst.msk [vmem:[%s16 + $0x1b0] sm:$0xff] %vm785, %v4946
  %5011 = vst.msk [vmem:[%s16 + $0x1b8] sm:$0xff] %vm785, %v4947
  %5012 = vst.msk [vmem:[%s16 + $0x1c0] sm:$0xff] %vm785, %v4948
  %5013 = vst.msk [vmem:[%s16 + $0x1c8] sm:$0xff] %vm785, %v4949
  %5014 = vst.msk [vmem:[%s16 + $0x1d0] sm:$0xff] %vm785, %v4950
  %5015 = vst.msk [vmem:[%s16 + $0x1d8] sm:$0xff] %vm785, %v4951
  %5016 = vst.msk [vmem:[%s16 + $0x1e0] sm:$0xff] %vm785, %v4952
  %5017 = vst.msk [vmem:[%s16 + $0x1e8] sm:$0xff] %vm785, %v4953
  %5018 = vst.msk [vmem:[%s16 + $0x1f0] sm:$0xff] %vm785, %v4954
  %5019 = vst.msk [vmem:[%s16 + $0x1f8] sm:$0xff] %vm785, %v4955
  // Predicated region
  $region66: #{tpu_custom_call.1} parent=0 // pred_check
    _
  $region67: #{tpu_custom_call.1} parent=0 // pred_check_branch
    %5021 = sbr.rel (0) target = $region69
  $region68: #{tpu_custom_call.1} parent=0 // pred_region
    _
  $region69: #{tpu_custom_call.1} parent=0 // pred_fallthru
    _
  // Predicated region
  $region70: #{tpu_custom_call.1} parent=0 // pred_check
    _
  $region71: #{tpu_custom_call.1} parent=0 // pred_check_branch
    %5023 = sbr.rel (0) target = $region73
  $region72: #{tpu_custom_call.1} parent=0 // pred_region
    _
  $region73: #{tpu_custom_call.1} parent=0 // pred_fallthru
    _

</llo_original>
